<compile_context>
chip_gen: v7x
topology: tpu7x:2x2x1
jax: 0.10.0
libtpu: 0.0.40
codegen_flags: <defaults>
</compile_context>

<pallas_src>
import functools

import jax
import jax.numpy as jnp
from jax.experimental import pallas as pl
from jax.experimental.pallas import tpu as pltpu


def _round_up(x, m):
    return (x + m - 1) // m * m


# ----------------------------- Pallas kernel --------------------------------
def _p6p7_kernel(x4_ref, w6_ref, b6_ref, w7_ref, b7_ref,
                 p6_ref, p7_ref, scr_ref, *,
                 ho7, wt, a_rows, b_cols, cdt):
    """Fused P6 = conv3x3_s2(x); P7 = conv3x3_s2(relu(P6)) for one image.

    x4_ref : (1, 16, ho7+1, wt+1, Cin) factor-4 space-to-depth padded input
    w*_ref : (9, Cin_or_Cp, Cp) per-tap weight matrices, b*_ref: (1, Cp) f32
    p6_ref : (1, 4, ho7, wt, Cp) P6 parity planes (row/col parity major)
    p7_ref : (1, ho7, wt, Cp)    P7 in (padded) NHWC
    scr_ref: (4, ho7+1, wt+1, Cp) f32 relu(P6) parity planes + zero pad ring
    """
    f32 = jnp.float32
    cp = b6_ref.shape[-1]
    m = ho7 * wt

    # Zero init supplies both conv2's padding ring and zeros at P6 positions
    # that do not exist (odd spatial sizes / sublane-tile padding).
    scr_ref[...] = jnp.zeros(scr_ref.shape, scr_ref.dtype)

    # ---- conv #1: the four parity planes of P6 ------------------------------
    for r in range(2):
        for s in range(2):
            acc = jnp.zeros((m, cp), f32)
            for kh in range(3):
                u, dh = (2 * r + kh) % 4, (2 * r + kh) // 4
                for kw in range(3):
                    v, dw = (2 * s + kw) % 4, (2 * s + kw) // 4
                    tap = x4_ref[0, 4 * u + v, dh:dh + ho7, dw:dw + wt, :]
                    tap = tap.reshape(m, tap.shape[-1]).astype(cdt)
                    acc = acc + jnp.dot(tap, w6_ref[3 * kh + kw],
                                        preferred_element_type=f32)
            acc = acc + b6_ref[...]                      # bias in f32
            plane = acc.reshape(ho7, wt, cp)
            p6_ref[0, 2 * r + s] = plane.astype(p6_ref.dtype)
            nr, nc = a_rows[r], b_cols[s]
            if nr > 0 and nc > 0:                         # valid sub-block only
                scr_ref[2 * r + s, 1:1 + nr, 1:1 + nc, :] = (
                    jnp.maximum(plane, 0.0)[:nr, :nc, :])

    # ---- conv #2: P7 from relu(P6), consumed straight from VMEM -------------
    # kernel tap index -> (P6 parity, offset inside the padded scratch plane)
    src = ((1, 0), (0, 1), (1, 1))
    acc7 = jnp.zeros((m, cp), f32)
    for kh in range(3):
        r, ro = src[kh]
        for kw in range(3):
            s, co = src[kw]
            tap = scr_ref[2 * r + s, ro:ro + ho7, co:co + wt, :]
            tap = tap.reshape(m, cp).astype(cdt)
            acc7 = acc7 + jnp.dot(tap, w7_ref[3 * kh + kw],
                                  preferred_element_type=f32)
    acc7 = acc7 + b7_ref[...]
    p7_ref[0] = acc7.reshape(ho7, wt, cp).astype(p7_ref.dtype)


def _p6p7_pallas_call(x4, w6, b6, w7, b7, *, ho7, wt, a_rows, b_cols,
                      out_dtype, compute_dtype):
    n, nph, ha, wa, cin = x4.shape
    cp = w6.shape[-1]

    kernel = functools.partial(
        _p6p7_kernel, ho7=ho7, wt=wt, a_rows=a_rows, b_cols=b_cols,
        cdt=compute_dtype)

    return pl.pallas_call(
        kernel,
        out_shape=(
            jax.ShapeDtypeStruct((n, 4, ho7, wt, cp), out_dtype),  # P6 planes
            jax.ShapeDtypeStruct((n, ho7, wt, cp), out_dtype),     # P7 (NHWC)
        ),
        grid_spec=pltpu.PrefetchScalarGridSpec(
            num_scalar_prefetch=0,
            grid=(n,),
            in_specs=[
                pl.BlockSpec((1, nph, ha, wa, cin), lambda i: (i, 0, 0, 0, 0)),
                pl.BlockSpec((9, w6.shape[1], cp), lambda i: (0, 0, 0)),
                pl.BlockSpec((1, cp), lambda i: (0, 0)),
                pl.BlockSpec((9, cp, cp), lambda i: (0, 0, 0)),
                pl.BlockSpec((1, cp), lambda i: (0, 0)),
            ],
            out_specs=[
                pl.BlockSpec((1, 4, ho7, wt, cp), lambda i: (i, 0, 0, 0, 0)),
                pl.BlockSpec((1, ho7, wt, cp), lambda i: (i, 0, 0, 0)),
            ],
            scratch_shapes=[
                pltpu.VMEM((4, ho7 + 1, wt + 1, cp), jnp.float32),
            ],
        ),
        compiler_params=pltpu.CompilerParams(
            dimension_semantics=("parallel",)),
    )(x4, w6, b6, w7, b7)


# ------------------------------- JAX glue ------------------------------------
def _space_to_depth4(x_nchw, ha, wa):
    """NCHW -> (N, 16, ha, wa, C) phase planes of the (pad=1) padded input.

    Plane 4*u+v holds x_pad[4a+u, 4b+v].  Extra zero padding (beyond the
    conv's pad=1) on the bottom/right keeps every in-kernel tap slice
    in-bounds; those positions are never used by valid outputs."""
    n, c, h, w = x_nchw.shape
    x = jnp.transpose(x_nchw, (0, 2, 3, 1))               # NCHW -> NHWC
    hp, wp = 4 * ha, 4 * wa
    x = jnp.pad(x, ((0, 0), (1, hp - h - 1), (1, wp - w - 1), (0, 0)))
    x = x.reshape(n, ha, 4, wa, 4, c)
    return jnp.transpose(x, (0, 2, 4, 1, 3, 5)).reshape(n, 16, ha, wa, c)


def _prep_weight(w_oihw, cin_pad, cout_pad, dtype):
    """(Cout, Cin, 3, 3) -> (9, cin_pad, cout_pad) tap-major, zero padded."""
    cout, cin = w_oihw.shape[0], w_oihw.shape[1]
    w = jnp.transpose(w_oihw, (2, 3, 1, 0)).reshape(9, cin, cout)
    w = jnp.pad(w, ((0, 0), (0, cin_pad - cin), (0, cout_pad - cout)))
    return w.astype(dtype)


def _kaiming_uniform_a1(key, shape):
    """nn.init.kaiming_uniform_(w, a=1) on an OIHW conv weight."""
    fan_in = shape[1] * shape[2] * shape[3]
    bound = (3.0 / fan_in) ** 0.5  # sqrt(6 / ((1 + a^2) * fan_in)), a=1
    return jax.random.uniform(key, shape, jnp.float32, minval=-bound, maxval=bound)


class LastLevelP6P7:
    """JAX/Pallas port of maskrcnn_benchmark's LastLevelP6P7 (RetinaNet)."""

    def __init__(self, in_channels, out_channels, key,
                 compute_dtype=jnp.bfloat16):
        k6, k7 = jax.random.split(key)
        self.w6 = _kaiming_uniform_a1(k6, (out_channels, in_channels, 3, 3))
        self.b6 = jnp.zeros((1, out_channels), jnp.float32)
        self.w7 = _kaiming_uniform_a1(k7, (out_channels, out_channels, 3, 3))
        self.b7 = jnp.zeros((1, out_channels), jnp.float32)
        self.in_channels = in_channels
        self.out_channels = out_channels
        self.compute_dtype = compute_dtype
        self.use_P5 = in_channels == out_channels

    def __call__(self, c5, p5):
        x = p5 if self.use_P5 else c5
        n, cin, h, w = x.shape
        cout = self.out_channels

        ho6, wo6 = (h - 1) // 2 + 1, (w - 1) // 2 + 1       # P6 spatial size
        ho7, wo7 = (ho6 - 1) // 2 + 1, (wo6 - 1) // 2 + 1   # P7 spatial size
        wt = _round_up(wo7, 8)                  # sublane-aligned plane width
        a_rows = ((ho6 + 1) // 2, ho6 // 2)     # valid rows per P6 row-parity
        b_cols = ((wo6 + 1) // 2, wo6 // 2)     # valid cols per P6 col-parity
        cp = _round_up(cout, 128)               # lane-dense output channels

        x4 = _space_to_depth4(x, ho7 + 1, wt + 1)           # f32, cast in-kernel
        w6 = _prep_weight(self.w6, cin, cp, self.compute_dtype)
        w7 = _prep_weight(self.w7, cp, cp, self.compute_dtype)
        b6 = jnp.pad(self.b6, ((0, 0), (0, cp - cout)))
        b7 = jnp.pad(self.b7, ((0, 0), (0, cp - cout)))

        p6_planes, p7_pad = _p6p7_pallas_call(
            x4, w6, b6, w7, b7, ho7=ho7, wt=wt, a_rows=a_rows, b_cols=b_cols,
            out_dtype=x.dtype, compute_dtype=self.compute_dtype)

        # Re-interleave the P6 parity planes (depth-to-space) and go back to
        # NCHW only at the module boundary.
        p6 = p6_planes.reshape(n, 2, 2, ho7, wt, cp)
        p6 = jnp.transpose(p6, (0, 3, 1, 4, 2, 5)).reshape(n, 2 * ho7, 2 * wt, cp)
        p6 = jnp.transpose(p6[:, :ho6, :wo6, :cout], (0, 3, 1, 2))
        p7 = jnp.transpose(p7_pad[:, :, :wo7, :cout], (0, 3, 1, 2))
        return [p6, p7]


# ----------------------------- reference check -------------------------------
def _ref_conv3x3_s2(x, w, b, cdt):
    # Inputs/weights rounded to the kernel's MXU dtype, accumulation in f32,
    # mirroring what the Pallas kernel computes.
    xq = x.astype(cdt).astype(jnp.float32)
    wq = w.astype(cdt).astype(jnp.float32)
    y = jax.lax.conv_general_dilated(
        xq, wq, window_strides=(2, 2), padding=((1, 1), (1, 1)),
        dimension_numbers=("NCHW", "OIHW", "NCHW"),
        preferred_element_type=jnp.float32)
    return y + b.reshape(1, -1, 1, 1)


if __name__ == "__main__":
    key = jax.random.PRNGKey(0)
    k_mod, k_c5, k_p5 = jax.random.split(key, 3)

    in_channels = 4
    out_channels = 4   # in == out  ->  use_P5 = True (forward consumes p5)
    n, h, w = 2, 16, 16

    c5 = jax.random.normal(k_c5, (n, in_channels, h, w), jnp.float32)
    p5 = jax.random.normal(k_p5, (n, in_channels, h, w), jnp.float32)

    module = LastLevelP6P7(in_channels, out_channels, k_mod)
    p6, p7 = module(c5, p5)
    jax.block_until_ready(p6)
    jax.block_until_ready(p7)

    # Pure-JAX reference of the same forward pass.
    cdt = module.compute_dtype
    x = p5 if module.use_P5 else c5
    p6_ref = _ref_conv3x3_s2(x, module.w6, module.b6, cdt)
    p7_ref = _ref_conv3x3_s2(jnp.maximum(p6_ref, 0.0), module.w7, module.b7, cdt)

    assert p6.shape == (n, out_channels, 8, 8), p6.shape
    assert p7.shape == (n, out_channels, 4, 4), p7.shape
    assert jnp.allclose(p6, p6_ref, atol=1e-3, rtol=1e-3), (
        float(jnp.max(jnp.abs(p6 - p6_ref))))
    assert jnp.allclose(p7, p7_ref, atol=1e-3, rtol=1e-3), (
        float(jnp.max(jnp.abs(p7 - p7_ref))))

    print("KERNEL_OK")
</pallas_src>

<mosaic_0001>
module attributes {stable_mosaic.version = 11 : i64} {
  func.func @_p6p7_kernel(%arg0: i32, %arg1: memref<1x16x5x9x4xf32, #tpu.memory_space<vmem>>, %arg2: memref<9x4x128xbf16, #tpu.memory_space<vmem>>, %arg3: memref<1x128xf32, #tpu.memory_space<vmem>>, %arg4: memref<9x128x128xbf16, #tpu.memory_space<vmem>>, %arg5: memref<1x128xf32, #tpu.memory_space<vmem>>, %arg6: memref<1x4x4x8x128xf32, #tpu.memory_space<vmem>>, %arg7: memref<1x4x8x128xf32, #tpu.memory_space<vmem>>, %arg8: memref<4x5x9x128xf32, #tpu.memory_space<vmem>>) attributes {dimension_semantics = [#tpu.dimension_semantics<parallel>], iteration_bounds = array<i64: 2>, scalar_prefetch = 0 : i64, scratch_operands = 1 : i64, tpu.core_type = #tpu.core_type<tc>, window_params = [{transform_indices = @transform_0, window_bounds = array<i64: 1, 16, 5, 9, 4>}, {pipeline_mode = #tpu.pipeline_mode<synchronous>, transform_indices = @transform_1, window_bounds = array<i64: 9, 4, 128>}, {pipeline_mode = #tpu.pipeline_mode<synchronous>, transform_indices = @transform_2, window_bounds = array<i64: 1, 128>}, {pipeline_mode = #tpu.pipeline_mode<synchronous>, transform_indices = @transform_3, window_bounds = array<i64: 9, 128, 128>}, {pipeline_mode = #tpu.pipeline_mode<synchronous>, transform_indices = @transform_4, window_bounds = array<i64: 1, 128>}, {transform_indices = @transform_5, window_bounds = array<i64: 1, 4, 4, 8, 128>}, {transform_indices = @transform_6, window_bounds = array<i64: 1, 4, 8, 128>}]} {
    %cst = arith.constant 0.000000e+00 : f32
    %0 = vector.broadcast %cst : f32 to vector<4x5x9x128xf32>
    %c0 = arith.constant 0 : index
    %c0_0 = arith.constant 0 : index
    %c0_1 = arith.constant 0 : index
    %c0_2 = arith.constant 0 : index
    %1 = vector.load %arg8[%c0, %c0_0, %c0_1, %c0_2] : memref<4x5x9x128xf32, #tpu.memory_space<vmem>>, vector<4x5x9x128xf32>
    tpu.vector_store %arg8[%c0, %c0_0, %c0_1, %c0_2], %0 {strides = array<i32>} : memref<4x5x9x128xf32, #tpu.memory_space<vmem>>, vector<4x5x9x128xf32>,
    %cst_3 = arith.constant 0.000000e+00 : f32
    %2 = vector.broadcast %cst_3 : f32 to vector<32x128xf32>
    %c0_4 = arith.constant 0 : index
    %c0_5 = arith.constant 0 : index
    %c0_6 = arith.constant 0 : index
    %c0_7 = arith.constant 0 : index
    %c0_8 = arith.constant 0 : index
    %3 = vector.load %arg1[%c0_4, %c0_5, %c0_6, %c0_7, %c0_8] : memref<1x16x5x9x4xf32, #tpu.memory_space<vmem>>, vector<1x1x4x8x4xf32>
    %4 = vector.shape_cast %3 : vector<1x1x4x8x4xf32> to vector<4x8x4xf32>
    %5 = vector.shape_cast %4 : vector<4x8x4xf32> to vector<32x4xf32>
    %6 = arith.truncf %5 : vector<32x4xf32> to vector<32x4xbf16>
    %c0_9 = arith.constant 0 : index
    %c0_10 = arith.constant 0 : index
    %c0_11 = arith.constant 0 : index
    %7 = vector.load %arg2[%c0_9, %c0_10, %c0_11] : memref<9x4x128xbf16, #tpu.memory_space<vmem>>, vector<1x4x128xbf16>
    %8 = vector.shape_cast %7 : vector<1x4x128xbf16> to vector<4x128xbf16>
    %cst_12 = arith.constant dense<0.000000e+00> : vector<32x128xf32>
    %9 = tpu.matmul %6, %8, %cst_12 {dimension_numbers = #tpu.dot_dimension_numbers<[1], [0], [0], [1], [0, 0, 1, 1], [], []>} : vector<32x4xbf16>, vector<4x128xbf16>, vector<32x128xf32> -> vector<32x128xf32>
    %10 = arith.addf %2, %9 : vector<32x128xf32>
    %c0_13 = arith.constant 0 : index
    %c1 = arith.constant 1 : index
    %c0_14 = arith.constant 0 : index
    %c0_15 = arith.constant 0 : index
    %c0_16 = arith.constant 0 : index
    %11 = vector.load %arg1[%c0_13, %c1, %c0_14, %c0_15, %c0_16] : memref<1x16x5x9x4xf32, #tpu.memory_space<vmem>>, vector<1x1x4x8x4xf32>
    %12 = vector.shape_cast %11 : vector<1x1x4x8x4xf32> to vector<4x8x4xf32>
    %13 = vector.shape_cast %12 : vector<4x8x4xf32> to vector<32x4xf32>
    %14 = arith.truncf %13 : vector<32x4xf32> to vector<32x4xbf16>
    %c1_17 = arith.constant 1 : index
    %c0_18 = arith.constant 0 : index
    %c0_19 = arith.constant 0 : index
    %15 = vector.load %arg2[%c1_17, %c0_18, %c0_19] : memref<9x4x128xbf16, #tpu.memory_space<vmem>>, vector<1x4x128xbf16>
    %16 = vector.shape_cast %15 : vector<1x4x128xbf16> to vector<4x128xbf16>
    %cst_20 = arith.constant dense<0.000000e+00> : vector<32x128xf32>
    %17 = tpu.matmul %14, %16, %cst_20 {dimension_numbers = #tpu.dot_dimension_numbers<[1], [0], [0], [1], [0, 0, 1, 1], [], []>} : vector<32x4xbf16>, vector<4x128xbf16>, vector<32x128xf32> -> vector<32x128xf32>
    %18 = arith.addf %10, %17 : vector<32x128xf32>
    %c0_21 = arith.constant 0 : index
    %c2 = arith.constant 2 : index
    %c0_22 = arith.constant 0 : index
    %c0_23 = arith.constant 0 : index
    %c0_24 = arith.constant 0 : index
    %19 = vector.load %arg1[%c0_21, %c2, %c0_22, %c0_23, %c0_24] : memref<1x16x5x9x4xf32, #tpu.memory_space<vmem>>, vector<1x1x4x8x4xf32>
    %20 = vector.shape_cast %19 : vector<1x1x4x8x4xf32> to vector<4x8x4xf32>
    %21 = vector.shape_cast %20 : vector<4x8x4xf32> to vector<32x4xf32>
    %22 = arith.truncf %21 : vector<32x4xf32> to vector<32x4xbf16>
    %c2_25 = arith.constant 2 : index
    %c0_26 = arith.constant 0 : index
    %c0_27 = arith.constant 0 : index
    %23 = vector.load %arg2[%c2_25, %c0_26, %c0_27] : memref<9x4x128xbf16, #tpu.memory_space<vmem>>, vector<1x4x128xbf16>
    %24 = vector.shape_cast %23 : vector<1x4x128xbf16> to vector<4x128xbf16>
    %cst_28 = arith.constant dense<0.000000e+00> : vector<32x128xf32>
    %25 = tpu.matmul %22, %24, %cst_28 {dimension_numbers = #tpu.dot_dimension_numbers<[1], [0], [0], [1], [0, 0, 1, 1], [], []>} : vector<32x4xbf16>, vector<4x128xbf16>, vector<32x128xf32> -> vector<32x128xf32>
    %26 = arith.addf %18, %25 : vector<32x128xf32>
    %c0_29 = arith.constant 0 : index
    %c4 = arith.constant 4 : index
    %c0_30 = arith.constant 0 : index
    %c0_31 = arith.constant 0 : index
    %c0_32 = arith.constant 0 : index
    %27 = vector.load %arg1[%c0_29, %c4, %c0_30, %c0_31, %c0_32] : memref<1x16x5x9x4xf32, #tpu.memory_space<vmem>>, vector<1x1x4x8x4xf32>
    %28 = vector.shape_cast %27 : vector<1x1x4x8x4xf32> to vector<4x8x4xf32>
    %29 = vector.shape_cast %28 : vector<4x8x4xf32> to vector<32x4xf32>
    %30 = arith.truncf %29 : vector<32x4xf32> to vector<32x4xbf16>
    %c3 = arith.constant 3 : index
    %c0_33 = arith.constant 0 : index
    %c0_34 = arith.constant 0 : index
    %31 = vector.load %arg2[%c3, %c0_33, %c0_34] : memref<9x4x128xbf16, #tpu.memory_space<vmem>>, vector<1x4x128xbf16>
    %32 = vector.shape_cast %31 : vector<1x4x128xbf16> to vector<4x128xbf16>
    %cst_35 = arith.constant dense<0.000000e+00> : vector<32x128xf32>
    %33 = tpu.matmul %30, %32, %cst_35 {dimension_numbers = #tpu.dot_dimension_numbers<[1], [0], [0], [1], [0, 0, 1, 1], [], []>} : vector<32x4xbf16>, vector<4x128xbf16>, vector<32x128xf32> -> vector<32x128xf32>
    %34 = arith.addf %26, %33 : vector<32x128xf32>
    %c0_36 = arith.constant 0 : index
    %c5 = arith.constant 5 : index
    %c0_37 = arith.constant 0 : index
    %c0_38 = arith.constant 0 : index
    %c0_39 = arith.constant 0 : index
    %35 = vector.load %arg1[%c0_36, %c5, %c0_37, %c0_38, %c0_39] : memref<1x16x5x9x4xf32, #tpu.memory_space<vmem>>, vector<1x1x4x8x4xf32>
    %36 = vector.shape_cast %35 : vector<1x1x4x8x4xf32> to vector<4x8x4xf32>
    %37 = vector.shape_cast %36 : vector<4x8x4xf32> to vector<32x4xf32>
    %38 = arith.truncf %37 : vector<32x4xf32> to vector<32x4xbf16>
    %c4_40 = arith.constant 4 : index
    %c0_41 = arith.constant 0 : index
    %c0_42 = arith.constant 0 : index
    %39 = vector.load %arg2[%c4_40, %c0_41, %c0_42] : memref<9x4x128xbf16, #tpu.memory_space<vmem>>, vector<1x4x128xbf16>
    %40 = vector.shape_cast %39 : vector<1x4x128xbf16> to vector<4x128xbf16>
    %cst_43 = arith.constant dense<0.000000e+00> : vector<32x128xf32>
    %41 = tpu.matmul %38, %40, %cst_43 {dimension_numbers = #tpu.dot_dimension_numbers<[1], [0], [0], [1], [0, 0, 1, 1], [], []>} : vector<32x4xbf16>, vector<4x128xbf16>, vector<32x128xf32> -> vector<32x128xf32>
    %42 = arith.addf %34, %41 : vector<32x128xf32>
    %c0_44 = arith.constant 0 : index
    %c6 = arith.constant 6 : index
    %c0_45 = arith.constant 0 : index
    %c0_46 = arith.constant 0 : index
    %c0_47 = arith.constant 0 : index
    %43 = vector.load %arg1[%c0_44, %c6, %c0_45, %c0_46, %c0_47] : memref<1x16x5x9x4xf32, #tpu.memory_space<vmem>>, vector<1x1x4x8x4xf32>
    %44 = vector.shape_cast %43 : vector<1x1x4x8x4xf32> to vector<4x8x4xf32>
    %45 = vector.shape_cast %44 : vector<4x8x4xf32> to vector<32x4xf32>
    %46 = arith.truncf %45 : vector<32x4xf32> to vector<32x4xbf16>
    %c5_48 = arith.constant 5 : index
    %c0_49 = arith.constant 0 : index
    %c0_50 = arith.constant 0 : index
    %47 = vector.load %arg2[%c5_48, %c0_49, %c0_50] : memref<9x4x128xbf16, #tpu.memory_space<vmem>>, vector<1x4x128xbf16>
    %48 = vector.shape_cast %47 : vector<1x4x128xbf16> to vector<4x128xbf16>
    %cst_51 = arith.constant dense<0.000000e+00> : vector<32x128xf32>
    %49 = tpu.matmul %46, %48, %cst_51 {dimension_numbers = #tpu.dot_dimension_numbers<[1], [0], [0], [1], [0, 0, 1, 1], [], []>} : vector<32x4xbf16>, vector<4x128xbf16>, vector<32x128xf32> -> vector<32x128xf32>
    %50 = arith.addf %42, %49 : vector<32x128xf32>
    %c0_52 = arith.constant 0 : index
    %c8 = arith.constant 8 : index
    %c0_53 = arith.constant 0 : index
    %c0_54 = arith.constant 0 : index
    %c0_55 = arith.constant 0 : index
    %51 = vector.load %arg1[%c0_52, %c8, %c0_53, %c0_54, %c0_55] : memref<1x16x5x9x4xf32, #tpu.memory_space<vmem>>, vector<1x1x4x8x4xf32>
    %52 = vector.shape_cast %51 : vector<1x1x4x8x4xf32> to vector<4x8x4xf32>
    %53 = vector.shape_cast %52 : vector<4x8x4xf32> to vector<32x4xf32>
    %54 = arith.truncf %53 : vector<32x4xf32> to vector<32x4xbf16>
    %c6_56 = arith.constant 6 : index
    %c0_57 = arith.constant 0 : index
    %c0_58 = arith.constant 0 : index
    %55 = vector.load %arg2[%c6_56, %c0_57, %c0_58] : memref<9x4x128xbf16, #tpu.memory_space<vmem>>, vector<1x4x128xbf16>
    %56 = vector.shape_cast %55 : vector<1x4x128xbf16> to vector<4x128xbf16>
    %cst_59 = arith.constant dense<0.000000e+00> : vector<32x128xf32>
    %57 = tpu.matmul %54, %56, %cst_59 {dimension_numbers = #tpu.dot_dimension_numbers<[1], [0], [0], [1], [0, 0, 1, 1], [], []>} : vector<32x4xbf16>, vector<4x128xbf16>, vector<32x128xf32> -> vector<32x128xf32>
    %58 = arith.addf %50, %57 : vector<32x128xf32>
    %c0_60 = arith.constant 0 : index
    %c9 = arith.constant 9 : index
    %c0_61 = arith.constant 0 : index
    %c0_62 = arith.constant 0 : index
    %c0_63 = arith.constant 0 : index
    %59 = vector.load %arg1[%c0_60, %c9, %c0_61, %c0_62, %c0_63] : memref<1x16x5x9x4xf32, #tpu.memory_space<vmem>>, vector<1x1x4x8x4xf32>
    %60 = vector.shape_cast %59 : vector<1x1x4x8x4xf32> to vector<4x8x4xf32>
    %61 = vector.shape_cast %60 : vector<4x8x4xf32> to vector<32x4xf32>
    %62 = arith.truncf %61 : vector<32x4xf32> to vector<32x4xbf16>
    %c7 = arith.constant 7 : index
    %c0_64 = arith.constant 0 : index
    %c0_65 = arith.constant 0 : index
    %63 = vector.load %arg2[%c7, %c0_64, %c0_65] : memref<9x4x128xbf16, #tpu.memory_space<vmem>>, vector<1x4x128xbf16>
    %64 = vector.shape_cast %63 : vector<1x4x128xbf16> to vector<4x128xbf16>
    %cst_66 = arith.constant dense<0.000000e+00> : vector<32x128xf32>
    %65 = tpu.matmul %62, %64, %cst_66 {dimension_numbers = #tpu.dot_dimension_numbers<[1], [0], [0], [1], [0, 0, 1, 1], [], []>} : vector<32x4xbf16>, vector<4x128xbf16>, vector<32x128xf32> -> vector<32x128xf32>
    %66 = arith.addf %58, %65 : vector<32x128xf32>
    %c0_67 = arith.constant 0 : index
    %c10 = arith.constant 10 : index
    %c0_68 = arith.constant 0 : index
    %c0_69 = arith.constant 0 : index
    %c0_70 = arith.constant 0 : index
    %67 = vector.load %arg1[%c0_67, %c10, %c0_68, %c0_69, %c0_70] : memref<1x16x5x9x4xf32, #tpu.memory_space<vmem>>, vector<1x1x4x8x4xf32>
    %68 = vector.shape_cast %67 : vector<1x1x4x8x4xf32> to vector<4x8x4xf32>
    %69 = vector.shape_cast %68 : vector<4x8x4xf32> to vector<32x4xf32>
    %70 = arith.truncf %69 : vector<32x4xf32> to vector<32x4xbf16>
    %c8_71 = arith.constant 8 : index
    %c0_72 = arith.constant 0 : index
    %c0_73 = arith.constant 0 : index
    %71 = vector.load %arg2[%c8_71, %c0_72, %c0_73] : memref<9x4x128xbf16, #tpu.memory_space<vmem>>, vector<1x4x128xbf16>
    %72 = vector.shape_cast %71 : vector<1x4x128xbf16> to vector<4x128xbf16>
    %cst_74 = arith.constant dense<0.000000e+00> : vector<32x128xf32>
    %73 = tpu.matmul %70, %72, %cst_74 {dimension_numbers = #tpu.dot_dimension_numbers<[1], [0], [0], [1], [0, 0, 1, 1], [], []>} : vector<32x4xbf16>, vector<4x128xbf16>, vector<32x128xf32> -> vector<32x128xf32>
    %74 = arith.addf %66, %73 : vector<32x128xf32>
    %c0_75 = arith.constant 0 : index
    %c0_76 = arith.constant 0 : index
    %75 = vector.load %arg3[%c0_75, %c0_76] : memref<1x128xf32, #tpu.memory_space<vmem>>, vector<1x128xf32>
    %76 = vector.broadcast %75 : vector<1x128xf32> to vector<32x128xf32>
    %77 = arith.addf %74, %76 : vector<32x128xf32>
    %78 = vector.shape_cast %77 : vector<32x128xf32> to vector<4x8x128xf32>
    %c0_77 = arith.constant 0 : index
    %c0_78 = arith.constant 0 : index
    %c0_79 = arith.constant 0 : index
    %c0_80 = arith.constant 0 : index
    %c0_81 = arith.constant 0 : index
    %79 = vector.load %arg6[%c0_77, %c0_78, %c0_79, %c0_80, %c0_81] : memref<1x4x4x8x128xf32, #tpu.memory_space<vmem>>, vector<1x1x4x8x128xf32>
    %80 = vector.shape_cast %79 : vector<1x1x4x8x128xf32> to vector<4x8x128xf32>
    %81 = vector.shape_cast %78 : vector<4x8x128xf32> to vector<1x1x4x8x128xf32>
    tpu.vector_store %arg6[%c0_77, %c0_78, %c0_79, %c0_80, %c0_81], %81 {strides = array<i32>} : memref<1x4x4x8x128xf32, #tpu.memory_space<vmem>>, vector<1x1x4x8x128xf32>,
    %cst_82 = arith.constant 0.000000e+00 : f32
    %82 = vector.broadcast %cst_82 : f32 to vector<4x8x128xf32>
    %83 = arith.maximumf %78, %82 : vector<4x8x128xf32>
    %84 = vector.extract_strided_slice %83 {offsets = [0, 0, 0], sizes = [4, 4, 128], strides = [1, 1, 1]} : vector<4x8x128xf32> to vector<4x4x128xf32>
    %c0_83 = arith.constant 0 : index
    %c1_84 = arith.constant 1 : index
    %c1_85 = arith.constant 1 : index
    %c0_86 = arith.constant 0 : index
    %85 = vector.load %arg8[%c0_83, %c1_84, %c1_85, %c0_86] : memref<4x5x9x128xf32, #tpu.memory_space<vmem>>, vector<1x4x4x128xf32>
    %86 = vector.shape_cast %85 : vector<1x4x4x128xf32> to vector<4x4x128xf32>
    %87 = vector.shape_cast %84 : vector<4x4x128xf32> to vector<1x4x4x128xf32>
    tpu.vector_store %arg8[%c0_83, %c1_84, %c1_85, %c0_86], %87 {strides = array<i32>} : memref<4x5x9x128xf32, #tpu.memory_space<vmem>>, vector<1x4x4x128xf32>,
    %cst_87 = arith.constant 0.000000e+00 : f32
    %88 = vector.broadcast %cst_87 : f32 to vector<32x128xf32>
    %c0_88 = arith.constant 0 : index
    %c2_89 = arith.constant 2 : index
    %c0_90 = arith.constant 0 : index
    %c0_91 = arith.constant 0 : index
    %c0_92 = arith.constant 0 : index
    %89 = vector.load %arg1[%c0_88, %c2_89, %c0_90, %c0_91, %c0_92] : memref<1x16x5x9x4xf32, #tpu.memory_space<vmem>>, vector<1x1x4x8x4xf32>
    %90 = vector.shape_cast %89 : vector<1x1x4x8x4xf32> to vector<4x8x4xf32>
    %91 = vector.shape_cast %90 : vector<4x8x4xf32> to vector<32x4xf32>
    %92 = arith.truncf %91 : vector<32x4xf32> to vector<32x4xbf16>
    %c0_93 = arith.constant 0 : index
    %c0_94 = arith.constant 0 : index
    %c0_95 = arith.constant 0 : index
    %93 = vector.load %arg2[%c0_93, %c0_94, %c0_95] : memref<9x4x128xbf16, #tpu.memory_space<vmem>>, vector<1x4x128xbf16>
    %94 = vector.shape_cast %93 : vector<1x4x128xbf16> to vector<4x128xbf16>
    %cst_96 = arith.constant dense<0.000000e+00> : vector<32x128xf32>
    %95 = tpu.matmul %92, %94, %cst_96 {dimension_numbers = #tpu.dot_dimension_numbers<[1], [0], [0], [1], [0, 0, 1, 1], [], []>} : vector<32x4xbf16>, vector<4x128xbf16>, vector<32x128xf32> -> vector<32x128xf32>
    %96 = arith.addf %88, %95 : vector<32x128xf32>
    %c0_97 = arith.constant 0 : index
    %c3_98 = arith.constant 3 : index
    %c0_99 = arith.constant 0 : index
    %c0_100 = arith.constant 0 : index
    %c0_101 = arith.constant 0 : index
    %97 = vector.load %arg1[%c0_97, %c3_98, %c0_99, %c0_100, %c0_101] : memref<1x16x5x9x4xf32, #tpu.memory_space<vmem>>, vector<1x1x4x8x4xf32>
    %98 = vector.shape_cast %97 : vector<1x1x4x8x4xf32> to vector<4x8x4xf32>
    %99 = vector.shape_cast %98 : vector<4x8x4xf32> to vector<32x4xf32>
    %100 = arith.truncf %99 : vector<32x4xf32> to vector<32x4xbf16>
    %c1_102 = arith.constant 1 : index
    %c0_103 = arith.constant 0 : index
    %c0_104 = arith.constant 0 : index
    %101 = vector.load %arg2[%c1_102, %c0_103, %c0_104] : memref<9x4x128xbf16, #tpu.memory_space<vmem>>, vector<1x4x128xbf16>
    %102 = vector.shape_cast %101 : vector<1x4x128xbf16> to vector<4x128xbf16>
    %cst_105 = arith.constant dense<0.000000e+00> : vector<32x128xf32>
    %103 = tpu.matmul %100, %102, %cst_105 {dimension_numbers = #tpu.dot_dimension_numbers<[1], [0], [0], [1], [0, 0, 1, 1], [], []>} : vector<32x4xbf16>, vector<4x128xbf16>, vector<32x128xf32> -> vector<32x128xf32>
    %104 = arith.addf %96, %103 : vector<32x128xf32>
    %c0_106 = arith.constant 0 : index
    %c0_107 = arith.constant 0 : index
    %c0_108 = arith.constant 0 : index
    %c1_109 = arith.constant 1 : index
    %c0_110 = arith.constant 0 : index
    %105 = vector.load %arg1[%c0_106, %c0_107, %c0_108, %c1_109, %c0_110] : memref<1x16x5x9x4xf32, #tpu.memory_space<vmem>>, vector<1x1x4x8x4xf32>
    %106 = vector.shape_cast %105 : vector<1x1x4x8x4xf32> to vector<4x8x4xf32>
    %107 = vector.shape_cast %106 : vector<4x8x4xf32> to vector<32x4xf32>
    %108 = arith.truncf %107 : vector<32x4xf32> to vector<32x4xbf16>
    %c2_111 = arith.constant 2 : index
    %c0_112 = arith.constant 0 : index
    %c0_113 = arith.constant 0 : index
    %109 = vector.load %arg2[%c2_111, %c0_112, %c0_113] : memref<9x4x128xbf16, #tpu.memory_space<vmem>>, vector<1x4x128xbf16>
    %110 = vector.shape_cast %109 : vector<1x4x128xbf16> to vector<4x128xbf16>
    %cst_114 = arith.constant dense<0.000000e+00> : vector<32x128xf32>
    %111 = tpu.matmul %108, %110, %cst_114 {dimension_numbers = #tpu.dot_dimension_numbers<[1], [0], [0], [1], [0, 0, 1, 1], [], []>} : vector<32x4xbf16>, vector<4x128xbf16>, vector<32x128xf32> -> vector<32x128xf32>
    %112 = arith.addf %104, %111 : vector<32x128xf32>
    %c0_115 = arith.constant 0 : index
    %c6_116 = arith.constant 6 : index
    %c0_117 = arith.constant 0 : index
    %c0_118 = arith.constant 0 : index
    %c0_119 = arith.constant 0 : index
    %113 = vector.load %arg1[%c0_115, %c6_116, %c0_117, %c0_118, %c0_119] : memref<1x16x5x9x4xf32, #tpu.memory_space<vmem>>, vector<1x1x4x8x4xf32>
    %114 = vector.shape_cast %113 : vector<1x1x4x8x4xf32> to vector<4x8x4xf32>
    %115 = vector.shape_cast %114 : vector<4x8x4xf32> to vector<32x4xf32>
    %116 = arith.truncf %115 : vector<32x4xf32> to vector<32x4xbf16>
    %c3_120 = arith.constant 3 : index
    %c0_121 = arith.constant 0 : index
    %c0_122 = arith.constant 0 : index
    %117 = vector.load %arg2[%c3_120, %c0_121, %c0_122] : memref<9x4x128xbf16, #tpu.memory_space<vmem>>, vector<1x4x128xbf16>
    %118 = vector.shape_cast %117 : vector<1x4x128xbf16> to vector<4x128xbf16>
    %cst_123 = arith.constant dense<0.000000e+00> : vector<32x128xf32>
    %119 = tpu.matmul %116, %118, %cst_123 {dimension_numbers = #tpu.dot_dimension_numbers<[1], [0], [0], [1], [0, 0, 1, 1], [], []>} : vector<32x4xbf16>, vector<4x128xbf16>, vector<32x128xf32> -> vector<32x128xf32>
    %120 = arith.addf %112, %119 : vector<32x128xf32>
    %c0_124 = arith.constant 0 : index
    %c7_125 = arith.constant 7 : index
    %c0_126 = arith.constant 0 : index
    %c0_127 = arith.constant 0 : index
    %c0_128 = arith.constant 0 : index
    %121 = vector.load %arg1[%c0_124, %c7_125, %c0_126, %c0_127, %c0_128] : memref<1x16x5x9x4xf32, #tpu.memory_space<vmem>>, vector<1x1x4x8x4xf32>
    %122 = vector.shape_cast %121 : vector<1x1x4x8x4xf32> to vector<4x8x4xf32>
    %123 = vector.shape_cast %122 : vector<4x8x4xf32> to vector<32x4xf32>
    %124 = arith.truncf %123 : vector<32x4xf32> to vector<32x4xbf16>
    %c4_129 = arith.constant 4 : index
    %c0_130 = arith.constant 0 : index
    %c0_131 = arith.constant 0 : index
    %125 = vector.load %arg2[%c4_129, %c0_130, %c0_131] : memref<9x4x128xbf16, #tpu.memory_space<vmem>>, vector<1x4x128xbf16>
    %126 = vector.shape_cast %125 : vector<1x4x128xbf16> to vector<4x128xbf16>
    %cst_132 = arith.constant dense<0.000000e+00> : vector<32x128xf32>
    %127 = tpu.matmul %124, %126, %cst_132 {dimension_numbers = #tpu.dot_dimension_numbers<[1], [0], [0], [1], [0, 0, 1, 1], [], []>} : vector<32x4xbf16>, vector<4x128xbf16>, vector<32x128xf32> -> vector<32x128xf32>
    %128 = arith.addf %120, %127 : vector<32x128xf32>
    %c0_133 = arith.constant 0 : index
    %c4_134 = arith.constant 4 : index
    %c0_135 = arith.constant 0 : index
    %c1_136 = arith.constant 1 : index
    %c0_137 = arith.constant 0 : index
    %129 = vector.load %arg1[%c0_133, %c4_134, %c0_135, %c1_136, %c0_137] : memref<1x16x5x9x4xf32, #tpu.memory_space<vmem>>, vector<1x1x4x8x4xf32>
    %130 = vector.shape_cast %129 : vector<1x1x4x8x4xf32> to vector<4x8x4xf32>
    %131 = vector.shape_cast %130 : vector<4x8x4xf32> to vector<32x4xf32>
    %132 = arith.truncf %131 : vector<32x4xf32> to vector<32x4xbf16>
    %c5_138 = arith.constant 5 : index
    %c0_139 = arith.constant 0 : index
    %c0_140 = arith.constant 0 : index
    %133 = vector.load %arg2[%c5_138, %c0_139, %c0_140] : memref<9x4x128xbf16, #tpu.memory_space<vmem>>, vector<1x4x128xbf16>
    %134 = vector.shape_cast %133 : vector<1x4x128xbf16> to vector<4x128xbf16>
    %cst_141 = arith.constant dense<0.000000e+00> : vector<32x128xf32>
    %135 = tpu.matmul %132, %134, %cst_141 {dimension_numbers = #tpu.dot_dimension_numbers<[1], [0], [0], [1], [0, 0, 1, 1], [], []>} : vector<32x4xbf16>, vector<4x128xbf16>, vector<32x128xf32> -> vector<32x128xf32>
    %136 = arith.addf %128, %135 : vector<32x128xf32>
    %c0_142 = arith.constant 0 : index
    %c10_143 = arith.constant 10 : index
    %c0_144 = arith.constant 0 : index
    %c0_145 = arith.constant 0 : index
    %c0_146 = arith.constant 0 : index
    %137 = vector.load %arg1[%c0_142, %c10_143, %c0_144, %c0_145, %c0_146] : memref<1x16x5x9x4xf32, #tpu.memory_space<vmem>>, vector<1x1x4x8x4xf32>
    %138 = vector.shape_cast %137 : vector<1x1x4x8x4xf32> to vector<4x8x4xf32>
    %139 = vector.shape_cast %138 : vector<4x8x4xf32> to vector<32x4xf32>
    %140 = arith.truncf %139 : vector<32x4xf32> to vector<32x4xbf16>
    %c6_147 = arith.constant 6 : index
    %c0_148 = arith.constant 0 : index
    %c0_149 = arith.constant 0 : index
    %141 = vector.load %arg2[%c6_147, %c0_148, %c0_149] : memref<9x4x128xbf16, #tpu.memory_space<vmem>>, vector<1x4x128xbf16>
    %142 = vector.shape_cast %141 : vector<1x4x128xbf16> to vector<4x128xbf16>
    %cst_150 = arith.constant dense<0.000000e+00> : vector<32x128xf32>
    %143 = tpu.matmul %140, %142, %cst_150 {dimension_numbers = #tpu.dot_dimension_numbers<[1], [0], [0], [1], [0, 0, 1, 1], [], []>} : vector<32x4xbf16>, vector<4x128xbf16>, vector<32x128xf32> -> vector<32x128xf32>
    %144 = arith.addf %136, %143 : vector<32x128xf32>
    %c0_151 = arith.constant 0 : index
    %c11 = arith.constant 11 : index
    %c0_152 = arith.constant 0 : index
    %c0_153 = arith.constant 0 : index
    %c0_154 = arith.constant 0 : index
    %145 = vector.load %arg1[%c0_151, %c11, %c0_152, %c0_153, %c0_154] : memref<1x16x5x9x4xf32, #tpu.memory_space<vmem>>, vector<1x1x4x8x4xf32>
    %146 = vector.shape_cast %145 : vector<1x1x4x8x4xf32> to vector<4x8x4xf32>
    %147 = vector.shape_cast %146 : vector<4x8x4xf32> to vector<32x4xf32>
    %148 = arith.truncf %147 : vector<32x4xf32> to vector<32x4xbf16>
    %c7_155 = arith.constant 7 : index
    %c0_156 = arith.constant 0 : index
    %c0_157 = arith.constant 0 : index
    %149 = vector.load %arg2[%c7_155, %c0_156, %c0_157] : memref<9x4x128xbf16, #tpu.memory_space<vmem>>, vector<1x4x128xbf16>
    %150 = vector.shape_cast %149 : vector<1x4x128xbf16> to vector<4x128xbf16>
    %cst_158 = arith.constant dense<0.000000e+00> : vector<32x128xf32>
    %151 = tpu.matmul %148, %150, %cst_158 {dimension_numbers = #tpu.dot_dimension_numbers<[1], [0], [0], [1], [0, 0, 1, 1], [], []>} : vector<32x4xbf16>, vector<4x128xbf16>, vector<32x128xf32> -> vector<32x128xf32>
    %152 = arith.addf %144, %151 : vector<32x128xf32>
    %c0_159 = arith.constant 0 : index
    %c8_160 = arith.constant 8 : index
    %c0_161 = arith.constant 0 : index
    %c1_162 = arith.constant 1 : index
    %c0_163 = arith.constant 0 : index
    %153 = vector.load %arg1[%c0_159, %c8_160, %c0_161, %c1_162, %c0_163] : memref<1x16x5x9x4xf32, #tpu.memory_space<vmem>>, vector<1x1x4x8x4xf32>
    %154 = vector.shape_cast %153 : vector<1x1x4x8x4xf32> to vector<4x8x4xf32>
    %155 = vector.shape_cast %154 : vector<4x8x4xf32> to vector<32x4xf32>
    %156 = arith.truncf %155 : vector<32x4xf32> to vector<32x4xbf16>
    %c8_164 = arith.constant 8 : index
    %c0_165 = arith.constant 0 : index
    %c0_166 = arith.constant 0 : index
    %157 = vector.load %arg2[%c8_164, %c0_165, %c0_166] : memref<9x4x128xbf16, #tpu.memory_space<vmem>>, vector<1x4x128xbf16>
    %158 = vector.shape_cast %157 : vector<1x4x128xbf16> to vector<4x128xbf16>
    %cst_167 = arith.constant dense<0.000000e+00> : vector<32x128xf32>
    %159 = tpu.matmul %156, %158, %cst_167 {dimension_numbers = #tpu.dot_dimension_numbers<[1], [0], [0], [1], [0, 0, 1, 1], [], []>} : vector<32x4xbf16>, vector<4x128xbf16>, vector<32x128xf32> -> vector<32x128xf32>
    %160 = arith.addf %152, %159 : vector<32x128xf32>
    %c0_168 = arith.constant 0 : index
    %c0_169 = arith.constant 0 : index
    %161 = vector.load %arg3[%c0_168, %c0_169] : memref<1x128xf32, #tpu.memory_space<vmem>>, vector<1x128xf32>
    %162 = vector.broadcast %161 : vector<1x128xf32> to vector<32x128xf32>
    %163 = arith.addf %160, %162 : vector<32x128xf32>
    %164 = vector.shape_cast %163 : vector<32x128xf32> to vector<4x8x128xf32>
    %c0_170 = arith.constant 0 : index
    %c1_171 = arith.constant 1 : index
    %c0_172 = arith.constant 0 : index
    %c0_173 = arith.constant 0 : index
    %c0_174 = arith.constant 0 : index
    %165 = vector.load %arg6[%c0_170, %c1_171, %c0_172, %c0_173, %c0_174] : memref<1x4x4x8x128xf32, #tpu.memory_space<vmem>>, vector<1x1x4x8x128xf32>
    %166 = vector.shape_cast %165 : vector<1x1x4x8x128xf32> to vector<4x8x128xf32>
    %167 = vector.shape_cast %164 : vector<4x8x128xf32> to vector<1x1x4x8x128xf32>
    tpu.vector_store %arg6[%c0_170, %c1_171, %c0_172, %c0_173, %c0_174], %167 {strides = array<i32>} : memref<1x4x4x8x128xf32, #tpu.memory_space<vmem>>, vector<1x1x4x8x128xf32>,
    %cst_175 = arith.constant 0.000000e+00 : f32
    %168 = vector.broadcast %cst_175 : f32 to vector<4x8x128xf32>
    %169 = arith.maximumf %164, %168 : vector<4x8x128xf32>
    %170 = vector.extract_strided_slice %169 {offsets = [0, 0, 0], sizes = [4, 4, 128], strides = [1, 1, 1]} : vector<4x8x128xf32> to vector<4x4x128xf32>
    %c1_176 = arith.constant 1 : index
    %c1_177 = arith.constant 1 : index
    %c1_178 = arith.constant 1 : index
    %c0_179 = arith.constant 0 : index
    %171 = vector.load %arg8[%c1_176, %c1_177, %c1_178, %c0_179] : memref<4x5x9x128xf32, #tpu.memory_space<vmem>>, vector<1x4x4x128xf32>
    %172 = vector.shape_cast %171 : vector<1x4x4x128xf32> to vector<4x4x128xf32>
    %173 = vector.shape_cast %170 : vector<4x4x128xf32> to vector<1x4x4x128xf32>
    tpu.vector_store %arg8[%c1_176, %c1_177, %c1_178, %c0_179], %173 {strides = array<i32>} : memref<4x5x9x128xf32, #tpu.memory_space<vmem>>, vector<1x4x4x128xf32>,
    %cst_180 = arith.constant 0.000000e+00 : f32
    %174 = vector.broadcast %cst_180 : f32 to vector<32x128xf32>
    %c0_181 = arith.constant 0 : index
    %c8_182 = arith.constant 8 : index
    %c0_183 = arith.constant 0 : index
    %c0_184 = arith.constant 0 : index
    %c0_185 = arith.constant 0 : index
    %175 = vector.load %arg1[%c0_181, %c8_182, %c0_183, %c0_184, %c0_185] : memref<1x16x5x9x4xf32, #tpu.memory_space<vmem>>, vector<1x1x4x8x4xf32>
    %176 = vector.shape_cast %175 : vector<1x1x4x8x4xf32> to vector<4x8x4xf32>
    %177 = vector.shape_cast %176 : vector<4x8x4xf32> to vector<32x4xf32>
    %178 = arith.truncf %177 : vector<32x4xf32> to vector<32x4xbf16>
    %c0_186 = arith.constant 0 : index
    %c0_187 = arith.constant 0 : index
    %c0_188 = arith.constant 0 : index
    %179 = vector.load %arg2[%c0_186, %c0_187, %c0_188] : memref<9x4x128xbf16, #tpu.memory_space<vmem>>, vector<1x4x128xbf16>
    %180 = vector.shape_cast %179 : vector<1x4x128xbf16> to vector<4x128xbf16>
    %cst_189 = arith.constant dense<0.000000e+00> : vector<32x128xf32>
    %181 = tpu.matmul %178, %180, %cst_189 {dimension_numbers = #tpu.dot_dimension_numbers<[1], [0], [0], [1], [0, 0, 1, 1], [], []>} : vector<32x4xbf16>, vector<4x128xbf16>, vector<32x128xf32> -> vector<32x128xf32>
    %182 = arith.addf %174, %181 : vector<32x128xf32>
    %c0_190 = arith.constant 0 : index
    %c9_191 = arith.constant 9 : index
    %c0_192 = arith.constant 0 : index
    %c0_193 = arith.constant 0 : index
    %c0_194 = arith.constant 0 : index
    %183 = vector.load %arg1[%c0_190, %c9_191, %c0_192, %c0_193, %c0_194] : memref<1x16x5x9x4xf32, #tpu.memory_space<vmem>>, vector<1x1x4x8x4xf32>
    %184 = vector.shape_cast %183 : vector<1x1x4x8x4xf32> to vector<4x8x4xf32>
    %185 = vector.shape_cast %184 : vector<4x8x4xf32> to vector<32x4xf32>
    %186 = arith.truncf %185 : vector<32x4xf32> to vector<32x4xbf16>
    %c1_195 = arith.constant 1 : index
    %c0_196 = arith.constant 0 : index
    %c0_197 = arith.constant 0 : index
    %187 = vector.load %arg2[%c1_195, %c0_196, %c0_197] : memref<9x4x128xbf16, #tpu.memory_space<vmem>>, vector<1x4x128xbf16>
    %188 = vector.shape_cast %187 : vector<1x4x128xbf16> to vector<4x128xbf16>
    %cst_198 = arith.constant dense<0.000000e+00> : vector<32x128xf32>
    %189 = tpu.matmul %186, %188, %cst_198 {dimension_numbers = #tpu.dot_dimension_numbers<[1], [0], [0], [1], [0, 0, 1, 1], [], []>} : vector<32x4xbf16>, vector<4x128xbf16>, vector<32x128xf32> -> vector<32x128xf32>
    %190 = arith.addf %182, %189 : vector<32x128xf32>
    %c0_199 = arith.constant 0 : index
    %c10_200 = arith.constant 10 : index
    %c0_201 = arith.constant 0 : index
    %c0_202 = arith.constant 0 : index
    %c0_203 = arith.constant 0 : index
    %191 = vector.load %arg1[%c0_199, %c10_200, %c0_201, %c0_202, %c0_203] : memref<1x16x5x9x4xf32, #tpu.memory_space<vmem>>, vector<1x1x4x8x4xf32>
    %192 = vector.shape_cast %191 : vector<1x1x4x8x4xf32> to vector<4x8x4xf32>
    %193 = vector.shape_cast %192 : vector<4x8x4xf32> to vector<32x4xf32>
    %194 = arith.truncf %193 : vector<32x4xf32> to vector<32x4xbf16>
    %c2_204 = arith.constant 2 : index
    %c0_205 = arith.constant 0 : index
    %c0_206 = arith.constant 0 : index
    %195 = vector.load %arg2[%c2_204, %c0_205, %c0_206] : memref<9x4x128xbf16, #tpu.memory_space<vmem>>, vector<1x4x128xbf16>
    %196 = vector.shape_cast %195 : vector<1x4x128xbf16> to vector<4x128xbf16>
    %cst_207 = arith.constant dense<0.000000e+00> : vector<32x128xf32>
    %197 = tpu.matmul %194, %196, %cst_207 {dimension_numbers = #tpu.dot_dimension_numbers<[1], [0], [0], [1], [0, 0, 1, 1], [], []>} : vector<32x4xbf16>, vector<4x128xbf16>, vector<32x128xf32> -> vector<32x128xf32>
    %198 = arith.addf %190, %197 : vector<32x128xf32>
    %c0_208 = arith.constant 0 : index
    %c12 = arith.constant 12 : index
    %c0_209 = arith.constant 0 : index
    %c0_210 = arith.constant 0 : index
    %c0_211 = arith.constant 0 : index
    %199 = vector.load %arg1[%c0_208, %c12, %c0_209, %c0_210, %c0_211] : memref<1x16x5x9x4xf32, #tpu.memory_space<vmem>>, vector<1x1x4x8x4xf32>
    %200 = vector.shape_cast %199 : vector<1x1x4x8x4xf32> to vector<4x8x4xf32>
    %201 = vector.shape_cast %200 : vector<4x8x4xf32> to vector<32x4xf32>
    %202 = arith.truncf %201 : vector<32x4xf32> to vector<32x4xbf16>
    %c3_212 = arith.constant 3 : index
    %c0_213 = arith.constant 0 : index
    %c0_214 = arith.constant 0 : index
    %203 = vector.load %arg2[%c3_212, %c0_213, %c0_214] : memref<9x4x128xbf16, #tpu.memory_space<vmem>>, vector<1x4x128xbf16>
    %204 = vector.shape_cast %203 : vector<1x4x128xbf16> to vector<4x128xbf16>
    %cst_215 = arith.constant dense<0.000000e+00> : vector<32x128xf32>
    %205 = tpu.matmul %202, %204, %cst_215 {dimension_numbers = #tpu.dot_dimension_numbers<[1], [0], [0], [1], [0, 0, 1, 1], [], []>} : vector<32x4xbf16>, vector<4x128xbf16>, vector<32x128xf32> -> vector<32x128xf32>
    %206 = arith.addf %198, %205 : vector<32x128xf32>
    %c0_216 = arith.constant 0 : index
    %c13 = arith.constant 13 : index
    %c0_217 = arith.constant 0 : index
    %c0_218 = arith.constant 0 : index
    %c0_219 = arith.constant 0 : index
    %207 = vector.load %arg1[%c0_216, %c13, %c0_217, %c0_218, %c0_219] : memref<1x16x5x9x4xf32, #tpu.memory_space<vmem>>, vector<1x1x4x8x4xf32>
    %208 = vector.shape_cast %207 : vector<1x1x4x8x4xf32> to vector<4x8x4xf32>
    %209 = vector.shape_cast %208 : vector<4x8x4xf32> to vector<32x4xf32>
    %210 = arith.truncf %209 : vector<32x4xf32> to vector<32x4xbf16>
    %c4_220 = arith.constant 4 : index
    %c0_221 = arith.constant 0 : index
    %c0_222 = arith.constant 0 : index
    %211 = vector.load %arg2[%c4_220, %c0_221, %c0_222] : memref<9x4x128xbf16, #tpu.memory_space<vmem>>, vector<1x4x128xbf16>
    %212 = vector.shape_cast %211 : vector<1x4x128xbf16> to vector<4x128xbf16>
    %cst_223 = arith.constant dense<0.000000e+00> : vector<32x128xf32>
    %213 = tpu.matmul %210, %212, %cst_223 {dimension_numbers = #tpu.dot_dimension_numbers<[1], [0], [0], [1], [0, 0, 1, 1], [], []>} : vector<32x4xbf16>, vector<4x128xbf16>, vector<32x128xf32> -> vector<32x128xf32>
    %214 = arith.addf %206, %213 : vector<32x128xf32>
    %c0_224 = arith.constant 0 : index
    %c14 = arith.constant 14 : index
    %c0_225 = arith.constant 0 : index
    %c0_226 = arith.constant 0 : index
    %c0_227 = arith.constant 0 : index
    %215 = vector.load %arg1[%c0_224, %c14, %c0_225, %c0_226, %c0_227] : memref<1x16x5x9x4xf32, #tpu.memory_space<vmem>>, vector<1x1x4x8x4xf32>
    %216 = vector.shape_cast %215 : vector<1x1x4x8x4xf32> to vector<4x8x4xf32>
    %217 = vector.shape_cast %216 : vector<4x8x4xf32> to vector<32x4xf32>
    %218 = arith.truncf %217 : vector<32x4xf32> to vector<32x4xbf16>
    %c5_228 = arith.constant 5 : index
    %c0_229 = arith.constant 0 : index
    %c0_230 = arith.constant 0 : index
    %219 = vector.load %arg2[%c5_228, %c0_229, %c0_230] : memref<9x4x128xbf16, #tpu.memory_space<vmem>>, vector<1x4x128xbf16>
    %220 = vector.shape_cast %219 : vector<1x4x128xbf16> to vector<4x128xbf16>
    %cst_231 = arith.constant dense<0.000000e+00> : vector<32x128xf32>
    %221 = tpu.matmul %218, %220, %cst_231 {dimension_numbers = #tpu.dot_dimension_numbers<[1], [0], [0], [1], [0, 0, 1, 1], [], []>} : vector<32x4xbf16>, vector<4x128xbf16>, vector<32x128xf32> -> vector<32x128xf32>
    %222 = arith.addf %214, %221 : vector<32x128xf32>
    %c0_232 = arith.constant 0 : index
    %c0_233 = arith.constant 0 : index
    %c1_234 = arith.constant 1 : index
    %c0_235 = arith.constant 0 : index
    %c0_236 = arith.constant 0 : index
    %223 = vector.load %arg1[%c0_232, %c0_233, %c1_234, %c0_235, %c0_236] : memref<1x16x5x9x4xf32, #tpu.memory_space<vmem>>, vector<1x1x4x8x4xf32>
    %224 = vector.shape_cast %223 : vector<1x1x4x8x4xf32> to vector<4x8x4xf32>
    %225 = vector.shape_cast %224 : vector<4x8x4xf32> to vector<32x4xf32>
    %226 = arith.truncf %225 : vector<32x4xf32> to vector<32x4xbf16>
    %c6_237 = arith.constant 6 : index
    %c0_238 = arith.constant 0 : index
    %c0_239 = arith.constant 0 : index
    %227 = vector.load %arg2[%c6_237, %c0_238, %c0_239] : memref<9x4x128xbf16, #tpu.memory_space<vmem>>, vector<1x4x128xbf16>
    %228 = vector.shape_cast %227 : vector<1x4x128xbf16> to vector<4x128xbf16>
    %cst_240 = arith.constant dense<0.000000e+00> : vector<32x128xf32>
    %229 = tpu.matmul %226, %228, %cst_240 {dimension_numbers = #tpu.dot_dimension_numbers<[1], [0], [0], [1], [0, 0, 1, 1], [], []>} : vector<32x4xbf16>, vector<4x128xbf16>, vector<32x128xf32> -> vector<32x128xf32>
    %230 = arith.addf %222, %229 : vector<32x128xf32>
    %c0_241 = arith.constant 0 : index
    %c1_242 = arith.constant 1 : index
    %c1_243 = arith.constant 1 : index
    %c0_244 = arith.constant 0 : index
    %c0_245 = arith.constant 0 : index
    %231 = vector.load %arg1[%c0_241, %c1_242, %c1_243, %c0_244, %c0_245] : memref<1x16x5x9x4xf32, #tpu.memory_space<vmem>>, vector<1x1x4x8x4xf32>
    %232 = vector.shape_cast %231 : vector<1x1x4x8x4xf32> to vector<4x8x4xf32>
    %233 = vector.shape_cast %232 : vector<4x8x4xf32> to vector<32x4xf32>
    %234 = arith.truncf %233 : vector<32x4xf32> to vector<32x4xbf16>
    %c7_246 = arith.constant 7 : index
    %c0_247 = arith.constant 0 : index
    %c0_248 = arith.constant 0 : index
    %235 = vector.load %arg2[%c7_246, %c0_247, %c0_248] : memref<9x4x128xbf16, #tpu.memory_space<vmem>>, vector<1x4x128xbf16>
    %236 = vector.shape_cast %235 : vector<1x4x128xbf16> to vector<4x128xbf16>
    %cst_249 = arith.constant dense<0.000000e+00> : vector<32x128xf32>
    %237 = tpu.matmul %234, %236, %cst_249 {dimension_numbers = #tpu.dot_dimension_numbers<[1], [0], [0], [1], [0, 0, 1, 1], [], []>} : vector<32x4xbf16>, vector<4x128xbf16>, vector<32x128xf32> -> vector<32x128xf32>
    %238 = arith.addf %230, %237 : vector<32x128xf32>
    %c0_250 = arith.constant 0 : index
    %c2_251 = arith.constant 2 : index
    %c1_252 = arith.constant 1 : index
    %c0_253 = arith.constant 0 : index
    %c0_254 = arith.constant 0 : index
    %239 = vector.load %arg1[%c0_250, %c2_251, %c1_252, %c0_253, %c0_254] : memref<1x16x5x9x4xf32, #tpu.memory_space<vmem>>, vector<1x1x4x8x4xf32>
    %240 = vector.shape_cast %239 : vector<1x1x4x8x4xf32> to vector<4x8x4xf32>
    %241 = vector.shape_cast %240 : vector<4x8x4xf32> to vector<32x4xf32>
    %242 = arith.truncf %241 : vector<32x4xf32> to vector<32x4xbf16>
    %c8_255 = arith.constant 8 : index
    %c0_256 = arith.constant 0 : index
    %c0_257 = arith.constant 0 : index
    %243 = vector.load %arg2[%c8_255, %c0_256, %c0_257] : memref<9x4x128xbf16, #tpu.memory_space<vmem>>, vector<1x4x128xbf16>
    %244 = vector.shape_cast %243 : vector<1x4x128xbf16> to vector<4x128xbf16>
    %cst_258 = arith.constant dense<0.000000e+00> : vector<32x128xf32>
    %245 = tpu.matmul %242, %244, %cst_258 {dimension_numbers = #tpu.dot_dimension_numbers<[1], [0], [0], [1], [0, 0, 1, 1], [], []>} : vector<32x4xbf16>, vector<4x128xbf16>, vector<32x128xf32> -> vector<32x128xf32>
    %246 = arith.addf %238, %245 : vector<32x128xf32>
    %c0_259 = arith.constant 0 : index
    %c0_260 = arith.constant 0 : index
    %247 = vector.load %arg3[%c0_259, %c0_260] : memref<1x128xf32, #tpu.memory_space<vmem>>, vector<1x128xf32>
    %248 = vector.broadcast %247 : vector<1x128xf32> to vector<32x128xf32>
    %249 = arith.addf %246, %248 : vector<32x128xf32>
    %250 = vector.shape_cast %249 : vector<32x128xf32> to vector<4x8x128xf32>
    %c0_261 = arith.constant 0 : index
    %c2_262 = arith.constant 2 : index
    %c0_263 = arith.constant 0 : index
    %c0_264 = arith.constant 0 : index
    %c0_265 = arith.constant 0 : index
    %251 = vector.load %arg6[%c0_261, %c2_262, %c0_263, %c0_264, %c0_265] : memref<1x4x4x8x128xf32, #tpu.memory_space<vmem>>, vector<1x1x4x8x128xf32>
    %252 = vector.shape_cast %251 : vector<1x1x4x8x128xf32> to vector<4x8x128xf32>
    %253 = vector.shape_cast %250 : vector<4x8x128xf32> to vector<1x1x4x8x128xf32>
    tpu.vector_store %arg6[%c0_261, %c2_262, %c0_263, %c0_264, %c0_265], %253 {strides = array<i32>} : memref<1x4x4x8x128xf32, #tpu.memory_space<vmem>>, vector<1x1x4x8x128xf32>,
    %cst_266 = arith.constant 0.000000e+00 : f32
    %254 = vector.broadcast %cst_266 : f32 to vector<4x8x128xf32>
    %255 = arith.maximumf %250, %254 : vector<4x8x128xf32>
    %256 = vector.extract_strided_slice %255 {offsets = [0, 0, 0], sizes = [4, 4, 128], strides = [1, 1, 1]} : vector<4x8x128xf32> to vector<4x4x128xf32>
    %c2_267 = arith.constant 2 : index
    %c1_268 = arith.constant 1 : index
    %c1_269 = arith.constant 1 : index
    %c0_270 = arith.constant 0 : index
    %257 = vector.load %arg8[%c2_267, %c1_268, %c1_269, %c0_270] : memref<4x5x9x128xf32, #tpu.memory_space<vmem>>, vector<1x4x4x128xf32>
    %258 = vector.shape_cast %257 : vector<1x4x4x128xf32> to vector<4x4x128xf32>
    %259 = vector.shape_cast %256 : vector<4x4x128xf32> to vector<1x4x4x128xf32>
    tpu.vector_store %arg8[%c2_267, %c1_268, %c1_269, %c0_270], %259 {strides = array<i32>} : memref<4x5x9x128xf32, #tpu.memory_space<vmem>>, vector<1x4x4x128xf32>,
    %cst_271 = arith.constant 0.000000e+00 : f32
    %260 = vector.broadcast %cst_271 : f32 to vector<32x128xf32>
    %c0_272 = arith.constant 0 : index
    %c10_273 = arith.constant 10 : index
    %c0_274 = arith.constant 0 : index
    %c0_275 = arith.constant 0 : index
    %c0_276 = arith.constant 0 : index
    %261 = vector.load %arg1[%c0_272, %c10_273, %c0_274, %c0_275, %c0_276] : memref<1x16x5x9x4xf32, #tpu.memory_space<vmem>>, vector<1x1x4x8x4xf32>
    %262 = vector.shape_cast %261 : vector<1x1x4x8x4xf32> to vector<4x8x4xf32>
    %263 = vector.shape_cast %262 : vector<4x8x4xf32> to vector<32x4xf32>
    %264 = arith.truncf %263 : vector<32x4xf32> to vector<32x4xbf16>
    %c0_277 = arith.constant 0 : index
    %c0_278 = arith.constant 0 : index
    %c0_279 = arith.constant 0 : index
    %265 = vector.load %arg2[%c0_277, %c0_278, %c0_279] : memref<9x4x128xbf16, #tpu.memory_space<vmem>>, vector<1x4x128xbf16>
    %266 = vector.shape_cast %265 : vector<1x4x128xbf16> to vector<4x128xbf16>
    %cst_280 = arith.constant dense<0.000000e+00> : vector<32x128xf32>
    %267 = tpu.matmul %264, %266, %cst_280 {dimension_numbers = #tpu.dot_dimension_numbers<[1], [0], [0], [1], [0, 0, 1, 1], [], []>} : vector<32x4xbf16>, vector<4x128xbf16>, vector<32x128xf32> -> vector<32x128xf32>
    %268 = arith.addf %260, %267 : vector<32x128xf32>
    %c0_281 = arith.constant 0 : index
    %c11_282 = arith.constant 11 : index
    %c0_283 = arith.constant 0 : index
    %c0_284 = arith.constant 0 : index
    %c0_285 = arith.constant 0 : index
    %269 = vector.load %arg1[%c0_281, %c11_282, %c0_283, %c0_284, %c0_285] : memref<1x16x5x9x4xf32, #tpu.memory_space<vmem>>, vector<1x1x4x8x4xf32>
    %270 = vector.shape_cast %269 : vector<1x1x4x8x4xf32> to vector<4x8x4xf32>
    %271 = vector.shape_cast %270 : vector<4x8x4xf32> to vector<32x4xf32>
    %272 = arith.truncf %271 : vector<32x4xf32> to vector<32x4xbf16>
    %c1_286 = arith.constant 1 : index
    %c0_287 = arith.constant 0 : index
    %c0_288 = arith.constant 0 : index
    %273 = vector.load %arg2[%c1_286, %c0_287, %c0_288] : memref<9x4x128xbf16, #tpu.memory_space<vmem>>, vector<1x4x128xbf16>
    %274 = vector.shape_cast %273 : vector<1x4x128xbf16> to vector<4x128xbf16>
    %cst_289 = arith.constant dense<0.000000e+00> : vector<32x128xf32>
    %275 = tpu.matmul %272, %274, %cst_289 {dimension_numbers = #tpu.dot_dimension_numbers<[1], [0], [0], [1], [0, 0, 1, 1], [], []>} : vector<32x4xbf16>, vector<4x128xbf16>, vector<32x128xf32> -> vector<32x128xf32>
    %276 = arith.addf %268, %275 : vector<32x128xf32>
    %c0_290 = arith.constant 0 : index
    %c8_291 = arith.constant 8 : index
    %c0_292 = arith.constant 0 : index
    %c1_293 = arith.constant 1 : index
    %c0_294 = arith.constant 0 : index
    %277 = vector.load %arg1[%c0_290, %c8_291, %c0_292, %c1_293, %c0_294] : memref<1x16x5x9x4xf32, #tpu.memory_space<vmem>>, vector<1x1x4x8x4xf32>
    %278 = vector.shape_cast %277 : vector<1x1x4x8x4xf32> to vector<4x8x4xf32>
    %279 = vector.shape_cast %278 : vector<4x8x4xf32> to vector<32x4xf32>
    %280 = arith.truncf %279 : vector<32x4xf32> to vector<32x4xbf16>
    %c2_295 = arith.constant 2 : index
    %c0_296 = arith.constant 0 : index
    %c0_297 = arith.constant 0 : index
    %281 = vector.load %arg2[%c2_295, %c0_296, %c0_297] : memref<9x4x128xbf16, #tpu.memory_space<vmem>>, vector<1x4x128xbf16>
    %282 = vector.shape_cast %281 : vector<1x4x128xbf16> to vector<4x128xbf16>
    %cst_298 = arith.constant dense<0.000000e+00> : vector<32x128xf32>
    %283 = tpu.matmul %280, %282, %cst_298 {dimension_numbers = #tpu.dot_dimension_numbers<[1], [0], [0], [1], [0, 0, 1, 1], [], []>} : vector<32x4xbf16>, vector<4x128xbf16>, vector<32x128xf32> -> vector<32x128xf32>
    %284 = arith.addf %276, %283 : vector<32x128xf32>
    %c0_299 = arith.constant 0 : index
    %c14_300 = arith.constant 14 : index
    %c0_301 = arith.constant 0 : index
    %c0_302 = arith.constant 0 : index
    %c0_303 = arith.constant 0 : index
    %285 = vector.load %arg1[%c0_299, %c14_300, %c0_301, %c0_302, %c0_303] : memref<1x16x5x9x4xf32, #tpu.memory_space<vmem>>, vector<1x1x4x8x4xf32>
    %286 = vector.shape_cast %285 : vector<1x1x4x8x4xf32> to vector<4x8x4xf32>
    %287 = vector.shape_cast %286 : vector<4x8x4xf32> to vector<32x4xf32>
    %288 = arith.truncf %287 : vector<32x4xf32> to vector<32x4xbf16>
    %c3_304 = arith.constant 3 : index
    %c0_305 = arith.constant 0 : index
    %c0_306 = arith.constant 0 : index
    %289 = vector.load %arg2[%c3_304, %c0_305, %c0_306] : memref<9x4x128xbf16, #tpu.memory_space<vmem>>, vector<1x4x128xbf16>
    %290 = vector.shape_cast %289 : vector<1x4x128xbf16> to vector<4x128xbf16>
    %cst_307 = arith.constant dense<0.000000e+00> : vector<32x128xf32>
    %291 = tpu.matmul %288, %290, %cst_307 {dimension_numbers = #tpu.dot_dimension_numbers<[1], [0], [0], [1], [0, 0, 1, 1], [], []>} : vector<32x4xbf16>, vector<4x128xbf16>, vector<32x128xf32> -> vector<32x128xf32>
    %292 = arith.addf %284, %291 : vector<32x128xf32>
    %c0_308 = arith.constant 0 : index
    %c15 = arith.constant 15 : index
    %c0_309 = arith.constant 0 : index
    %c0_310 = arith.constant 0 : index
    %c0_311 = arith.constant 0 : index
    %293 = vector.load %arg1[%c0_308, %c15, %c0_309, %c0_310, %c0_311] : memref<1x16x5x9x4xf32, #tpu.memory_space<vmem>>, vector<1x1x4x8x4xf32>
    %294 = vector.shape_cast %293 : vector<1x1x4x8x4xf32> to vector<4x8x4xf32>
    %295 = vector.shape_cast %294 : vector<4x8x4xf32> to vector<32x4xf32>
    %296 = arith.truncf %295 : vector<32x4xf32> to vector<32x4xbf16>
    %c4_312 = arith.constant 4 : index
    %c0_313 = arith.constant 0 : index
    %c0_314 = arith.constant 0 : index
    %297 = vector.load %arg2[%c4_312, %c0_313, %c0_314] : memref<9x4x128xbf16, #tpu.memory_space<vmem>>, vector<1x4x128xbf16>
    %298 = vector.shape_cast %297 : vector<1x4x128xbf16> to vector<4x128xbf16>
    %cst_315 = arith.constant dense<0.000000e+00> : vector<32x128xf32>
    %299 = tpu.matmul %296, %298, %cst_315 {dimension_numbers = #tpu.dot_dimension_numbers<[1], [0], [0], [1], [0, 0, 1, 1], [], []>} : vector<32x4xbf16>, vector<4x128xbf16>, vector<32x128xf32> -> vector<32x128xf32>
    %300 = arith.addf %292, %299 : vector<32x128xf32>
    %c0_316 = arith.constant 0 : index
    %c12_317 = arith.constant 12 : index
    %c0_318 = arith.constant 0 : index
    %c1_319 = arith.constant 1 : index
    %c0_320 = arith.constant 0 : index
    %301 = vector.load %arg1[%c0_316, %c12_317, %c0_318, %c1_319, %c0_320] : memref<1x16x5x9x4xf32, #tpu.memory_space<vmem>>, vector<1x1x4x8x4xf32>
    %302 = vector.shape_cast %301 : vector<1x1x4x8x4xf32> to vector<4x8x4xf32>
    %303 = vector.shape_cast %302 : vector<4x8x4xf32> to vector<32x4xf32>
    %304 = arith.truncf %303 : vector<32x4xf32> to vector<32x4xbf16>
    %c5_321 = arith.constant 5 : index
    %c0_322 = arith.constant 0 : index
    %c0_323 = arith.constant 0 : index
    %305 = vector.load %arg2[%c5_321, %c0_322, %c0_323] : memref<9x4x128xbf16, #tpu.memory_space<vmem>>, vector<1x4x128xbf16>
    %306 = vector.shape_cast %305 : vector<1x4x128xbf16> to vector<4x128xbf16>
    %cst_324 = arith.constant dense<0.000000e+00> : vector<32x128xf32>
    %307 = tpu.matmul %304, %306, %cst_324 {dimension_numbers = #tpu.dot_dimension_numbers<[1], [0], [0], [1], [0, 0, 1, 1], [], []>} : vector<32x4xbf16>, vector<4x128xbf16>, vector<32x128xf32> -> vector<32x128xf32>
    %308 = arith.addf %300, %307 : vector<32x128xf32>
    %c0_325 = arith.constant 0 : index
    %c2_326 = arith.constant 2 : index
    %c1_327 = arith.constant 1 : index
    %c0_328 = arith.constant 0 : index
    %c0_329 = arith.constant 0 : index
    %309 = vector.load %arg1[%c0_325, %c2_326, %c1_327, %c0_328, %c0_329] : memref<1x16x5x9x4xf32, #tpu.memory_space<vmem>>, vector<1x1x4x8x4xf32>
    %310 = vector.shape_cast %309 : vector<1x1x4x8x4xf32> to vector<4x8x4xf32>
    %311 = vector.shape_cast %310 : vector<4x8x4xf32> to vector<32x4xf32>
    %312 = arith.truncf %311 : vector<32x4xf32> to vector<32x4xbf16>
    %c6_330 = arith.constant 6 : index
    %c0_331 = arith.constant 0 : index
    %c0_332 = arith.constant 0 : index
    %313 = vector.load %arg2[%c6_330, %c0_331, %c0_332] : memref<9x4x128xbf16, #tpu.memory_space<vmem>>, vector<1x4x128xbf16>
    %314 = vector.shape_cast %313 : vector<1x4x128xbf16> to vector<4x128xbf16>
    %cst_333 = arith.constant dense<0.000000e+00> : vector<32x128xf32>
    %315 = tpu.matmul %312, %314, %cst_333 {dimension_numbers = #tpu.dot_dimension_numbers<[1], [0], [0], [1], [0, 0, 1, 1], [], []>} : vector<32x4xbf16>, vector<4x128xbf16>, vector<32x128xf32> -> vector<32x128xf32>
    %316 = arith.addf %308, %315 : vector<32x128xf32>
    %c0_334 = arith.constant 0 : index
    %c3_335 = arith.constant 3 : index
    %c1_336 = arith.constant 1 : index
    %c0_337 = arith.constant 0 : index
    %c0_338 = arith.constant 0 : index
    %317 = vector.load %arg1[%c0_334, %c3_335, %c1_336, %c0_337, %c0_338] : memref<1x16x5x9x4xf32, #tpu.memory_space<vmem>>, vector<1x1x4x8x4xf32>
    %318 = vector.shape_cast %317 : vector<1x1x4x8x4xf32> to vector<4x8x4xf32>
    %319 = vector.shape_cast %318 : vector<4x8x4xf32> to vector<32x4xf32>
    %320 = arith.truncf %319 : vector<32x4xf32> to vector<32x4xbf16>
    %c7_339 = arith.constant 7 : index
    %c0_340 = arith.constant 0 : index
    %c0_341 = arith.constant 0 : index
    %321 = vector.load %arg2[%c7_339, %c0_340, %c0_341] : memref<9x4x128xbf16, #tpu.memory_space<vmem>>, vector<1x4x128xbf16>
    %322 = vector.shape_cast %321 : vector<1x4x128xbf16> to vector<4x128xbf16>
    %cst_342 = arith.constant dense<0.000000e+00> : vector<32x128xf32>
    %323 = tpu.matmul %320, %322, %cst_342 {dimension_numbers = #tpu.dot_dimension_numbers<[1], [0], [0], [1], [0, 0, 1, 1], [], []>} : vector<32x4xbf16>, vector<4x128xbf16>, vector<32x128xf32> -> vector<32x128xf32>
    %324 = arith.addf %316, %323 : vector<32x128xf32>
    %c0_343 = arith.constant 0 : index
    %c0_344 = arith.constant 0 : index
    %c1_345 = arith.constant 1 : index
    %c1_346 = arith.constant 1 : index
    %c0_347 = arith.constant 0 : index
    %325 = vector.load %arg1[%c0_343, %c0_344, %c1_345, %c1_346, %c0_347] : memref<1x16x5x9x4xf32, #tpu.memory_space<vmem>>, vector<1x1x4x8x4xf32>
    %326 = vector.shape_cast %325 : vector<1x1x4x8x4xf32> to vector<4x8x4xf32>
    %327 = vector.shape_cast %326 : vector<4x8x4xf32> to vector<32x4xf32>
    %328 = arith.truncf %327 : vector<32x4xf32> to vector<32x4xbf16>
    %c8_348 = arith.constant 8 : index
    %c0_349 = arith.constant 0 : index
    %c0_350 = arith.constant 0 : index
    %329 = vector.load %arg2[%c8_348, %c0_349, %c0_350] : memref<9x4x128xbf16, #tpu.memory_space<vmem>>, vector<1x4x128xbf16>
    %330 = vector.shape_cast %329 : vector<1x4x128xbf16> to vector<4x128xbf16>
    %cst_351 = arith.constant dense<0.000000e+00> : vector<32x128xf32>
    %331 = tpu.matmul %328, %330, %cst_351 {dimension_numbers = #tpu.dot_dimension_numbers<[1], [0], [0], [1], [0, 0, 1, 1], [], []>} : vector<32x4xbf16>, vector<4x128xbf16>, vector<32x128xf32> -> vector<32x128xf32>
    %332 = arith.addf %324, %331 : vector<32x128xf32>
    %c0_352 = arith.constant 0 : index
    %c0_353 = arith.constant 0 : index
    %333 = vector.load %arg3[%c0_352, %c0_353] : memref<1x128xf32, #tpu.memory_space<vmem>>, vector<1x128xf32>
    %334 = vector.broadcast %333 : vector<1x128xf32> to vector<32x128xf32>
    %335 = arith.addf %332, %334 : vector<32x128xf32>
    %336 = vector.shape_cast %335 : vector<32x128xf32> to vector<4x8x128xf32>
    %c0_354 = arith.constant 0 : index
    %c3_355 = arith.constant 3 : index
    %c0_356 = arith.constant 0 : index
    %c0_357 = arith.constant 0 : index
    %c0_358 = arith.constant 0 : index
    %337 = vector.load %arg6[%c0_354, %c3_355, %c0_356, %c0_357, %c0_358] : memref<1x4x4x8x128xf32, #tpu.memory_space<vmem>>, vector<1x1x4x8x128xf32>
    %338 = vector.shape_cast %337 : vector<1x1x4x8x128xf32> to vector<4x8x128xf32>
    %339 = vector.shape_cast %336 : vector<4x8x128xf32> to vector<1x1x4x8x128xf32>
    tpu.vector_store %arg6[%c0_354, %c3_355, %c0_356, %c0_357, %c0_358], %339 {strides = array<i32>} : memref<1x4x4x8x128xf32, #tpu.memory_space<vmem>>, vector<1x1x4x8x128xf32>,
    %cst_359 = arith.constant 0.000000e+00 : f32
    %340 = vector.broadcast %cst_359 : f32 to vector<4x8x128xf32>
    %341 = arith.maximumf %336, %340 : vector<4x8x128xf32>
    %342 = vector.extract_strided_slice %341 {offsets = [0, 0, 0], sizes = [4, 4, 128], strides = [1, 1, 1]} : vector<4x8x128xf32> to vector<4x4x128xf32>
    %c3_360 = arith.constant 3 : index
    %c1_361 = arith.constant 1 : index
    %c1_362 = arith.constant 1 : index
    %c0_363 = arith.constant 0 : index
    %343 = vector.load %arg8[%c3_360, %c1_361, %c1_362, %c0_363] : memref<4x5x9x128xf32, #tpu.memory_space<vmem>>, vector<1x4x4x128xf32>
    %344 = vector.shape_cast %343 : vector<1x4x4x128xf32> to vector<4x4x128xf32>
    %345 = vector.shape_cast %342 : vector<4x4x128xf32> to vector<1x4x4x128xf32>
    tpu.vector_store %arg8[%c3_360, %c1_361, %c1_362, %c0_363], %345 {strides = array<i32>} : memref<4x5x9x128xf32, #tpu.memory_space<vmem>>, vector<1x4x4x128xf32>,
    %cst_364 = arith.constant 0.000000e+00 : f32
    %346 = vector.broadcast %cst_364 : f32 to vector<32x128xf32>
    %c3_365 = arith.constant 3 : index
    %c0_366 = arith.constant 0 : index
    %c0_367 = arith.constant 0 : index
    %c0_368 = arith.constant 0 : index
    %347 = vector.load %arg8[%c3_365, %c0_366, %c0_367, %c0_368] : memref<4x5x9x128xf32, #tpu.memory_space<vmem>>, vector<1x4x8x128xf32>
    %348 = vector.shape_cast %347 : vector<1x4x8x128xf32> to vector<4x8x128xf32>
    %349 = vector.shape_cast %348 : vector<4x8x128xf32> to vector<32x128xf32>
    %350 = arith.truncf %349 : vector<32x128xf32> to vector<32x128xbf16>
    %c0_369 = arith.constant 0 : index
    %c0_370 = arith.constant 0 : index
    %c0_371 = arith.constant 0 : index
    %351 = vector.load %arg4[%c0_369, %c0_370, %c0_371] : memref<9x128x128xbf16, #tpu.memory_space<vmem>>, vector<1x128x128xbf16>
    %352 = vector.shape_cast %351 : vector<1x128x128xbf16> to vector<128x128xbf16>
    %cst_372 = arith.constant dense<0.000000e+00> : vector<32x128xf32>
    %353 = tpu.matmul %350, %352, %cst_372 {dimension_numbers = #tpu.dot_dimension_numbers<[1], [0], [0], [1], [0, 0, 1, 1], [], []>} : vector<32x128xbf16>, vector<128x128xbf16>, vector<32x128xf32> -> vector<32x128xf32>
    %354 = arith.addf %346, %353 : vector<32x128xf32>
    %c2_373 = arith.constant 2 : index
    %c0_374 = arith.constant 0 : index
    %c1_375 = arith.constant 1 : index
    %c0_376 = arith.constant 0 : index
    %355 = vector.load %arg8[%c2_373, %c0_374, %c1_375, %c0_376] : memref<4x5x9x128xf32, #tpu.memory_space<vmem>>, vector<1x4x8x128xf32>
    %356 = vector.shape_cast %355 : vector<1x4x8x128xf32> to vector<4x8x128xf32>
    %357 = vector.shape_cast %356 : vector<4x8x128xf32> to vector<32x128xf32>
    %358 = arith.truncf %357 : vector<32x128xf32> to vector<32x128xbf16>
    %c1_377 = arith.constant 1 : index
    %c0_378 = arith.constant 0 : index
    %c0_379 = arith.constant 0 : index
    %359 = vector.load %arg4[%c1_377, %c0_378, %c0_379] : memref<9x128x128xbf16, #tpu.memory_space<vmem>>, vector<1x128x128xbf16>
    %360 = vector.shape_cast %359 : vector<1x128x128xbf16> to vector<128x128xbf16>
    %cst_380 = arith.constant dense<0.000000e+00> : vector<32x128xf32>
    %361 = tpu.matmul %358, %360, %cst_380 {dimension_numbers = #tpu.dot_dimension_numbers<[1], [0], [0], [1], [0, 0, 1, 1], [], []>} : vector<32x128xbf16>, vector<128x128xbf16>, vector<32x128xf32> -> vector<32x128xf32>
    %362 = arith.addf %354, %361 : vector<32x128xf32>
    %c3_381 = arith.constant 3 : index
    %c0_382 = arith.constant 0 : index
    %c1_383 = arith.constant 1 : index
    %c0_384 = arith.constant 0 : index
    %363 = vector.load %arg8[%c3_381, %c0_382, %c1_383, %c0_384] : memref<4x5x9x128xf32, #tpu.memory_space<vmem>>, vector<1x4x8x128xf32>
    %364 = vector.shape_cast %363 : vector<1x4x8x128xf32> to vector<4x8x128xf32>
    %365 = vector.shape_cast %364 : vector<4x8x128xf32> to vector<32x128xf32>
    %366 = arith.truncf %365 : vector<32x128xf32> to vector<32x128xbf16>
    %c2_385 = arith.constant 2 : index
    %c0_386 = arith.constant 0 : index
    %c0_387 = arith.constant 0 : index
    %367 = vector.load %arg4[%c2_385, %c0_386, %c0_387] : memref<9x128x128xbf16, #tpu.memory_space<vmem>>, vector<1x128x128xbf16>
    %368 = vector.shape_cast %367 : vector<1x128x128xbf16> to vector<128x128xbf16>
    %cst_388 = arith.constant dense<0.000000e+00> : vector<32x128xf32>
    %369 = tpu.matmul %366, %368, %cst_388 {dimension_numbers = #tpu.dot_dimension_numbers<[1], [0], [0], [1], [0, 0, 1, 1], [], []>} : vector<32x128xbf16>, vector<128x128xbf16>, vector<32x128xf32> -> vector<32x128xf32>
    %370 = arith.addf %362, %369 : vector<32x128xf32>
    %c1_389 = arith.constant 1 : index
    %c1_390 = arith.constant 1 : index
    %c0_391 = arith.constant 0 : index
    %c0_392 = arith.constant 0 : index
    %371 = vector.load %arg8[%c1_389, %c1_390, %c0_391, %c0_392] : memref<4x5x9x128xf32, #tpu.memory_space<vmem>>, vector<1x4x8x128xf32>
    %372 = vector.shape_cast %371 : vector<1x4x8x128xf32> to vector<4x8x128xf32>
    %373 = vector.shape_cast %372 : vector<4x8x128xf32> to vector<32x128xf32>
    %374 = arith.truncf %373 : vector<32x128xf32> to vector<32x128xbf16>
    %c3_393 = arith.constant 3 : index
    %c0_394 = arith.constant 0 : index
    %c0_395 = arith.constant 0 : index
    %375 = vector.load %arg4[%c3_393, %c0_394, %c0_395] : memref<9x128x128xbf16, #tpu.memory_space<vmem>>, vector<1x128x128xbf16>
    %376 = vector.shape_cast %375 : vector<1x128x128xbf16> to vector<128x128xbf16>
    %cst_396 = arith.constant dense<0.000000e+00> : vector<32x128xf32>
    %377 = tpu.matmul %374, %376, %cst_396 {dimension_numbers = #tpu.dot_dimension_numbers<[1], [0], [0], [1], [0, 0, 1, 1], [], []>} : vector<32x128xbf16>, vector<128x128xbf16>, vector<32x128xf32> -> vector<32x128xf32>
    %378 = arith.addf %370, %377 : vector<32x128xf32>
    %c0_397 = arith.constant 0 : index
    %c1_398 = arith.constant 1 : index
    %c1_399 = arith.constant 1 : index
    %c0_400 = arith.constant 0 : index
    %379 = vector.load %arg8[%c0_397, %c1_398, %c1_399, %c0_400] : memref<4x5x9x128xf32, #tpu.memory_space<vmem>>, vector<1x4x8x128xf32>
    %380 = vector.shape_cast %379 : vector<1x4x8x128xf32> to vector<4x8x128xf32>
    %381 = vector.shape_cast %380 : vector<4x8x128xf32> to vector<32x128xf32>
    %382 = arith.truncf %381 : vector<32x128xf32> to vector<32x128xbf16>
    %c4_401 = arith.constant 4 : index
    %c0_402 = arith.constant 0 : index
    %c0_403 = arith.constant 0 : index
    %383 = vector.load %arg4[%c4_401, %c0_402, %c0_403] : memref<9x128x128xbf16, #tpu.memory_space<vmem>>, vector<1x128x128xbf16>
    %384 = vector.shape_cast %383 : vector<1x128x128xbf16> to vector<128x128xbf16>
    %cst_404 = arith.constant dense<0.000000e+00> : vector<32x128xf32>
    %385 = tpu.matmul %382, %384, %cst_404 {dimension_numbers = #tpu.dot_dimension_numbers<[1], [0], [0], [1], [0, 0, 1, 1], [], []>} : vector<32x128xbf16>, vector<128x128xbf16>, vector<32x128xf32> -> vector<32x128xf32>
    %386 = arith.addf %378, %385 : vector<32x128xf32>
    %c1_405 = arith.constant 1 : index
    %c1_406 = arith.constant 1 : index
    %c1_407 = arith.constant 1 : index
    %c0_408 = arith.constant 0 : index
    %387 = vector.load %arg8[%c1_405, %c1_406, %c1_407, %c0_408] : memref<4x5x9x128xf32, #tpu.memory_space<vmem>>, vector<1x4x8x128xf32>
    %388 = vector.shape_cast %387 : vector<1x4x8x128xf32> to vector<4x8x128xf32>
    %389 = vector.shape_cast %388 : vector<4x8x128xf32> to vector<32x128xf32>
    %390 = arith.truncf %389 : vector<32x128xf32> to vector<32x128xbf16>
    %c5_409 = arith.constant 5 : index
    %c0_410 = arith.constant 0 : index
    %c0_411 = arith.constant 0 : index
    %391 = vector.load %arg4[%c5_409, %c0_410, %c0_411] : memref<9x128x128xbf16, #tpu.memory_space<vmem>>, vector<1x128x128xbf16>
    %392 = vector.shape_cast %391 : vector<1x128x128xbf16> to vector<128x128xbf16>
    %cst_412 = arith.constant dense<0.000000e+00> : vector<32x128xf32>
    %393 = tpu.matmul %390, %392, %cst_412 {dimension_numbers = #tpu.dot_dimension_numbers<[1], [0], [0], [1], [0, 0, 1, 1], [], []>} : vector<32x128xbf16>, vector<128x128xbf16>, vector<32x128xf32> -> vector<32x128xf32>
    %394 = arith.addf %386, %393 : vector<32x128xf32>
    %c3_413 = arith.constant 3 : index
    %c1_414 = arith.constant 1 : index
    %c0_415 = arith.constant 0 : index
    %c0_416 = arith.constant 0 : index
    %395 = vector.load %arg8[%c3_413, %c1_414, %c0_415, %c0_416] : memref<4x5x9x128xf32, #tpu.memory_space<vmem>>, vector<1x4x8x128xf32>
    %396 = vector.shape_cast %395 : vector<1x4x8x128xf32> to vector<4x8x128xf32>
    %397 = vector.shape_cast %396 : vector<4x8x128xf32> to vector<32x128xf32>
    %398 = arith.truncf %397 : vector<32x128xf32> to vector<32x128xbf16>
    %c6_417 = arith.constant 6 : index
    %c0_418 = arith.constant 0 : index
    %c0_419 = arith.constant 0 : index
    %399 = vector.load %arg4[%c6_417, %c0_418, %c0_419] : memref<9x128x128xbf16, #tpu.memory_space<vmem>>, vector<1x128x128xbf16>
    %400 = vector.shape_cast %399 : vector<1x128x128xbf16> to vector<128x128xbf16>
    %cst_420 = arith.constant dense<0.000000e+00> : vector<32x128xf32>
    %401 = tpu.matmul %398, %400, %cst_420 {dimension_numbers = #tpu.dot_dimension_numbers<[1], [0], [0], [1], [0, 0, 1, 1], [], []>} : vector<32x128xbf16>, vector<128x128xbf16>, vector<32x128xf32> -> vector<32x128xf32>
    %402 = arith.addf %394, %401 : vector<32x128xf32>
    %c2_421 = arith.constant 2 : index
    %c1_422 = arith.constant 1 : index
    %c1_423 = arith.constant 1 : index
    %c0_424 = arith.constant 0 : index
    %403 = vector.load %arg8[%c2_421, %c1_422, %c1_423, %c0_424] : memref<4x5x9x128xf32, #tpu.memory_space<vmem>>, vector<1x4x8x128xf32>
    %404 = vector.shape_cast %403 : vector<1x4x8x128xf32> to vector<4x8x128xf32>
    %405 = vector.shape_cast %404 : vector<4x8x128xf32> to vector<32x128xf32>
    %406 = arith.truncf %405 : vector<32x128xf32> to vector<32x128xbf16>
    %c7_425 = arith.constant 7 : index
    %c0_426 = arith.constant 0 : index
    %c0_427 = arith.constant 0 : index
    %407 = vector.load %arg4[%c7_425, %c0_426, %c0_427] : memref<9x128x128xbf16, #tpu.memory_space<vmem>>, vector<1x128x128xbf16>
    %408 = vector.shape_cast %407 : vector<1x128x128xbf16> to vector<128x128xbf16>
    %cst_428 = arith.constant dense<0.000000e+00> : vector<32x128xf32>
    %409 = tpu.matmul %406, %408, %cst_428 {dimension_numbers = #tpu.dot_dimension_numbers<[1], [0], [0], [1], [0, 0, 1, 1], [], []>} : vector<32x128xbf16>, vector<128x128xbf16>, vector<32x128xf32> -> vector<32x128xf32>
    %410 = arith.addf %402, %409 : vector<32x128xf32>
    %c3_429 = arith.constant 3 : index
    %c1_430 = arith.constant 1 : index
    %c1_431 = arith.constant 1 : index
    %c0_432 = arith.constant 0 : index
    %411 = vector.load %arg8[%c3_429, %c1_430, %c1_431, %c0_432] : memref<4x5x9x128xf32, #tpu.memory_space<vmem>>, vector<1x4x8x128xf32>
    %412 = vector.shape_cast %411 : vector<1x4x8x128xf32> to vector<4x8x128xf32>
    %413 = vector.shape_cast %412 : vector<4x8x128xf32> to vector<32x128xf32>
    %414 = arith.truncf %413 : vector<32x128xf32> to vector<32x128xbf16>
    %c8_433 = arith.constant 8 : index
    %c0_434 = arith.constant 0 : index
    %c0_435 = arith.constant 0 : index
    %415 = vector.load %arg4[%c8_433, %c0_434, %c0_435] : memref<9x128x128xbf16, #tpu.memory_space<vmem>>, vector<1x128x128xbf16>
    %416 = vector.shape_cast %415 : vector<1x128x128xbf16> to vector<128x128xbf16>
    %cst_436 = arith.constant dense<0.000000e+00> : vector<32x128xf32>
    %417 = tpu.matmul %414, %416, %cst_436 {dimension_numbers = #tpu.dot_dimension_numbers<[1], [0], [0], [1], [0, 0, 1, 1], [], []>} : vector<32x128xbf16>, vector<128x128xbf16>, vector<32x128xf32> -> vector<32x128xf32>
    %418 = arith.addf %410, %417 : vector<32x128xf32>
    %c0_437 = arith.constant 0 : index
    %c0_438 = arith.constant 0 : index
    %419 = vector.load %arg5[%c0_437, %c0_438] : memref<1x128xf32, #tpu.memory_space<vmem>>, vector<1x128xf32>
    %420 = vector.broadcast %419 : vector<1x128xf32> to vector<32x128xf32>
    %421 = arith.addf %418, %420 : vector<32x128xf32>
    %422 = vector.shape_cast %421 : vector<32x128xf32> to vector<4x8x128xf32>
    %c0_439 = arith.constant 0 : index
    %c0_440 = arith.constant 0 : index
    %c0_441 = arith.constant 0 : index
    %c0_442 = arith.constant 0 : index
    %423 = vector.load %arg7[%c0_439, %c0_440, %c0_441, %c0_442] : memref<1x4x8x128xf32, #tpu.memory_space<vmem>>, vector<1x4x8x128xf32>
    %424 = vector.shape_cast %423 : vector<1x4x8x128xf32> to vector<4x8x128xf32>
    %425 = vector.shape_cast %422 : vector<4x8x128xf32> to vector<1x4x8x128xf32>
    tpu.vector_store %arg7[%c0_439, %c0_440, %c0_441, %c0_442], %425 {strides = array<i32>} : memref<1x4x8x128xf32, #tpu.memory_space<vmem>>, vector<1x4x8x128xf32>,
    return
  }
  func.func @transform_0(%arg0: i32) -> (i32, i32, i32, i32, i32) {
    %c0_i32 = arith.constant 0 : i32
    %c0_i32_0 = arith.constant 0 : i32
    %c0_i32_1 = arith.constant 0 : i32
    %c0_i32_2 = arith.constant 0 : i32
    %c0_i32_3 = arith.constant 0 : i32
    return %arg0, %c0_i32, %c0_i32_0, %c0_i32_1, %c0_i32_2 : i32, i32, i32, i32, i32
  }
  func.func @transform_1(%arg0: i32) -> (i32, i32, i32) {
    %c0_i32 = arith.constant 0 : i32
    %c0_i32_0 = arith.constant 0 : i32
    %c0_i32_1 = arith.constant 0 : i32
    %c0_i32_2 = arith.constant 0 : i32
    return %c0_i32, %c0_i32_0, %c0_i32_1 : i32, i32, i32
  }
  func.func @transform_2(%arg0: i32) -> (i32, i32) {
    %c0_i32 = arith.constant 0 : i32
    %c0_i32_0 = arith.constant 0 : i32
    %c0_i32_1 = arith.constant 0 : i32
    return %c0_i32, %c0_i32_0 : i32, i32
  }
  func.func @transform_3(%arg0: i32) -> (i32, i32, i32) {
    %c0_i32 = arith.constant 0 : i32
    %c0_i32_0 = arith.constant 0 : i32
    %c0_i32_1 = arith.constant 0 : i32
    %c0_i32_2 = arith.constant 0 : i32
    return %c0_i32, %c0_i32_0, %c0_i32_1 : i32, i32, i32
  }
  func.func @transform_4(%arg0: i32) -> (i32, i32) {
    %c0_i32 = arith.constant 0 : i32
    %c0_i32_0 = arith.constant 0 : i32
    %c0_i32_1 = arith.constant 0 : i32
    return %c0_i32, %c0_i32_0 : i32, i32
  }
  func.func @transform_5(%arg0: i32) -> (i32, i32, i32, i32, i32) {
    %c0_i32 = arith.constant 0 : i32
    %c0_i32_0 = arith.constant 0 : i32
    %c0_i32_1 = arith.constant 0 : i32
    %c0_i32_2 = arith.constant 0 : i32
    %c0_i32_3 = arith.constant 0 : i32
    return %arg0, %c0_i32, %c0_i32_0, %c0_i32_1, %c0_i32_2 : i32, i32, i32, i32, i32
  }
  func.func @transform_6(%arg0: i32) -> (i32, i32, i32, i32) {
    %c0_i32 = arith.constant 0 : i32
    %c0_i32_0 = arith.constant 0 : i32
    %c0_i32_1 = arith.constant 0 : i32
    %c0_i32_2 = arith.constant 0 : i32
    return %arg0, %c0_i32, %c0_i32_0, %c0_i32_1 : i32, i32, i32, i32
  }
}

</mosaic_0001>

<llo_original>
// kernel: tpu_custom_call.1
$region0: #{tpu_custom_call.1}
  #allocation0 [shape = 'u32[]', space=smem, size = 0x4, offset = 0x4, fixed_abs, tag = 'smem constant byte address 0x4 - core index']
  #allocation1 [shape = 'u32[144,128]{1,0:T(1,128)}', space=vmem, size = 0x12000, scoped, tag = 'internal scratch']
  #allocation2 [shape = 'f32[4,5,9,128]{3,2,1,0:T(8,128)}', space=vmem, size = 0x28000, scoped, tag = 'scratch operand']
  %s0 = inlined_call_operand.vmem [shape: f32[2,16,5,9,4], index: 0, kind: input, shape index: {}]
  %s1 = inlined_call_operand.vmem [shape: bf16[9,4,128], index: 1, kind: input, shape index: {}]
  %s2 = inlined_call_operand.vmem [shape: f32[1,128], index: 2, kind: input, shape index: {}]
  %s3 = inlined_call_operand.vmem [shape: bf16[9,128,128], index: 3, kind: input, shape index: {}]
  %s4 = inlined_call_operand.vmem [shape: f32[1,128], index: 4, kind: input, shape index: {}]
  %s5 = inlined_call_operand.hbm [shape: f32[2,4,4,8,128], index: 5, kind: output, shape index: {0}]
  %s6 = inlined_call_operand.hbm [shape: f32[2,4,8,128], index: 6, kind: output, shape index: {1}]
  %7 = xla_tuple %s5, %s6
  %s8 = sld [smem:[#allocation0]]
  $region61: #{tpu_custom_call.1} parent=0
    _
  %s10 = ssub.s32 1, %s8
  %s11 = scalar_select 0, %s10, %s8
  $region1: #{tpu_custom_call.1} parent=0
    #allocation3 [shape = 'u8[131072]{0}', space=vmem, size = 0x20000, scoped, tag = 'output window, operand 0']
    #allocation4 [shape = 's32[2]{0}', space=sflag, size = 0x8, scoped, tag = 'scoped memory for tpu_custom_call.1']
    #allocation5 [shape = 'u8[32768]{0}', space=vmem, size = 0x8000, scoped, tag = 'output window, operand 1']
    #allocation6 [shape = 's32[2]{0}', space=sflag, size = 0x8, scoped, tag = 'scoped memory for tpu_custom_call.1']
    %12 = vsyncpa [#allocation4], 0
    %s13 = scalar_lea.sflag [#allocation4], 1
    %14 = vsyncpa %s13, 0
    %15 = vsyncpa [#allocation6], 0
    %s16 = scalar_lea.sflag [#allocation6], 1
    %17 = vsyncpa %s16, 0
    loop: start=0, step=1, limit=4
    $region2: #{tpu_custom_call.1} parent=1 // loop_pre_header
      _
    $region3: #{tpu_custom_call.1} parent=1 // loop_header
      %s19 = sphi 0, %s23
      %p20 = scmp.ge.s32.totalorder %s19, 4
      %s29 = sphi 0, %s31
      %s32 = sphi 0, %s29
      %s33 = sphi 0, %s32
      %s49 = sphi 0, %s33
      %s53 = sphi 0, %s53
      %s55 = sphi 0, %s53
      %s56 = sphi 0, %s55
      %s70 = sphi 0, %s56
      %s74 = sphi 0, %s74
      %s76 = sphi 0, %s74
      %s77 = sphi 0, %s76
      %s91 = sphi 0, %s77
      %s95 = sphi 0, %s95
      %s97 = sphi 0, %s95
      %s98 = sphi 0, %s97
      %s112 = sphi 0, %s98
      %s116 = sphi 0, %s116
      %s118 = sphi 0, %s116
      %s119 = sphi 0, %s118
      %s133 = sphi 0, %s119
      %s139 = sphi 0, %s141
      %s142 = sphi 0, %s139
      %s143 = sphi 0, %s142
      %s159 = sphi 0, %s143
      %s165 = sphi 0, %s167
      %s168 = sphi 0, %s165
      %s169 = sphi 0, %s168
      %s185 = sphi 0, %s169
    $region4: #{tpu_custom_call.1} parent=1 // loop_header_branch
      %22 = sbr.rel (%p20) target = $region8
    $region5: #{tpu_custom_call.1} parent=1 // loop_body
      %s24 = ssub.s32 %s19, 1
      %s25 = ssub.s32 %s19, 2
      %s26 = sadd.s32 %s19, 1
      %s27 = ssub.s32 %s19, %s26
      %p28 = scmp.eq.s32.totalorder %s27, 0
      %s30 = sadd.s32 %s29, 1
      %s31 = scalar_select %p28, %s29, %s30
      %p34 = pneg %p28
      %p35 = scmp.eq.s32.totalorder %s19, 1
      %p36 = por %p34, %p35
      %p37 = scmp.ne.s32.totalorder %s29, %s32
      %p38 = scmp.eq.s32.totalorder %s19, 0
      %p39 = por %p37, %p38
      %p40 = scmp.ne.s32.totalorder %s29, %s32
      %p41 = scmp.eq.s32.totalorder %s24, 1
      %p42 = por %p40, %p41
      %p43 = scmp.ne.s32.totalorder %s32, %s33
      %p44 = scmp.eq.s32.totalorder %s24, 0
      %p45 = por %p43, %p44
      %p46 = scmp.ne.s32.totalorder %s32, %s33
      %p47 = scmp.eq.s32.totalorder %s25, 1
      %p48 = por %p46, %p47
      %p50 = scmp.ne.s32.totalorder %s33, %s49
      %p51 = scmp.eq.s32.totalorder %s25, 0
      %p52 = por %p50, %p51
      %s54 = sadd.s32 %s53, 1
      %p57 = scmp.eq.s32.totalorder %s19, 1
      %p58 = scmp.ne.s32.totalorder %s53, %s55
      %p59 = scmp.eq.s32.totalorder %s19, 0
      %p60 = por %p58, %p59
      %p61 = scmp.ne.s32.totalorder %s53, %s55
      %p62 = scmp.eq.s32.totalorder %s24, 1
      %p63 = por %p61, %p62
      %p64 = scmp.ne.s32.totalorder %s55, %s56
      %p65 = scmp.eq.s32.totalorder %s24, 0
      %p66 = por %p64, %p65
      %p67 = scmp.ne.s32.totalorder %s55, %s56
      %p68 = scmp.eq.s32.totalorder %s25, 1
      %p69 = por %p67, %p68
      %p71 = scmp.ne.s32.totalorder %s56, %s70
      %p72 = scmp.eq.s32.totalorder %s25, 0
      %p73 = por %p71, %p72
      %s75 = sadd.s32 %s74, 1
      %p78 = scmp.eq.s32.totalorder %s19, 1
      %p79 = scmp.ne.s32.totalorder %s74, %s76
      %p80 = scmp.eq.s32.totalorder %s19, 0
      %p81 = por %p79, %p80
      %p82 = scmp.ne.s32.totalorder %s74, %s76
      %p83 = scmp.eq.s32.totalorder %s24, 1
      %p84 = por %p82, %p83
      %p85 = scmp.ne.s32.totalorder %s76, %s77
      %p86 = scmp.eq.s32.totalorder %s24, 0
      %p87 = por %p85, %p86
      %p88 = scmp.ne.s32.totalorder %s76, %s77
      %p89 = scmp.eq.s32.totalorder %s25, 1
      %p90 = por %p88, %p89
      %p92 = scmp.ne.s32.totalorder %s77, %s91
      %p93 = scmp.eq.s32.totalorder %s25, 0
      %p94 = por %p92, %p93
      %s96 = sadd.s32 %s95, 1
      %p99 = scmp.eq.s32.totalorder %s19, 1
      %p100 = scmp.ne.s32.totalorder %s95, %s97
      %p101 = scmp.eq.s32.totalorder %s19, 0
      %p102 = por %p100, %p101
      %p103 = scmp.ne.s32.totalorder %s95, %s97
      %p104 = scmp.eq.s32.totalorder %s24, 1
      %p105 = por %p103, %p104
      %p106 = scmp.ne.s32.totalorder %s97, %s98
      %p107 = scmp.eq.s32.totalorder %s24, 0
      %p108 = por %p106, %p107
      %p109 = scmp.ne.s32.totalorder %s97, %s98
      %p110 = scmp.eq.s32.totalorder %s25, 1
      %p111 = por %p109, %p110
      %p113 = scmp.ne.s32.totalorder %s98, %s112
      %p114 = scmp.eq.s32.totalorder %s25, 0
      %p115 = por %p113, %p114
      %s117 = sadd.s32 %s116, 1
      %p120 = scmp.eq.s32.totalorder %s19, 1
      %p121 = scmp.ne.s32.totalorder %s116, %s118
      %p122 = scmp.eq.s32.totalorder %s19, 0
      %p123 = por %p121, %p122
      %p124 = scmp.ne.s32.totalorder %s116, %s118
      %p125 = scmp.eq.s32.totalorder %s24, 1
      %p126 = por %p124, %p125
      %p127 = scmp.ne.s32.totalorder %s118, %s119
      %p128 = scmp.eq.s32.totalorder %s24, 0
      %p129 = por %p127, %p128
      %p130 = scmp.ne.s32.totalorder %s118, %s119
      %p131 = scmp.eq.s32.totalorder %s25, 1
      %p132 = por %p130, %p131
      %p134 = scmp.ne.s32.totalorder %s119, %s133
      %p135 = scmp.eq.s32.totalorder %s25, 0
      %p136 = por %p134, %p135
      %s137 = ssub.s32 %s19, %s26
      %p138 = scmp.eq.s32.totalorder %s137, 0
      %s140 = sadd.s32 %s139, 1
      %s141 = scalar_select %p138, %s139, %s140
      %p144 = pneg %p138
      %p145 = scmp.eq.s32.totalorder %s19, 1
      %p146 = por %p144, %p145
      %p147 = scmp.ne.s32.totalorder %s139, %s142
      %p148 = scmp.eq.s32.totalorder %s19, 0
      %p149 = por %p147, %p148
      %p150 = scmp.ne.s32.totalorder %s139, %s142
      %p151 = scmp.eq.s32.totalorder %s24, 1
      %p152 = por %p150, %p151
      %p153 = scmp.ne.s32.totalorder %s142, %s143
      %p154 = scmp.eq.s32.totalorder %s24, 0
      %p155 = por %p153, %p154
      %p156 = scmp.ne.s32.totalorder %s142, %s143
      %p157 = scmp.eq.s32.totalorder %s25, 1
      %p158 = por %p156, %p157
      %p160 = scmp.ne.s32.totalorder %s143, %s159
      %p161 = scmp.eq.s32.totalorder %s25, 0
      %p162 = por %p160, %p161
      %s163 = ssub.s32 %s19, %s26
      %p164 = scmp.eq.s32.totalorder %s163, 0
      %s166 = sadd.s32 %s165, 1
      %s167 = scalar_select %p164, %s165, %s166
      %p170 = pneg %p164
      %p171 = scmp.eq.s32.totalorder %s19, 1
      %p172 = por %p170, %p171
      %p173 = scmp.ne.s32.totalorder %s165, %s168
      %p174 = scmp.eq.s32.totalorder %s19, 0
      %p175 = por %p173, %p174
      %p176 = scmp.ne.s32.totalorder %s165, %s168
      %p177 = scmp.eq.s32.totalorder %s24, 1
      %p178 = por %p176, %p177
      %p179 = scmp.ne.s32.totalorder %s168, %s169
      %p180 = scmp.eq.s32.totalorder %s24, 0
      %p181 = por %p179, %p180
      %p182 = scmp.ne.s32.totalorder %s168, %s169
      %p183 = scmp.eq.s32.totalorder %s25, 1
      %p184 = por %p182, %p183
      %p186 = scmp.ne.s32.totalorder %s169, %s185
      %p187 = scmp.eq.s32.totalorder %s25, 0
      %p188 = por %p186, %p187
      %p189 = scmp.le.s32.totalorder 1, %s19
      %p190 = scmp.lt.s32.totalorder %s19, 3
      %p191 = pnand %p189, %p190
      %p192 = pneg %p191
      // Predicated region
      $region9: #{tpu_custom_call.1} parent=5 // pred_check
        _
      $region10: #{tpu_custom_call.1} parent=5 // pred_check_branch
        %194 = sbr.rel (%p191) target = $region12
      $region11: #{tpu_custom_call.1} parent=5 // pred_region
        %s195 = ssub.s32 %s19, 1
        // Predicated region
        $region13: #{tpu_custom_call.1} parent=11 // pred_check
          %p196 = pneg %p66
        $region14: #{tpu_custom_call.1} parent=11 // pred_check_branch
          %198 = sbr.rel (%p196) target = $region16
        $region15: #{tpu_custom_call.1} parent=11 // pred_region
          _
        $region16: #{tpu_custom_call.1} parent=11 // pred_fallthru
          _
        // Predicated region
        $region17: #{tpu_custom_call.1} parent=11 // pred_check
          %p199 = pneg %p87
        $region18: #{tpu_custom_call.1} parent=11 // pred_check_branch
          %201 = sbr.rel (%p199) target = $region20
        $region19: #{tpu_custom_call.1} parent=11 // pred_region
          _
        $region20: #{tpu_custom_call.1} parent=11 // pred_fallthru
          _
        // Predicated region
        $region21: #{tpu_custom_call.1} parent=11 // pred_check
          %p202 = pneg %p108
        $region22: #{tpu_custom_call.1} parent=11 // pred_check_branch
          %204 = sbr.rel (%p202) target = $region24
        $region23: #{tpu_custom_call.1} parent=11 // pred_region
          _
        $region24: #{tpu_custom_call.1} parent=11 // pred_fallthru
          _
        // Predicated region
        $region25: #{tpu_custom_call.1} parent=11 // pred_check
          %p205 = pneg %p129
        $region26: #{tpu_custom_call.1} parent=11 // pred_check_branch
          %207 = sbr.rel (%p205) target = $region28
        $region27: #{tpu_custom_call.1} parent=11 // pred_region
          _
        $region28: #{tpu_custom_call.1} parent=11 // pred_fallthru
          _
      $region12: #{tpu_custom_call.1} parent=5 // pred_fallthru
        _
      %p208 = scmp.lt.s32.totalorder %s19, 2
      // Predicated region
      $region29: #{tpu_custom_call.1} parent=5 // pred_check
        %p209 = pneg %p208
      $region30: #{tpu_custom_call.1} parent=5 // pred_check_branch
        %211 = sbr.rel (%p209) target = $region32
      $region31: #{tpu_custom_call.1} parent=5 // pred_region
        // Predicated region
        $region33: #{tpu_custom_call.1} parent=31 // pred_check
          %p212 = pneg %p39
        $region34: #{tpu_custom_call.1} parent=31 // pred_check_branch
          %214 = sbr.rel (%p212) target = $region36
        $region35: #{tpu_custom_call.1} parent=31 // pred_region
          %p215 = scmp.lt.s32.totalorder %s19, 1
          %s216 = scalar_select %p215, %s19, 1
          %s217 = smul.addr %s216, 160
          %s218 = smul.addr %s217, 8
          %s219 = scalar_lea.vmem %s0, %s218
        $region36: #{tpu_custom_call.1} parent=31 // pred_fallthru
          _
      $region32: #{tpu_custom_call.1} parent=5 // pred_fallthru
        _
      %p220 = scmp.le.s32.totalorder 1, %s19
      %p221 = scmp.lt.s32.totalorder %s19, 3
      %p222 = pnand %p220, %p221
      %p223 = pneg %p222
      // Predicated region
      $region37: #{tpu_custom_call.1} parent=5 // pred_check
        _
      $region38: #{tpu_custom_call.1} parent=5 // pred_check_branch
        %225 = sbr.rel (%p222) target = $region40
      $region39: #{tpu_custom_call.1} parent=5 // pred_region
        %s226 = ssub.s32 %s19, 1
        %p227 = scmp.lt.s32.totalorder %s24, 1
        %s228 = scalar_select %p227, %s24, 1
        %s229 = smul.addr %s228, 160
        %s230 = smul.addr %s229, 8
        %s231 = scalar_lea.vmem %s0, %s230
        %p232 = pneg %p45
        %p233 = pneg %p42
        %p234 = pneg %p66
        %p235 = pneg %p63
        %p236 = pneg %p87
        %p237 = pneg %p84
        %p238 = pneg %p108
        %p239 = pneg %p105
        %p240 = pneg %p129
        %p241 = pneg %p126
        %p242 = pneg %p155
        %p243 = pneg %p152
        %s244 = sand.u32 %s142, 1
        %s245 = scalar_lea.sflag [#allocation4], %s244
        %s246 = sand.u32 %s142, 1
        %s247 = smul.addr %s246, 128
        %s248 = scalar_lea.vmem [#allocation3], %s247
        %p249 = pneg %p181
        %p250 = pneg %p178
        %s251 = sand.u32 %s168, 1
        %s252 = scalar_lea.sflag [#allocation6], %s251
        %s253 = sand.u32 %s168, 1
        %s254 = smul.addr %s253, 32
        %s255 = scalar_lea.vmem [#allocation5], %s254
        %p256 = scmp.lt.s32.totalorder %s24, 1
        %s257 = scalar_select %p256, %s24, 1
        %s258 = smul.addr %s257, 160
        %s259 = smul.addr %s258, 8
        %s260 = scalar_lea.vmem %s0, %s259
        %262 = vst [vmem:[#allocation2] sm:$0xff] 0.0
        %263 = vst [vmem:[#allocation2 + $0x8] sm:$0x1] 0.0
        %264 = vst [vmem:[#allocation2 + $0x10] sm:$0xff] 0.0
        %265 = vst [vmem:[#allocation2 + $0x18] sm:$0x1] 0.0
        %266 = vst [vmem:[#allocation2 + $0x20] sm:$0xff] 0.0
        %267 = vst [vmem:[#allocation2 + $0x28] sm:$0x1] 0.0
        %268 = vst [vmem:[#allocation2 + $0x30] sm:$0xff] 0.0
        %269 = vst [vmem:[#allocation2 + $0x38] sm:$0x1] 0.0
        %270 = vst [vmem:[#allocation2 + $0x40] sm:$0xff] 0.0
        %271 = vst [vmem:[#allocation2 + $0x48] sm:$0x1] 0.0
        %272 = vst [vmem:[#allocation2 + $0x50] sm:$0xff] 0.0
        %273 = vst [vmem:[#allocation2 + $0x58] sm:$0x1] 0.0
        %274 = vst [vmem:[#allocation2 + $0x60] sm:$0xff] 0.0
        %275 = vst [vmem:[#allocation2 + $0x68] sm:$0x1] 0.0
        %276 = vst [vmem:[#allocation2 + $0x70] sm:$0xff] 0.0
        %277 = vst [vmem:[#allocation2 + $0x78] sm:$0x1] 0.0
        %278 = vst [vmem:[#allocation2 + $0x80] sm:$0xff] 0.0
        %279 = vst [vmem:[#allocation2 + $0x88] sm:$0x1] 0.0
        %280 = vst [vmem:[#allocation2 + $0x90] sm:$0xff] 0.0
        %281 = vst [vmem:[#allocation2 + $0x98] sm:$0x1] 0.0
        %282 = vst [vmem:[#allocation2 + $0xa0] sm:$0xff] 0.0
        %283 = vst [vmem:[#allocation2 + $0xa8] sm:$0x1] 0.0
        %284 = vst [vmem:[#allocation2 + $0xb0] sm:$0xff] 0.0
        %285 = vst [vmem:[#allocation2 + $0xb8] sm:$0x1] 0.0
        %286 = vst [vmem:[#allocation2 + $0xc0] sm:$0xff] 0.0
        %287 = vst [vmem:[#allocation2 + $0xc8] sm:$0x1] 0.0
        %288 = vst [vmem:[#allocation2 + $0xd0] sm:$0xff] 0.0
        %289 = vst [vmem:[#allocation2 + $0xd8] sm:$0x1] 0.0
        %290 = vst [vmem:[#allocation2 + $0xe0] sm:$0xff] 0.0
        %291 = vst [vmem:[#allocation2 + $0xe8] sm:$0x1] 0.0
        %292 = vst [vmem:[#allocation2 + $0xf0] sm:$0xff] 0.0
        %293 = vst [vmem:[#allocation2 + $0xf8] sm:$0x1] 0.0
        %294 = vst [vmem:[#allocation2 + $0x100] sm:$0xff] 0.0
        %295 = vst [vmem:[#allocation2 + $0x108] sm:$0x1] 0.0
        %296 = vst [vmem:[#allocation2 + $0x110] sm:$0xff] 0.0
        %297 = vst [vmem:[#allocation2 + $0x118] sm:$0x1] 0.0
        %298 = vst [vmem:[#allocation2 + $0x120] sm:$0xff] 0.0
        %299 = vst [vmem:[#allocation2 + $0x128] sm:$0x1] 0.0
        %300 = vst [vmem:[#allocation2 + $0x130] sm:$0xff] 0.0
        %301 = vst [vmem:[#allocation2 + $0x138] sm:$0x1] 0.0
        %v302 = vld [vmem:[%s260] sm:$0xff]
        %v303 = vld [vmem:[%s260 + $0x10] sm:$0xff]
        %v304 = vld [vmem:[%s260 + $0x20] sm:$0xff]
        %v305 = vld [vmem:[%s260 + $0x30] sm:$0xff]
        %v306 = vpack.c.bf16 %v303, %v302
        %v307 = vpack.c.bf16 %v305, %v304
        %v308 = vld [vmem:[%s1] sm:$0x3]
        %s309 = scalar_lea.vmem %s260, 80
        %v310 = vld [vmem:[%s309] sm:$0xff]
        %v311 = vld [vmem:[%s309 + $0x10] sm:$0xff]
        %v312 = vld [vmem:[%s309 + $0x20] sm:$0xff]
        %v313 = vld [vmem:[%s309 + $0x30] sm:$0xff]
        %v314 = vpack.c.bf16 %v311, %v310
        %v315 = vpack.c.bf16 %v313, %v312
        %s316 = scalar_lea.vmem %s1, 2
        %v317 = vld [vmem:[%s316] sm:$0x3]
        %vm318 = vcmask 31744
        %v320 = vsel %vm318, %v314, 0
        %v323 = vsel %vm318, %v315, 0
        %vm325 = vcmask 1041408
        %v327 = vsel %vm325, %v317, 0
        %329 = vmatprep.subr.bf16.mxu0 0
        %330 = vmatpush1.bf16.msra.mxu0 %v327
        %331 = vmatprep.subr.bf16.mxu0 0
        %332 = vmatpush1.bf16.msra.mxu0 0
        %333 = vmatprep.subr.bf16.mxu0 0
        %334 = vmatpush1.bf16.msra.mxu0 0
        %335 = vmatprep.subr.bf16.mxu0 0
        %336 = vmatpush1.bf16.msra.mxu0 0
        %337 = vmatprep.subr.bf16.mxu0 0
        %338 = vmatpush1.bf16.msra.mxu0 0
        %339 = vmatprep.subr.bf16.mxu0 0
        %340 = vmatpush1.bf16.msra.mxu0 0
        %341 = vmatprep.subr.bf16.mxu0 0
        %342 = vmatpush1.bf16.msra.mxu0 0
        %343 = vmatprep.subr.bf16.mxu0 0
        %344 = vmatpush1.bf16.msra.mxu0 0
        %345 = vmatprep.subr.bf16.mxu0 0
        %346 = vmatpush1.bf16.msra.mxu0 0
        %347 = vmatprep.subr.bf16.mxu0 0
        %348 = vmatpush1.bf16.msra.mxu0 0
        %349 = vmatprep.subr.bf16.mxu0 0
        %350 = vmatpush1.bf16.msra.mxu0 0
        %351 = vmatprep.subr.bf16.mxu0 0
        %352 = vmatpush1.bf16.msra.mxu0 0
        %353 = vmatprep.subr.bf16.mxu0 0
        %354 = vmatpush1.bf16.msra.mxu0 0
        %355 = vmatprep.subr.bf16.mxu0 0
        %356 = vmatpush1.bf16.msra.mxu0 0
        %357 = vmatprep.subr.bf16.mxu0 0
        %358 = vmatpush1.bf16.msra.mxu0 0
        %359 = vmatprep.subr.bf16.mxu0 0
        %360 = vmatpush1.bf16.msra.mxu0 0
        %361 = vmatprep.mubr.bf16.mxu0 0
        %362 = vmatmul.mubr.bf16.gmra.mrb[0].mxu0 %v320
        %v363 = vpop.f32.mrb[0].mxu0
        %v364 = vadd.f32 0.0, %v363
        %v365 = vpop.f32.mrb[0].mxu0
        %v366 = vpop.f32.mrb[0].mxu0
        %v367 = vadd.f32 0.0, %v366
        %v368 = vpop.f32.mrb[0].mxu0
        %369 = vmatprep.mubr.bf16.mxu0 0
        %370 = vmatmul.mubr.bf16.gmra.mrb[0].mxu0 %v323
        %v371 = vpop.f32.mrb[0].mxu0
        %v372 = vadd.f32 0.0, %v371
        %v373 = vpop.f32.mrb[0].mxu0
        %v374 = vpop.f32.mrb[0].mxu0
        %v375 = vadd.f32 0.0, %v374
        %v376 = vpop.f32.mrb[0].mxu0
        %377 = vdwg.mxu0
        %v379 = vsel %vm318, %v306, 0
        %v382 = vsel %vm318, %v307, 0
        %v385 = vsel %vm325, %v308, 0
        %387 = vmatprep.subr.bf16.mxu0 0
        %388 = vmatpush1.bf16.msra.mxu0 %v385
        %389 = vmatprep.subr.bf16.mxu0 0
        %390 = vmatpush1.bf16.msra.mxu0 0
        %391 = vmatprep.subr.bf16.mxu0 0
        %392 = vmatpush1.bf16.msra.mxu0 0
        %393 = vmatprep.subr.bf16.mxu0 0
        %394 = vmatpush1.bf16.msra.mxu0 0
        %395 = vmatprep.subr.bf16.mxu0 0
        %396 = vmatpush1.bf16.msra.mxu0 0
        %397 = vmatprep.subr.bf16.mxu0 0
        %398 = vmatpush1.bf16.msra.mxu0 0
        %399 = vmatprep.subr.bf16.mxu0 0
        %400 = vmatpush1.bf16.msra.mxu0 0
        %401 = vmatprep.subr.bf16.mxu0 0
        %402 = vmatpush1.bf16.msra.mxu0 0
        %403 = vmatprep.subr.bf16.mxu0 0
        %404 = vmatpush1.bf16.msra.mxu0 0
        %405 = vmatprep.subr.bf16.mxu0 0
        %406 = vmatpush1.bf16.msra.mxu0 0
        %407 = vmatprep.subr.bf16.mxu0 0
        %408 = vmatpush1.bf16.msra.mxu0 0
        %409 = vmatprep.subr.bf16.mxu0 0
        %410 = vmatpush1.bf16.msra.mxu0 0
        %411 = vmatprep.subr.bf16.mxu0 0
        %412 = vmatpush1.bf16.msra.mxu0 0
        %413 = vmatprep.subr.bf16.mxu0 0
        %414 = vmatpush1.bf16.msra.mxu0 0
        %415 = vmatprep.subr.bf16.mxu0 0
        %416 = vmatpush1.bf16.msra.mxu0 0
        %417 = vmatprep.subr.bf16.mxu0 0
        %418 = vmatpush1.bf16.msra.mxu0 0
        %419 = vmatprep.mubr.bf16.mxu0 0
        %420 = vmatmul.mubr.bf16.gmra.mrb[0].mxu0 %v379
        %v421 = vpop.f32.mrb[0].mxu0
        %v422 = vadd.f32 %v364, %v421
        %v423 = vpop.f32.mrb[0].mxu0
        %v424 = vpop.f32.mrb[0].mxu0
        %v425 = vadd.f32 %v367, %v424
        %v426 = vpop.f32.mrb[0].mxu0
        %427 = vmatprep.mubr.bf16.mxu0 0
        %428 = vmatmul.mubr.bf16.gmra.mrb[0].mxu0 %v382
        %v429 = vpop.f32.mrb[0].mxu0
        %v430 = vadd.f32 %v372, %v429
        %v431 = vpop.f32.mrb[0].mxu0
        %v432 = vpop.f32.mrb[0].mxu0
        %v433 = vadd.f32 %v375, %v432
        %v434 = vpop.f32.mrb[0].mxu0
        %435 = vdwg.mxu0
        %s436 = scalar_lea.vmem %s260, 160
        %v437 = vld [vmem:[%s436] sm:$0xff]
        %v438 = vld [vmem:[%s436 + $0x10] sm:$0xff]
        %v439 = vld [vmem:[%s436 + $0x20] sm:$0xff]
        %v440 = vld [vmem:[%s436 + $0x30] sm:$0xff]
        %v441 = vpack.c.bf16 %v438, %v437
        %v442 = vpack.c.bf16 %v440, %v439
        %s443 = scalar_lea.vmem %s1, 4
        %v444 = vld [vmem:[%s443] sm:$0x3]
        %v446 = vsel %vm318, %v441, 0
        %v449 = vsel %vm318, %v442, 0
        %v452 = vsel %vm325, %v444, 0
        %454 = vmatprep.subr.bf16.mxu0 0
        %455 = vmatpush1.bf16.msra.mxu0 %v452
        %456 = vmatprep.subr.bf16.mxu0 0
        %457 = vmatpush1.bf16.msra.mxu0 0
        %458 = vmatprep.subr.bf16.mxu0 0
        %459 = vmatpush1.bf16.msra.mxu0 0
        %460 = vmatprep.subr.bf16.mxu0 0
        %461 = vmatpush1.bf16.msra.mxu0 0
        %462 = vmatprep.subr.bf16.mxu0 0
        %463 = vmatpush1.bf16.msra.mxu0 0
        %464 = vmatprep.subr.bf16.mxu0 0
        %465 = vmatpush1.bf16.msra.mxu0 0
        %466 = vmatprep.subr.bf16.mxu0 0
        %467 = vmatpush1.bf16.msra.mxu0 0
        %468 = vmatprep.subr.bf16.mxu0 0
        %469 = vmatpush1.bf16.msra.mxu0 0
        %470 = vmatprep.subr.bf16.mxu0 0
        %471 = vmatpush1.bf16.msra.mxu0 0
        %472 = vmatprep.subr.bf16.mxu0 0
        %473 = vmatpush1.bf16.msra.mxu0 0
        %474 = vmatprep.subr.bf16.mxu0 0
        %475 = vmatpush1.bf16.msra.mxu0 0
        %476 = vmatprep.subr.bf16.mxu0 0
        %477 = vmatpush1.bf16.msra.mxu0 0
        %478 = vmatprep.subr.bf16.mxu0 0
        %479 = vmatpush1.bf16.msra.mxu0 0
        %480 = vmatprep.subr.bf16.mxu0 0
        %481 = vmatpush1.bf16.msra.mxu0 0
        %482 = vmatprep.subr.bf16.mxu0 0
        %483 = vmatpush1.bf16.msra.mxu0 0
        %484 = vmatprep.subr.bf16.mxu0 0
        %485 = vmatpush1.bf16.msra.mxu0 0
        %486 = vmatprep.mubr.bf16.mxu0 0
        %487 = vmatmul.mubr.bf16.gmra.mrb[0].mxu0 %v446
        %v488 = vpop.f32.mrb[0].mxu0
        %v489 = vadd.f32 0.0, %v488
        %v490 = vpop.f32.mrb[0].mxu0
        %v491 = vpop.f32.mrb[0].mxu0
        %v492 = vadd.f32 0.0, %v491
        %v493 = vpop.f32.mrb[0].mxu0
        %494 = vmatprep.mubr.bf16.mxu0 0
        %495 = vmatmul.mubr.bf16.gmra.mrb[0].mxu0 %v449
        %v496 = vpop.f32.mrb[0].mxu0
        %v497 = vadd.f32 0.0, %v496
        %v498 = vpop.f32.mrb[0].mxu0
        %v499 = vpop.f32.mrb[0].mxu0
        %v500 = vadd.f32 0.0, %v499
        %v501 = vpop.f32.mrb[0].mxu0
        %502 = vdwg.mxu0
        %v503 = vadd.f32 %v422, %v489
        %v504 = vadd.f32 %v425, %v492
        %v505 = vadd.f32 %v430, %v497
        %v506 = vadd.f32 %v433, %v500
        %s507 = scalar_lea.vmem %s260, 320
        %v508 = vld [vmem:[%s507] sm:$0xff]
        %v509 = vld [vmem:[%s507 + $0x10] sm:$0xff]
        %v510 = vld [vmem:[%s507 + $0x20] sm:$0xff]
        %v511 = vld [vmem:[%s507 + $0x30] sm:$0xff]
        %v512 = vpack.c.bf16 %v509, %v508
        %v513 = vpack.c.bf16 %v511, %v510
        %s514 = scalar_lea.vmem %s1, 6
        %v515 = vld [vmem:[%s514] sm:$0x3]
        %v517 = vsel %vm318, %v512, 0
        %v520 = vsel %vm318, %v513, 0
        %v523 = vsel %vm325, %v515, 0
        %525 = vmatprep.subr.bf16.mxu0 0
        %526 = vmatpush1.bf16.msra.mxu0 %v523
        %527 = vmatprep.subr.bf16.mxu0 0
        %528 = vmatpush1.bf16.msra.mxu0 0
        %529 = vmatprep.subr.bf16.mxu0 0
        %530 = vmatpush1.bf16.msra.mxu0 0
        %531 = vmatprep.subr.bf16.mxu0 0
        %532 = vmatpush1.bf16.msra.mxu0 0
        %533 = vmatprep.subr.bf16.mxu0 0
        %534 = vmatpush1.bf16.msra.mxu0 0
        %535 = vmatprep.subr.bf16.mxu0 0
        %536 = vmatpush1.bf16.msra.mxu0 0
        %537 = vmatprep.subr.bf16.mxu0 0
        %538 = vmatpush1.bf16.msra.mxu0 0
        %539 = vmatprep.subr.bf16.mxu0 0
        %540 = vmatpush1.bf16.msra.mxu0 0
        %541 = vmatprep.subr.bf16.mxu0 0
        %542 = vmatpush1.bf16.msra.mxu0 0
        %543 = vmatprep.subr.bf16.mxu0 0
        %544 = vmatpush1.bf16.msra.mxu0 0
        %545 = vmatprep.subr.bf16.mxu0 0
        %546 = vmatpush1.bf16.msra.mxu0 0
        %547 = vmatprep.subr.bf16.mxu0 0
        %548 = vmatpush1.bf16.msra.mxu0 0
        %549 = vmatprep.subr.bf16.mxu0 0
        %550 = vmatpush1.bf16.msra.mxu0 0
        %551 = vmatprep.subr.bf16.mxu0 0
        %552 = vmatpush1.bf16.msra.mxu0 0
        %553 = vmatprep.subr.bf16.mxu0 0
        %554 = vmatpush1.bf16.msra.mxu0 0
        %555 = vmatprep.subr.bf16.mxu0 0
        %556 = vmatpush1.bf16.msra.mxu0 0
        %557 = vmatprep.mubr.bf16.mxu0 0
        %558 = vmatmul.mubr.bf16.gmra.mrb[0].mxu0 %v517
        %v559 = vpop.f32.mrb[0].mxu0
        %v560 = vadd.f32 0.0, %v559
        %v561 = vpop.f32.mrb[0].mxu0
        %v562 = vpop.f32.mrb[0].mxu0
        %v563 = vadd.f32 0.0, %v562
        %v564 = vpop.f32.mrb[0].mxu0
        %565 = vmatprep.mubr.bf16.mxu0 0
        %566 = vmatmul.mubr.bf16.gmra.mrb[0].mxu0 %v520
        %v567 = vpop.f32.mrb[0].mxu0
        %v568 = vadd.f32 0.0, %v567
        %v569 = vpop.f32.mrb[0].mxu0
        %v570 = vpop.f32.mrb[0].mxu0
        %v571 = vadd.f32 0.0, %v570
        %v572 = vpop.f32.mrb[0].mxu0
        %573 = vdwg.mxu0
        %v574 = vadd.f32 %v503, %v560
        %v575 = vadd.f32 %v504, %v563
        %v576 = vadd.f32 %v505, %v568
        %v577 = vadd.f32 %v506, %v571
        %s578 = scalar_lea.vmem %s260, 400
        %v579 = vld [vmem:[%s578] sm:$0xff]
        %v580 = vld [vmem:[%s578 + $0x10] sm:$0xff]
        %v581 = vld [vmem:[%s578 + $0x20] sm:$0xff]
        %v582 = vld [vmem:[%s578 + $0x30] sm:$0xff]
        %v583 = vpack.c.bf16 %v580, %v579
        %v584 = vpack.c.bf16 %v582, %v581
        %s585 = scalar_lea.vmem %s1, 8
        %v586 = vld [vmem:[%s585] sm:$0x3]
        %v588 = vsel %vm318, %v583, 0
        %v591 = vsel %vm318, %v584, 0
        %v594 = vsel %vm325, %v586, 0
        %596 = vmatprep.subr.bf16.mxu0 0
        %597 = vmatpush1.bf16.msra.mxu0 %v594
        %598 = vmatprep.subr.bf16.mxu0 0
        %599 = vmatpush1.bf16.msra.mxu0 0
        %600 = vmatprep.subr.bf16.mxu0 0
        %601 = vmatpush1.bf16.msra.mxu0 0
        %602 = vmatprep.subr.bf16.mxu0 0
        %603 = vmatpush1.bf16.msra.mxu0 0
        %604 = vmatprep.subr.bf16.mxu0 0
        %605 = vmatpush1.bf16.msra.mxu0 0
        %606 = vmatprep.subr.bf16.mxu0 0
        %607 = vmatpush1.bf16.msra.mxu0 0
        %608 = vmatprep.subr.bf16.mxu0 0
        %609 = vmatpush1.bf16.msra.mxu0 0
        %610 = vmatprep.subr.bf16.mxu0 0
        %611 = vmatpush1.bf16.msra.mxu0 0
        %612 = vmatprep.subr.bf16.mxu0 0
        %613 = vmatpush1.bf16.msra.mxu0 0
        %614 = vmatprep.subr.bf16.mxu0 0
        %615 = vmatpush1.bf16.msra.mxu0 0
        %616 = vmatprep.subr.bf16.mxu0 0
        %617 = vmatpush1.bf16.msra.mxu0 0
        %618 = vmatprep.subr.bf16.mxu0 0
        %619 = vmatpush1.bf16.msra.mxu0 0
        %620 = vmatprep.subr.bf16.mxu0 0
        %621 = vmatpush1.bf16.msra.mxu0 0
        %622 = vmatprep.subr.bf16.mxu0 0
        %623 = vmatpush1.bf16.msra.mxu0 0
        %624 = vmatprep.subr.bf16.mxu0 0
        %625 = vmatpush1.bf16.msra.mxu0 0
        %626 = vmatprep.subr.bf16.mxu0 0
        %627 = vmatpush1.bf16.msra.mxu0 0
        %628 = vmatprep.mubr.bf16.mxu0 0
        %629 = vmatmul.mubr.bf16.gmra.mrb[0].mxu0 %v588
        %v630 = vpop.f32.mrb[0].mxu0
        %v631 = vadd.f32 0.0, %v630
        %v632 = vpop.f32.mrb[0].mxu0
        %v633 = vpop.f32.mrb[0].mxu0
        %v634 = vadd.f32 0.0, %v633
        %v635 = vpop.f32.mrb[0].mxu0
        %636 = vmatprep.mubr.bf16.mxu0 0
        %637 = vmatmul.mubr.bf16.gmra.mrb[0].mxu0 %v591
        %v638 = vpop.f32.mrb[0].mxu0
        %v639 = vadd.f32 0.0, %v638
        %v640 = vpop.f32.mrb[0].mxu0
        %v641 = vpop.f32.mrb[0].mxu0
        %v642 = vadd.f32 0.0, %v641
        %v643 = vpop.f32.mrb[0].mxu0
        %644 = vdwg.mxu0
        %v645 = vadd.f32 %v574, %v631
        %v646 = vadd.f32 %v575, %v634
        %v647 = vadd.f32 %v576, %v639
        %v648 = vadd.f32 %v577, %v642
        %s649 = scalar_lea.vmem %s260, 480
        %v650 = vld [vmem:[%s649] sm:$0xff]
        %v651 = vld [vmem:[%s649 + $0x10] sm:$0xff]
        %v652 = vld [vmem:[%s649 + $0x20] sm:$0xff]
        %v653 = vld [vmem:[%s649 + $0x30] sm:$0xff]
        %v654 = vpack.c.bf16 %v651, %v650
        %v655 = vpack.c.bf16 %v653, %v652
        %s656 = scalar_lea.vmem %s1, 10
        %v657 = vld [vmem:[%s656] sm:$0x3]
        %v659 = vsel %vm318, %v654, 0
        %v662 = vsel %vm318, %v655, 0
        %v665 = vsel %vm325, %v657, 0
        %667 = vmatprep.subr.bf16.mxu0 0
        %668 = vmatpush1.bf16.msra.mxu0 %v665
        %669 = vmatprep.subr.bf16.mxu0 0
        %670 = vmatpush1.bf16.msra.mxu0 0
        %671 = vmatprep.subr.bf16.mxu0 0
        %672 = vmatpush1.bf16.msra.mxu0 0
        %673 = vmatprep.subr.bf16.mxu0 0
        %674 = vmatpush1.bf16.msra.mxu0 0
        %675 = vmatprep.subr.bf16.mxu0 0
        %676 = vmatpush1.bf16.msra.mxu0 0
        %677 = vmatprep.subr.bf16.mxu0 0
        %678 = vmatpush1.bf16.msra.mxu0 0
        %679 = vmatprep.subr.bf16.mxu0 0
        %680 = vmatpush1.bf16.msra.mxu0 0
        %681 = vmatprep.subr.bf16.mxu0 0
        %682 = vmatpush1.bf16.msra.mxu0 0
        %683 = vmatprep.subr.bf16.mxu0 0
        %684 = vmatpush1.bf16.msra.mxu0 0
        %685 = vmatprep.subr.bf16.mxu0 0
        %686 = vmatpush1.bf16.msra.mxu0 0
        %687 = vmatprep.subr.bf16.mxu0 0
        %688 = vmatpush1.bf16.msra.mxu0 0
        %689 = vmatprep.subr.bf16.mxu0 0
        %690 = vmatpush1.bf16.msra.mxu0 0
        %691 = vmatprep.subr.bf16.mxu0 0
        %692 = vmatpush1.bf16.msra.mxu0 0
        %693 = vmatprep.subr.bf16.mxu0 0
        %694 = vmatpush1.bf16.msra.mxu0 0
        %695 = vmatprep.subr.bf16.mxu0 0
        %696 = vmatpush1.bf16.msra.mxu0 0
        %697 = vmatprep.subr.bf16.mxu0 0
        %698 = vmatpush1.bf16.msra.mxu0 0
        %699 = vmatprep.mubr.bf16.mxu0 0
        %700 = vmatmul.mubr.bf16.gmra.mrb[0].mxu0 %v659
        %v701 = vpop.f32.mrb[0].mxu0
        %v702 = vadd.f32 0.0, %v701
        %v703 = vpop.f32.mrb[0].mxu0
        %v704 = vpop.f32.mrb[0].mxu0
        %v705 = vadd.f32 0.0, %v704
        %v706 = vpop.f32.mrb[0].mxu0
        %707 = vmatprep.mubr.bf16.mxu0 0
        %708 = vmatmul.mubr.bf16.gmra.mrb[0].mxu0 %v662
        %v709 = vpop.f32.mrb[0].mxu0
        %v710 = vadd.f32 0.0, %v709
        %v711 = vpop.f32.mrb[0].mxu0
        %v712 = vpop.f32.mrb[0].mxu0
        %v713 = vadd.f32 0.0, %v712
        %v714 = vpop.f32.mrb[0].mxu0
        %715 = vdwg.mxu0
        %v716 = vadd.f32 %v645, %v702
        %v717 = vadd.f32 %v646, %v705
        %v718 = vadd.f32 %v647, %v710
        %v719 = vadd.f32 %v648, %v713
        %s720 = scalar_lea.vmem %s260, 640
        %v721 = vld [vmem:[%s720] sm:$0xff]
        %v722 = vld [vmem:[%s720 + $0x10] sm:$0xff]
        %v723 = vld [vmem:[%s720 + $0x20] sm:$0xff]
        %v724 = vld [vmem:[%s720 + $0x30] sm:$0xff]
        %v725 = vpack.c.bf16 %v722, %v721
        %v726 = vpack.c.bf16 %v724, %v723
        %s727 = scalar_lea.vmem %s1, 12
        %v728 = vld [vmem:[%s727] sm:$0x3]
        %v730 = vsel %vm318, %v725, 0
        %v733 = vsel %vm318, %v726, 0
        %v736 = vsel %vm325, %v728, 0
        %738 = vmatprep.subr.bf16.mxu0 0
        %739 = vmatpush1.bf16.msra.mxu0 %v736
        %740 = vmatprep.subr.bf16.mxu0 0
        %741 = vmatpush1.bf16.msra.mxu0 0
        %742 = vmatprep.subr.bf16.mxu0 0
        %743 = vmatpush1.bf16.msra.mxu0 0
        %744 = vmatprep.subr.bf16.mxu0 0
        %745 = vmatpush1.bf16.msra.mxu0 0
        %746 = vmatprep.subr.bf16.mxu0 0
        %747 = vmatpush1.bf16.msra.mxu0 0
        %748 = vmatprep.subr.bf16.mxu0 0
        %749 = vmatpush1.bf16.msra.mxu0 0
        %750 = vmatprep.subr.bf16.mxu0 0
        %751 = vmatpush1.bf16.msra.mxu0 0
        %752 = vmatprep.subr.bf16.mxu0 0
        %753 = vmatpush1.bf16.msra.mxu0 0
        %754 = vmatprep.subr.bf16.mxu0 0
        %755 = vmatpush1.bf16.msra.mxu0 0
        %756 = vmatprep.subr.bf16.mxu0 0
        %757 = vmatpush1.bf16.msra.mxu0 0
        %758 = vmatprep.subr.bf16.mxu0 0
        %759 = vmatpush1.bf16.msra.mxu0 0
        %760 = vmatprep.subr.bf16.mxu0 0
        %761 = vmatpush1.bf16.msra.mxu0 0
        %762 = vmatprep.subr.bf16.mxu0 0
        %763 = vmatpush1.bf16.msra.mxu0 0
        %764 = vmatprep.subr.bf16.mxu0 0
        %765 = vmatpush1.bf16.msra.mxu0 0
        %766 = vmatprep.subr.bf16.mxu0 0
        %767 = vmatpush1.bf16.msra.mxu0 0
        %768 = vmatprep.subr.bf16.mxu0 0
        %769 = vmatpush1.bf16.msra.mxu0 0
        %770 = vmatprep.mubr.bf16.mxu0 0
        %771 = vmatmul.mubr.bf16.gmra.mrb[0].mxu0 %v730
        %v772 = vpop.f32.mrb[0].mxu0
        %v773 = vadd.f32 0.0, %v772
        %v774 = vpop.f32.mrb[0].mxu0
        %v775 = vpop.f32.mrb[0].mxu0
        %v776 = vadd.f32 0.0, %v775
        %v777 = vpop.f32.mrb[0].mxu0
        %778 = vmatprep.mubr.bf16.mxu0 0
        %779 = vmatmul.mubr.bf16.gmra.mrb[0].mxu0 %v733
        %v780 = vpop.f32.mrb[0].mxu0
        %v781 = vadd.f32 0.0, %v780
        %v782 = vpop.f32.mrb[0].mxu0
        %v783 = vpop.f32.mrb[0].mxu0
        %v784 = vadd.f32 0.0, %v783
        %v785 = vpop.f32.mrb[0].mxu0
        %786 = vdwg.mxu0
        %v787 = vadd.f32 %v716, %v773
        %v788 = vadd.f32 %v717, %v776
        %v789 = vadd.f32 %v718, %v781
        %v790 = vadd.f32 %v719, %v784
        %s791 = scalar_lea.vmem %s260, 720
        %v792 = vld [vmem:[%s791] sm:$0xff]
        %v793 = vld [vmem:[%s791 + $0x10] sm:$0xff]
        %v794 = vld [vmem:[%s791 + $0x20] sm:$0xff]
        %v795 = vld [vmem:[%s791 + $0x30] sm:$0xff]
        %v796 = vpack.c.bf16 %v793, %v792
        %v797 = vpack.c.bf16 %v795, %v794
        %s798 = scalar_lea.vmem %s1, 14
        %v799 = vld [vmem:[%s798] sm:$0x3]
        %v801 = vsel %vm318, %v796, 0
        %v804 = vsel %vm318, %v797, 0
        %v807 = vsel %vm325, %v799, 0
        %809 = vmatprep.subr.bf16.mxu0 0
        %810 = vmatpush1.bf16.msra.mxu0 %v807
        %811 = vmatprep.subr.bf16.mxu0 0
        %812 = vmatpush1.bf16.msra.mxu0 0
        %813 = vmatprep.subr.bf16.mxu0 0
        %814 = vmatpush1.bf16.msra.mxu0 0
        %815 = vmatprep.subr.bf16.mxu0 0
        %816 = vmatpush1.bf16.msra.mxu0 0
        %817 = vmatprep.subr.bf16.mxu0 0
        %818 = vmatpush1.bf16.msra.mxu0 0
        %819 = vmatprep.subr.bf16.mxu0 0
        %820 = vmatpush1.bf16.msra.mxu0 0
        %821 = vmatprep.subr.bf16.mxu0 0
        %822 = vmatpush1.bf16.msra.mxu0 0
        %823 = vmatprep.subr.bf16.mxu0 0
        %824 = vmatpush1.bf16.msra.mxu0 0
        %825 = vmatprep.subr.bf16.mxu0 0
        %826 = vmatpush1.bf16.msra.mxu0 0
        %827 = vmatprep.subr.bf16.mxu0 0
        %828 = vmatpush1.bf16.msra.mxu0 0
        %829 = vmatprep.subr.bf16.mxu0 0
        %830 = vmatpush1.bf16.msra.mxu0 0
        %831 = vmatprep.subr.bf16.mxu0 0
        %832 = vmatpush1.bf16.msra.mxu0 0
        %833 = vmatprep.subr.bf16.mxu0 0
        %834 = vmatpush1.bf16.msra.mxu0 0
        %835 = vmatprep.subr.bf16.mxu0 0
        %836 = vmatpush1.bf16.msra.mxu0 0
        %837 = vmatprep.subr.bf16.mxu0 0
        %838 = vmatpush1.bf16.msra.mxu0 0
        %839 = vmatprep.subr.bf16.mxu0 0
        %840 = vmatpush1.bf16.msra.mxu0 0
        %841 = vmatprep.mubr.bf16.mxu0 0
        %842 = vmatmul.mubr.bf16.gmra.mrb[0].mxu0 %v801
        %v843 = vpop.f32.mrb[0].mxu0
        %v844 = vadd.f32 0.0, %v843
        %v845 = vpop.f32.mrb[0].mxu0
        %v846 = vpop.f32.mrb[0].mxu0
        %v847 = vadd.f32 0.0, %v846
        %v848 = vpop.f32.mrb[0].mxu0
        %849 = vmatprep.mubr.bf16.mxu0 0
        %850 = vmatmul.mubr.bf16.gmra.mrb[0].mxu0 %v804
        %v851 = vpop.f32.mrb[0].mxu0
        %v852 = vadd.f32 0.0, %v851
        %v853 = vpop.f32.mrb[0].mxu0
        %v854 = vpop.f32.mrb[0].mxu0
        %v855 = vadd.f32 0.0, %v854
        %v856 = vpop.f32.mrb[0].mxu0
        %857 = vdwg.mxu0
        %v858 = vadd.f32 %v787, %v844
        %v859 = vadd.f32 %v788, %v847
        %v860 = vadd.f32 %v789, %v852
        %v861 = vadd.f32 %v790, %v855
        %s862 = scalar_lea.vmem %s260, 800
        %v863 = vld [vmem:[%s862] sm:$0xff]
        %v864 = vld [vmem:[%s862 + $0x10] sm:$0xff]
        %v865 = vld [vmem:[%s862 + $0x20] sm:$0xff]
        %v866 = vld [vmem:[%s862 + $0x30] sm:$0xff]
        %v867 = vpack.c.bf16 %v864, %v863
        %v868 = vpack.c.bf16 %v866, %v865
        %s869 = scalar_lea.vmem %s1, 16
        %v870 = vld [vmem:[%s869] sm:$0x3]
        %v872 = vsel %vm318, %v867, 0
        %v875 = vsel %vm318, %v868, 0
        %v878 = vsel %vm325, %v870, 0
        %880 = vmatprep.subr.bf16.mxu0 0
        %881 = vmatpush1.bf16.msra.mxu0 %v878
        %882 = vmatprep.subr.bf16.mxu0 0
        %883 = vmatpush1.bf16.msra.mxu0 0
        %884 = vmatprep.subr.bf16.mxu0 0
        %885 = vmatpush1.bf16.msra.mxu0 0
        %886 = vmatprep.subr.bf16.mxu0 0
        %887 = vmatpush1.bf16.msra.mxu0 0
        %888 = vmatprep.subr.bf16.mxu0 0
        %889 = vmatpush1.bf16.msra.mxu0 0
        %890 = vmatprep.subr.bf16.mxu0 0
        %891 = vmatpush1.bf16.msra.mxu0 0
        %892 = vmatprep.subr.bf16.mxu0 0
        %893 = vmatpush1.bf16.msra.mxu0 0
        %894 = vmatprep.subr.bf16.mxu0 0
        %895 = vmatpush1.bf16.msra.mxu0 0
        %896 = vmatprep.subr.bf16.mxu0 0
        %897 = vmatpush1.bf16.msra.mxu0 0
        %898 = vmatprep.subr.bf16.mxu0 0
        %899 = vmatpush1.bf16.msra.mxu0 0
        %900 = vmatprep.subr.bf16.mxu0 0
        %901 = vmatpush1.bf16.msra.mxu0 0
        %902 = vmatprep.subr.bf16.mxu0 0
        %903 = vmatpush1.bf16.msra.mxu0 0
        %904 = vmatprep.subr.bf16.mxu0 0
        %905 = vmatpush1.bf16.msra.mxu0 0
        %906 = vmatprep.subr.bf16.mxu0 0
        %907 = vmatpush1.bf16.msra.mxu0 0
        %908 = vmatprep.subr.bf16.mxu0 0
        %909 = vmatpush1.bf16.msra.mxu0 0
        %910 = vmatprep.subr.bf16.mxu0 0
        %911 = vmatpush1.bf16.msra.mxu0 0
        %912 = vmatprep.mubr.bf16.mxu0 0
        %913 = vmatmul.mubr.bf16.gmra.mrb[0].mxu0 %v872
        %v914 = vpop.f32.mrb[0].mxu0
        %v915 = vadd.f32 0.0, %v914
        %v916 = vpop.f32.mrb[0].mxu0
        %v917 = vpop.f32.mrb[0].mxu0
        %v918 = vadd.f32 0.0, %v917
        %v919 = vpop.f32.mrb[0].mxu0
        %920 = vmatprep.mubr.bf16.mxu0 0
        %921 = vmatmul.mubr.bf16.gmra.mrb[0].mxu0 %v875
        %v922 = vpop.f32.mrb[0].mxu0
        %v923 = vadd.f32 0.0, %v922
        %v924 = vpop.f32.mrb[0].mxu0
        %v925 = vpop.f32.mrb[0].mxu0
        %v926 = vadd.f32 0.0, %v925
        %v927 = vpop.f32.mrb[0].mxu0
        %928 = vdwg.mxu0
        %v929 = vadd.f32 %v858, %v915
        %v930 = vadd.f32 %v859, %v918
        %v931 = vadd.f32 %v860, %v923
        %v932 = vadd.f32 %v861, %v926
        %v933 = vld [vmem:[%s2] sm:$0x1]
        %v935 = vlaneseq
        %v936 = vshrl.u32 %v935, 7
        %v937 = vsub.s32 0, %v936
        %v938 = vrot.slane %v933, %v937
        %v940 = vadd.f32 %v929, %v938
        %v941 = vadd.f32 %v930, %v938
        %v942 = vadd.f32 %v931, %v938
        %v943 = vadd.f32 %v932, %v938
        %944 = vst [vmem:[%s248] sm:$0xff] %v940
        %945 = vst [vmem:[%s248 + $0x8] sm:$0xff] %v941
        %946 = vst [vmem:[%s248 + $0x10] sm:$0xff] %v942
        %947 = vst [vmem:[%s248 + $0x18] sm:$0xff] %v943
        %v948 = vmax.f32 %v940, 0.0
        %v949 = vmax.f32 %v941, 0.0
        %v950 = vmax.f32 %v942, 0.0
        %v951 = vmax.f32 %v943, 0.0
        %s952 = scalar_lea.vmem [#allocation2], 16
        %953 = vst [vmem:[%s952 + $0x1] sm:$0xf] %v948
        %954 = vst [vmem:[%s952 + $0x11] sm:$0xf] %v949
        %955 = vst [vmem:[%s952 + $0x21] sm:$0xf] %v950
        %956 = vst [vmem:[%s952 + $0x31] sm:$0xf] %v951
        %v957 = vld [vmem:[%s436] sm:$0xff]
        %v958 = vld [vmem:[%s436 + $0x10] sm:$0xff]
        %v959 = vld [vmem:[%s436 + $0x20] sm:$0xff]
        %v960 = vld [vmem:[%s436 + $0x30] sm:$0xff]
        %v961 = vpack.c.bf16 %v958, %v957
        %v962 = vpack.c.bf16 %v960, %v959
        %v963 = vld [vmem:[%s1] sm:$0x3]
        %s964 = scalar_lea.vmem %s260, 240
        %v965 = vld [vmem:[%s964] sm:$0xff]
        %v966 = vld [vmem:[%s964 + $0x10] sm:$0xff]
        %v967 = vld [vmem:[%s964 + $0x20] sm:$0xff]
        %v968 = vld [vmem:[%s964 + $0x30] sm:$0xff]
        %v969 = vpack.c.bf16 %v966, %v965
        %v970 = vpack.c.bf16 %v968, %v967
        %v971 = vld [vmem:[%s316] sm:$0x3]
        %v973 = vsel %vm318, %v969, 0
        %v976 = vsel %vm318, %v970, 0
        %v979 = vsel %vm325, %v971, 0
        %981 = vmatprep.subr.bf16.mxu0 0
        %982 = vmatpush1.bf16.msra.mxu0 %v979
        %983 = vmatprep.subr.bf16.mxu0 0
        %984 = vmatpush1.bf16.msra.mxu0 0
        %985 = vmatprep.subr.bf16.mxu0 0
        %986 = vmatpush1.bf16.msra.mxu0 0
        %987 = vmatprep.subr.bf16.mxu0 0
        %988 = vmatpush1.bf16.msra.mxu0 0
        %989 = vmatprep.subr.bf16.mxu0 0
        %990 = vmatpush1.bf16.msra.mxu0 0
        %991 = vmatprep.subr.bf16.mxu0 0
        %992 = vmatpush1.bf16.msra.mxu0 0
        %993 = vmatprep.subr.bf16.mxu0 0
        %994 = vmatpush1.bf16.msra.mxu0 0
        %995 = vmatprep.subr.bf16.mxu0 0
        %996 = vmatpush1.bf16.msra.mxu0 0
        %997 = vmatprep.subr.bf16.mxu0 0
        %998 = vmatpush1.bf16.msra.mxu0 0
        %999 = vmatprep.subr.bf16.mxu0 0
        %1000 = vmatpush1.bf16.msra.mxu0 0
        %1001 = vmatprep.subr.bf16.mxu0 0
        %1002 = vmatpush1.bf16.msra.mxu0 0
        %1003 = vmatprep.subr.bf16.mxu0 0
        %1004 = vmatpush1.bf16.msra.mxu0 0
        %1005 = vmatprep.subr.bf16.mxu0 0
        %1006 = vmatpush1.bf16.msra.mxu0 0
        %1007 = vmatprep.subr.bf16.mxu0 0
        %1008 = vmatpush1.bf16.msra.mxu0 0
        %1009 = vmatprep.subr.bf16.mxu0 0
        %1010 = vmatpush1.bf16.msra.mxu0 0
        %1011 = vmatprep.subr.bf16.mxu0 0
        %1012 = vmatpush1.bf16.msra.mxu0 0
        %1013 = vmatprep.mubr.bf16.mxu0 0
        %1014 = vmatmul.mubr.bf16.gmra.mrb[0].mxu0 %v973
        %v1015 = vpop.f32.mrb[0].mxu0
        %v1016 = vadd.f32 0.0, %v1015
        %v1017 = vpop.f32.mrb[0].mxu0
        %v1018 = vpop.f32.mrb[0].mxu0
        %v1019 = vadd.f32 0.0, %v1018
        %v1020 = vpop.f32.mrb[0].mxu0
        %1021 = vmatprep.mubr.bf16.mxu0 0
        %1022 = vmatmul.mubr.bf16.gmra.mrb[0].mxu0 %v976
        %v1023 = vpop.f32.mrb[0].mxu0
        %v1024 = vadd.f32 0.0, %v1023
        %v1025 = vpop.f32.mrb[0].mxu0
        %v1026 = vpop.f32.mrb[0].mxu0
        %v1027 = vadd.f32 0.0, %v1026
        %v1028 = vpop.f32.mrb[0].mxu0
        %1029 = vdwg.mxu0
        %v1031 = vsel %vm318, %v961, 0
        %v1034 = vsel %vm318, %v962, 0
        %v1037 = vsel %vm325, %v963, 0
        %1039 = vmatprep.subr.bf16.mxu0 0
        %1040 = vmatpush1.bf16.msra.mxu0 %v1037
        %1041 = vmatprep.subr.bf16.mxu0 0
        %1042 = vmatpush1.bf16.msra.mxu0 0
        %1043 = vmatprep.subr.bf16.mxu0 0
        %1044 = vmatpush1.bf16.msra.mxu0 0
        %1045 = vmatprep.subr.bf16.mxu0 0
        %1046 = vmatpush1.bf16.msra.mxu0 0
        %1047 = vmatprep.subr.bf16.mxu0 0
        %1048 = vmatpush1.bf16.msra.mxu0 0
        %1049 = vmatprep.subr.bf16.mxu0 0
        %1050 = vmatpush1.bf16.msra.mxu0 0
        %1051 = vmatprep.subr.bf16.mxu0 0
        %1052 = vmatpush1.bf16.msra.mxu0 0
        %1053 = vmatprep.subr.bf16.mxu0 0
        %1054 = vmatpush1.bf16.msra.mxu0 0
        %1055 = vmatprep.subr.bf16.mxu0 0
        %1056 = vmatpush1.bf16.msra.mxu0 0
        %1057 = vmatprep.subr.bf16.mxu0 0
        %1058 = vmatpush1.bf16.msra.mxu0 0
        %1059 = vmatprep.subr.bf16.mxu0 0
        %1060 = vmatpush1.bf16.msra.mxu0 0
        %1061 = vmatprep.subr.bf16.mxu0 0
        %1062 = vmatpush1.bf16.msra.mxu0 0
        %1063 = vmatprep.subr.bf16.mxu0 0
        %1064 = vmatpush1.bf16.msra.mxu0 0
        %1065 = vmatprep.subr.bf16.mxu0 0
        %1066 = vmatpush1.bf16.msra.mxu0 0
        %1067 = vmatprep.subr.bf16.mxu0 0
        %1068 = vmatpush1.bf16.msra.mxu0 0
        %1069 = vmatprep.subr.bf16.mxu0 0
        %1070 = vmatpush1.bf16.msra.mxu0 0
        %1071 = vmatprep.mubr.bf16.mxu0 0
        %1072 = vmatmul.mubr.bf16.gmra.mrb[0].mxu0 %v1031
        %v1073 = vpop.f32.mrb[0].mxu0
        %v1074 = vadd.f32 %v1016, %v1073
        %v1075 = vpop.f32.mrb[0].mxu0
        %v1076 = vpop.f32.mrb[0].mxu0
        %v1077 = vadd.f32 %v1019, %v1076
        %v1078 = vpop.f32.mrb[0].mxu0
        %1079 = vmatprep.mubr.bf16.mxu0 0
        %1080 = vmatmul.mubr.bf16.gmra.mrb[0].mxu0 %v1034
        %v1081 = vpop.f32.mrb[0].mxu0
        %v1082 = vadd.f32 %v1024, %v1081
        %v1083 = vpop.f32.mrb[0].mxu0
        %v1084 = vpop.f32.mrb[0].mxu0
        %v1085 = vadd.f32 %v1027, %v1084
        %v1086 = vpop.f32.mrb[0].mxu0
        %1087 = vdwg.mxu0
        %v1088 = vld [vmem:[%s260 + $0x1] sm:$0xff]
        %v1089 = vld [vmem:[%s260 + $0x11] sm:$0xff]
        %v1090 = vld [vmem:[%s260 + $0x21] sm:$0xff]
        %v1091 = vld [vmem:[%s260 + $0x31] sm:$0xff]
        %v1092 = vpack.c.bf16 %v1089, %v1088
        %v1093 = vpack.c.bf16 %v1091, %v1090
        %v1094 = vld [vmem:[%s443] sm:$0x3]
        %v1096 = vsel %vm318, %v1092, 0
        %v1099 = vsel %vm318, %v1093, 0
        %v1102 = vsel %vm325, %v1094, 0
        %1104 = vmatprep.subr.bf16.mxu0 0
        %1105 = vmatpush1.bf16.msra.mxu0 %v1102
        %1106 = vmatprep.subr.bf16.mxu0 0
        %1107 = vmatpush1.bf16.msra.mxu0 0
        %1108 = vmatprep.subr.bf16.mxu0 0
        %1109 = vmatpush1.bf16.msra.mxu0 0
        %1110 = vmatprep.subr.bf16.mxu0 0
        %1111 = vmatpush1.bf16.msra.mxu0 0
        %1112 = vmatprep.subr.bf16.mxu0 0
        %1113 = vmatpush1.bf16.msra.mxu0 0
        %1114 = vmatprep.subr.bf16.mxu0 0
        %1115 = vmatpush1.bf16.msra.mxu0 0
        %1116 = vmatprep.subr.bf16.mxu0 0
        %1117 = vmatpush1.bf16.msra.mxu0 0
        %1118 = vmatprep.subr.bf16.mxu0 0
        %1119 = vmatpush1.bf16.msra.mxu0 0
        %1120 = vmatprep.subr.bf16.mxu0 0
        %1121 = vmatpush1.bf16.msra.mxu0 0
        %1122 = vmatprep.subr.bf16.mxu0 0
        %1123 = vmatpush1.bf16.msra.mxu0 0
        %1124 = vmatprep.subr.bf16.mxu0 0
        %1125 = vmatpush1.bf16.msra.mxu0 0
        %1126 = vmatprep.subr.bf16.mxu0 0
        %1127 = vmatpush1.bf16.msra.mxu0 0
        %1128 = vmatprep.subr.bf16.mxu0 0
        %1129 = vmatpush1.bf16.msra.mxu0 0
        %1130 = vmatprep.subr.bf16.mxu0 0
        %1131 = vmatpush1.bf16.msra.mxu0 0
        %1132 = vmatprep.subr.bf16.mxu0 0
        %1133 = vmatpush1.bf16.msra.mxu0 0
        %1134 = vmatprep.subr.bf16.mxu0 0
        %1135 = vmatpush1.bf16.msra.mxu0 0
        %1136 = vmatprep.mubr.bf16.mxu0 0
        %1137 = vmatmul.mubr.bf16.gmra.mrb[0].mxu0 %v1096
        %v1138 = vpop.f32.mrb[0].mxu0
        %v1139 = vadd.f32 0.0, %v1138
        %v1140 = vpop.f32.mrb[0].mxu0
        %v1141 = vpop.f32.mrb[0].mxu0
        %v1142 = vadd.f32 0.0, %v1141
        %v1143 = vpop.f32.mrb[0].mxu0
        %1144 = vmatprep.mubr.bf16.mxu0 0
        %1145 = vmatmul.mubr.bf16.gmra.mrb[0].mxu0 %v1099
        %v1146 = vpop.f32.mrb[0].mxu0
        %v1147 = vadd.f32 0.0, %v1146
        %v1148 = vpop.f32.mrb[0].mxu0
        %v1149 = vpop.f32.mrb[0].mxu0
        %v1150 = vadd.f32 0.0, %v1149
        %v1151 = vpop.f32.mrb[0].mxu0
        %1152 = vdwg.mxu0
        %v1153 = vadd.f32 %v1074, %v1139
        %v1154 = vadd.f32 %v1077, %v1142
        %v1155 = vadd.f32 %v1082, %v1147
        %v1156 = vadd.f32 %v1085, %v1150
        %v1157 = vld [vmem:[%s649] sm:$0xff]
        %v1158 = vld [vmem:[%s649 + $0x10] sm:$0xff]
        %v1159 = vld [vmem:[%s649 + $0x20] sm:$0xff]
        %v1160 = vld [vmem:[%s649 + $0x30] sm:$0xff]
        %v1161 = vpack.c.bf16 %v1158, %v1157
        %v1162 = vpack.c.bf16 %v1160, %v1159
        %v1163 = vld [vmem:[%s514] sm:$0x3]
        %v1165 = vsel %vm318, %v1161, 0
        %v1168 = vsel %vm318, %v1162, 0
        %v1171 = vsel %vm325, %v1163, 0
        %1173 = vmatprep.subr.bf16.mxu0 0
        %1174 = vmatpush1.bf16.msra.mxu0 %v1171
        %1175 = vmatprep.subr.bf16.mxu0 0
        %1176 = vmatpush1.bf16.msra.mxu0 0
        %1177 = vmatprep.subr.bf16.mxu0 0
        %1178 = vmatpush1.bf16.msra.mxu0 0
        %1179 = vmatprep.subr.bf16.mxu0 0
        %1180 = vmatpush1.bf16.msra.mxu0 0
        %1181 = vmatprep.subr.bf16.mxu0 0
        %1182 = vmatpush1.bf16.msra.mxu0 0
        %1183 = vmatprep.subr.bf16.mxu0 0
        %1184 = vmatpush1.bf16.msra.mxu0 0
        %1185 = vmatprep.subr.bf16.mxu0 0
        %1186 = vmatpush1.bf16.msra.mxu0 0
        %1187 = vmatprep.subr.bf16.mxu0 0
        %1188 = vmatpush1.bf16.msra.mxu0 0
        %1189 = vmatprep.subr.bf16.mxu0 0
        %1190 = vmatpush1.bf16.msra.mxu0 0
        %1191 = vmatprep.subr.bf16.mxu0 0
        %1192 = vmatpush1.bf16.msra.mxu0 0
        %1193 = vmatprep.subr.bf16.mxu0 0
        %1194 = vmatpush1.bf16.msra.mxu0 0
        %1195 = vmatprep.subr.bf16.mxu0 0
        %1196 = vmatpush1.bf16.msra.mxu0 0
        %1197 = vmatprep.subr.bf16.mxu0 0
        %1198 = vmatpush1.bf16.msra.mxu0 0
        %1199 = vmatprep.subr.bf16.mxu0 0
        %1200 = vmatpush1.bf16.msra.mxu0 0
        %1201 = vmatprep.subr.bf16.mxu0 0
        %1202 = vmatpush1.bf16.msra.mxu0 0
        %1203 = vmatprep.subr.bf16.mxu0 0
        %1204 = vmatpush1.bf16.msra.mxu0 0
        %1205 = vmatprep.mubr.bf16.mxu0 0
        %1206 = vmatmul.mubr.bf16.gmra.mrb[0].mxu0 %v1165
        %v1207 = vpop.f32.mrb[0].mxu0
        %v1208 = vadd.f32 0.0, %v1207
        %v1209 = vpop.f32.mrb[0].mxu0
        %v1210 = vpop.f32.mrb[0].mxu0
        %v1211 = vadd.f32 0.0, %v1210
        %v1212 = vpop.f32.mrb[0].mxu0
        %1213 = vmatprep.mubr.bf16.mxu0 0
        %1214 = vmatmul.mubr.bf16.gmra.mrb[0].mxu0 %v1168
        %v1215 = vpop.f32.mrb[0].mxu0
        %v1216 = vadd.f32 0.0, %v1215
        %v1217 = vpop.f32.mrb[0].mxu0
        %v1218 = vpop.f32.mrb[0].mxu0
        %v1219 = vadd.f32 0.0, %v1218
        %v1220 = vpop.f32.mrb[0].mxu0
        %1221 = vdwg.mxu0
        %v1222 = vadd.f32 %v1153, %v1208
        %v1223 = vadd.f32 %v1154, %v1211
        %v1224 = vadd.f32 %v1155, %v1216
        %v1225 = vadd.f32 %v1156, %v1219
        %s1226 = scalar_lea.vmem %s260, 560
        %v1227 = vld [vmem:[%s1226] sm:$0xff]
        %v1228 = vld [vmem:[%s1226 + $0x10] sm:$0xff]
        %v1229 = vld [vmem:[%s1226 + $0x20] sm:$0xff]
        %v1230 = vld [vmem:[%s1226 + $0x30] sm:$0xff]
        %v1231 = vpack.c.bf16 %v1228, %v1227
        %v1232 = vpack.c.bf16 %v1230, %v1229
        %v1233 = vld [vmem:[%s585] sm:$0x3]
        %v1235 = vsel %vm318, %v1231, 0
        %v1238 = vsel %vm318, %v1232, 0
        %v1241 = vsel %vm325, %v1233, 0
        %1243 = vmatprep.subr.bf16.mxu0 0
        %1244 = vmatpush1.bf16.msra.mxu0 %v1241
        %1245 = vmatprep.subr.bf16.mxu0 0
        %1246 = vmatpush1.bf16.msra.mxu0 0
        %1247 = vmatprep.subr.bf16.mxu0 0
        %1248 = vmatpush1.bf16.msra.mxu0 0
        %1249 = vmatprep.subr.bf16.mxu0 0
        %1250 = vmatpush1.bf16.msra.mxu0 0
        %1251 = vmatprep.subr.bf16.mxu0 0
        %1252 = vmatpush1.bf16.msra.mxu0 0
        %1253 = vmatprep.subr.bf16.mxu0 0
        %1254 = vmatpush1.bf16.msra.mxu0 0
        %1255 = vmatprep.subr.bf16.mxu0 0
        %1256 = vmatpush1.bf16.msra.mxu0 0
        %1257 = vmatprep.subr.bf16.mxu0 0
        %1258 = vmatpush1.bf16.msra.mxu0 0
        %1259 = vmatprep.subr.bf16.mxu0 0
        %1260 = vmatpush1.bf16.msra.mxu0 0
        %1261 = vmatprep.subr.bf16.mxu0 0
        %1262 = vmatpush1.bf16.msra.mxu0 0
        %1263 = vmatprep.subr.bf16.mxu0 0
        %1264 = vmatpush1.bf16.msra.mxu0 0
        %1265 = vmatprep.subr.bf16.mxu0 0
        %1266 = vmatpush1.bf16.msra.mxu0 0
        %1267 = vmatprep.subr.bf16.mxu0 0
        %1268 = vmatpush1.bf16.msra.mxu0 0
        %1269 = vmatprep.subr.bf16.mxu0 0
        %1270 = vmatpush1.bf16.msra.mxu0 0
        %1271 = vmatprep.subr.bf16.mxu0 0
        %1272 = vmatpush1.bf16.msra.mxu0 0
        %1273 = vmatprep.subr.bf16.mxu0 0
        %1274 = vmatpush1.bf16.msra.mxu0 0
        %1275 = vmatprep.mubr.bf16.mxu0 0
        %1276 = vmatmul.mubr.bf16.gmra.mrb[0].mxu0 %v1235
        %v1277 = vpop.f32.mrb[0].mxu0
        %v1278 = vadd.f32 0.0, %v1277
        %v1279 = vpop.f32.mrb[0].mxu0
        %v1280 = vpop.f32.mrb[0].mxu0
        %v1281 = vadd.f32 0.0, %v1280
        %v1282 = vpop.f32.mrb[0].mxu0
        %1283 = vmatprep.mubr.bf16.mxu0 0
        %1284 = vmatmul.mubr.bf16.gmra.mrb[0].mxu0 %v1238
        %v1285 = vpop.f32.mrb[0].mxu0
        %v1286 = vadd.f32 0.0, %v1285
        %v1287 = vpop.f32.mrb[0].mxu0
        %v1288 = vpop.f32.mrb[0].mxu0
        %v1289 = vadd.f32 0.0, %v1288
        %v1290 = vpop.f32.mrb[0].mxu0
        %1291 = vdwg.mxu0
        %v1292 = vadd.f32 %v1222, %v1278
        %v1293 = vadd.f32 %v1223, %v1281
        %v1294 = vadd.f32 %v1224, %v1286
        %v1295 = vadd.f32 %v1225, %v1289
        %v1296 = vld [vmem:[%s507 + $0x1] sm:$0xff]
        %v1297 = vld [vmem:[%s507 + $0x11] sm:$0xff]
        %v1298 = vld [vmem:[%s507 + $0x21] sm:$0xff]
        %v1299 = vld [vmem:[%s507 + $0x31] sm:$0xff]
        %v1300 = vpack.c.bf16 %v1297, %v1296
        %v1301 = vpack.c.bf16 %v1299, %v1298
        %v1302 = vld [vmem:[%s656] sm:$0x3]
        %v1304 = vsel %vm318, %v1300, 0
        %v1307 = vsel %vm318, %v1301, 0
        %v1310 = vsel %vm325, %v1302, 0
        %1312 = vmatprep.subr.bf16.mxu0 0
        %1313 = vmatpush1.bf16.msra.mxu0 %v1310
        %1314 = vmatprep.subr.bf16.mxu0 0
        %1315 = vmatpush1.bf16.msra.mxu0 0
        %1316 = vmatprep.subr.bf16.mxu0 0
        %1317 = vmatpush1.bf16.msra.mxu0 0
        %1318 = vmatprep.subr.bf16.mxu0 0
        %1319 = vmatpush1.bf16.msra.mxu0 0
        %1320 = vmatprep.subr.bf16.mxu0 0
        %1321 = vmatpush1.bf16.msra.mxu0 0
        %1322 = vmatprep.subr.bf16.mxu0 0
        %1323 = vmatpush1.bf16.msra.mxu0 0
        %1324 = vmatprep.subr.bf16.mxu0 0
        %1325 = vmatpush1.bf16.msra.mxu0 0
        %1326 = vmatprep.subr.bf16.mxu0 0
        %1327 = vmatpush1.bf16.msra.mxu0 0
        %1328 = vmatprep.subr.bf16.mxu0 0
        %1329 = vmatpush1.bf16.msra.mxu0 0
        %1330 = vmatprep.subr.bf16.mxu0 0
        %1331 = vmatpush1.bf16.msra.mxu0 0
        %1332 = vmatprep.subr.bf16.mxu0 0
        %1333 = vmatpush1.bf16.msra.mxu0 0
        %1334 = vmatprep.subr.bf16.mxu0 0
        %1335 = vmatpush1.bf16.msra.mxu0 0
        %1336 = vmatprep.subr.bf16.mxu0 0
        %1337 = vmatpush1.bf16.msra.mxu0 0
        %1338 = vmatprep.subr.bf16.mxu0 0
        %1339 = vmatpush1.bf16.msra.mxu0 0
        %1340 = vmatprep.subr.bf16.mxu0 0
        %1341 = vmatpush1.bf16.msra.mxu0 0
        %1342 = vmatprep.subr.bf16.mxu0 0
        %1343 = vmatpush1.bf16.msra.mxu0 0
        %1344 = vmatprep.mubr.bf16.mxu0 0
        %1345 = vmatmul.mubr.bf16.gmra.mrb[0].mxu0 %v1304
        %v1346 = vpop.f32.mrb[0].mxu0
        %v1347 = vadd.f32 0.0, %v1346
        %v1348 = vpop.f32.mrb[0].mxu0
        %v1349 = vpop.f32.mrb[0].mxu0
        %v1350 = vadd.f32 0.0, %v1349
        %v1351 = vpop.f32.mrb[0].mxu0
        %1352 = vmatprep.mubr.bf16.mxu0 0
        %1353 = vmatmul.mubr.bf16.gmra.mrb[0].mxu0 %v1307
        %v1354 = vpop.f32.mrb[0].mxu0
        %v1355 = vadd.f32 0.0, %v1354
        %v1356 = vpop.f32.mrb[0].mxu0
        %v1357 = vpop.f32.mrb[0].mxu0
        %v1358 = vadd.f32 0.0, %v1357
        %v1359 = vpop.f32.mrb[0].mxu0
        %1360 = vdwg.mxu0
        %v1361 = vadd.f32 %v1292, %v1347
        %v1362 = vadd.f32 %v1293, %v1350
        %v1363 = vadd.f32 %v1294, %v1355
        %v1364 = vadd.f32 %v1295, %v1358
        %v1365 = vld [vmem:[%s862] sm:$0xff]
        %v1366 = vld [vmem:[%s862 + $0x10] sm:$0xff]
        %v1367 = vld [vmem:[%s862 + $0x20] sm:$0xff]
        %v1368 = vld [vmem:[%s862 + $0x30] sm:$0xff]
        %v1369 = vpack.c.bf16 %v1366, %v1365
        %v1370 = vpack.c.bf16 %v1368, %v1367
        %v1371 = vld [vmem:[%s727] sm:$0x3]
        %v1373 = vsel %vm318, %v1369, 0
        %v1376 = vsel %vm318, %v1370, 0
        %v1379 = vsel %vm325, %v1371, 0
        %1381 = vmatprep.subr.bf16.mxu0 0
        %1382 = vmatpush1.bf16.msra.mxu0 %v1379
        %1383 = vmatprep.subr.bf16.mxu0 0
        %1384 = vmatpush1.bf16.msra.mxu0 0
        %1385 = vmatprep.subr.bf16.mxu0 0
        %1386 = vmatpush1.bf16.msra.mxu0 0
        %1387 = vmatprep.subr.bf16.mxu0 0
        %1388 = vmatpush1.bf16.msra.mxu0 0
        %1389 = vmatprep.subr.bf16.mxu0 0
        %1390 = vmatpush1.bf16.msra.mxu0 0
        %1391 = vmatprep.subr.bf16.mxu0 0
        %1392 = vmatpush1.bf16.msra.mxu0 0
        %1393 = vmatprep.subr.bf16.mxu0 0
        %1394 = vmatpush1.bf16.msra.mxu0 0
        %1395 = vmatprep.subr.bf16.mxu0 0
        %1396 = vmatpush1.bf16.msra.mxu0 0
        %1397 = vmatprep.subr.bf16.mxu0 0
        %1398 = vmatpush1.bf16.msra.mxu0 0
        %1399 = vmatprep.subr.bf16.mxu0 0
        %1400 = vmatpush1.bf16.msra.mxu0 0
        %1401 = vmatprep.subr.bf16.mxu0 0
        %1402 = vmatpush1.bf16.msra.mxu0 0
        %1403 = vmatprep.subr.bf16.mxu0 0
        %1404 = vmatpush1.bf16.msra.mxu0 0
        %1405 = vmatprep.subr.bf16.mxu0 0
        %1406 = vmatpush1.bf16.msra.mxu0 0
        %1407 = vmatprep.subr.bf16.mxu0 0
        %1408 = vmatpush1.bf16.msra.mxu0 0
        %1409 = vmatprep.subr.bf16.mxu0 0
        %1410 = vmatpush1.bf16.msra.mxu0 0
        %1411 = vmatprep.subr.bf16.mxu0 0
        %1412 = vmatpush1.bf16.msra.mxu0 0
        %1413 = vmatprep.mubr.bf16.mxu0 0
        %1414 = vmatmul.mubr.bf16.gmra.mrb[0].mxu0 %v1373
        %v1415 = vpop.f32.mrb[0].mxu0
        %v1416 = vadd.f32 0.0, %v1415
        %v1417 = vpop.f32.mrb[0].mxu0
        %v1418 = vpop.f32.mrb[0].mxu0
        %v1419 = vadd.f32 0.0, %v1418
        %v1420 = vpop.f32.mrb[0].mxu0
        %1421 = vmatprep.mubr.bf16.mxu0 0
        %1422 = vmatmul.mubr.bf16.gmra.mrb[0].mxu0 %v1376
        %v1423 = vpop.f32.mrb[0].mxu0
        %v1424 = vadd.f32 0.0, %v1423
        %v1425 = vpop.f32.mrb[0].mxu0
        %v1426 = vpop.f32.mrb[0].mxu0
        %v1427 = vadd.f32 0.0, %v1426
        %v1428 = vpop.f32.mrb[0].mxu0
        %1429 = vdwg.mxu0
        %v1430 = vadd.f32 %v1361, %v1416
        %v1431 = vadd.f32 %v1362, %v1419
        %v1432 = vadd.f32 %v1363, %v1424
        %v1433 = vadd.f32 %v1364, %v1427
        %s1434 = scalar_lea.vmem %s260, 880
        %v1435 = vld [vmem:[%s1434] sm:$0xff]
        %v1436 = vld [vmem:[%s1434 + $0x10] sm:$0xff]
        %v1437 = vld [vmem:[%s1434 + $0x20] sm:$0xff]
        %v1438 = vld [vmem:[%s1434 + $0x30] sm:$0xff]
        %v1439 = vpack.c.bf16 %v1436, %v1435
        %v1440 = vpack.c.bf16 %v1438, %v1437
        %v1441 = vld [vmem:[%s798] sm:$0x3]
        %v1443 = vsel %vm318, %v1439, 0
        %v1446 = vsel %vm318, %v1440, 0
        %v1449 = vsel %vm325, %v1441, 0
        %1451 = vmatprep.subr.bf16.mxu0 0
        %1452 = vmatpush1.bf16.msra.mxu0 %v1449
        %1453 = vmatprep.subr.bf16.mxu0 0
        %1454 = vmatpush1.bf16.msra.mxu0 0
        %1455 = vmatprep.subr.bf16.mxu0 0
        %1456 = vmatpush1.bf16.msra.mxu0 0
        %1457 = vmatprep.subr.bf16.mxu0 0
        %1458 = vmatpush1.bf16.msra.mxu0 0
        %1459 = vmatprep.subr.bf16.mxu0 0
        %1460 = vmatpush1.bf16.msra.mxu0 0
        %1461 = vmatprep.subr.bf16.mxu0 0
        %1462 = vmatpush1.bf16.msra.mxu0 0
        %1463 = vmatprep.subr.bf16.mxu0 0
        %1464 = vmatpush1.bf16.msra.mxu0 0
        %1465 = vmatprep.subr.bf16.mxu0 0
        %1466 = vmatpush1.bf16.msra.mxu0 0
        %1467 = vmatprep.subr.bf16.mxu0 0
        %1468 = vmatpush1.bf16.msra.mxu0 0
        %1469 = vmatprep.subr.bf16.mxu0 0
        %1470 = vmatpush1.bf16.msra.mxu0 0
        %1471 = vmatprep.subr.bf16.mxu0 0
        %1472 = vmatpush1.bf16.msra.mxu0 0
        %1473 = vmatprep.subr.bf16.mxu0 0
        %1474 = vmatpush1.bf16.msra.mxu0 0
        %1475 = vmatprep.subr.bf16.mxu0 0
        %1476 = vmatpush1.bf16.msra.mxu0 0
        %1477 = vmatprep.subr.bf16.mxu0 0
        %1478 = vmatpush1.bf16.msra.mxu0 0
        %1479 = vmatprep.subr.bf16.mxu0 0
        %1480 = vmatpush1.bf16.msra.mxu0 0
        %1481 = vmatprep.subr.bf16.mxu0 0
        %1482 = vmatpush1.bf16.msra.mxu0 0
        %1483 = vmatprep.mubr.bf16.mxu0 0
        %1484 = vmatmul.mubr.bf16.gmra.mrb[0].mxu0 %v1443
        %v1485 = vpop.f32.mrb[0].mxu0
        %v1486 = vadd.f32 0.0, %v1485
        %v1487 = vpop.f32.mrb[0].mxu0
        %v1488 = vpop.f32.mrb[0].mxu0
        %v1489 = vadd.f32 0.0, %v1488
        %v1490 = vpop.f32.mrb[0].mxu0
        %1491 = vmatprep.mubr.bf16.mxu0 0
        %1492 = vmatmul.mubr.bf16.gmra.mrb[0].mxu0 %v1446
        %v1493 = vpop.f32.mrb[0].mxu0
        %v1494 = vadd.f32 0.0, %v1493
        %v1495 = vpop.f32.mrb[0].mxu0
        %v1496 = vpop.f32.mrb[0].mxu0
        %v1497 = vadd.f32 0.0, %v1496
        %v1498 = vpop.f32.mrb[0].mxu0
        %1499 = vdwg.mxu0
        %v1500 = vadd.f32 %v1430, %v1486
        %v1501 = vadd.f32 %v1431, %v1489
        %v1502 = vadd.f32 %v1432, %v1494
        %v1503 = vadd.f32 %v1433, %v1497
        %v1504 = vld [vmem:[%s720 + $0x1] sm:$0xff]
        %v1505 = vld [vmem:[%s720 + $0x11] sm:$0xff]
        %v1506 = vld [vmem:[%s720 + $0x21] sm:$0xff]
        %v1507 = vld [vmem:[%s720 + $0x31] sm:$0xff]
        %v1508 = vpack.c.bf16 %v1505, %v1504
        %v1509 = vpack.c.bf16 %v1507, %v1506
        %v1510 = vld [vmem:[%s869] sm:$0x3]
        %v1512 = vsel %vm318, %v1508, 0
        %v1515 = vsel %vm318, %v1509, 0
        %v1518 = vsel %vm325, %v1510, 0
        %1520 = vmatprep.subr.bf16.mxu0 0
        %1521 = vmatpush1.bf16.msra.mxu0 %v1518
        %1522 = vmatprep.subr.bf16.mxu0 0
        %1523 = vmatpush1.bf16.msra.mxu0 0
        %1524 = vmatprep.subr.bf16.mxu0 0
        %1525 = vmatpush1.bf16.msra.mxu0 0
        %1526 = vmatprep.subr.bf16.mxu0 0
        %1527 = vmatpush1.bf16.msra.mxu0 0
        %1528 = vmatprep.subr.bf16.mxu0 0
        %1529 = vmatpush1.bf16.msra.mxu0 0
        %1530 = vmatprep.subr.bf16.mxu0 0
        %1531 = vmatpush1.bf16.msra.mxu0 0
        %1532 = vmatprep.subr.bf16.mxu0 0
        %1533 = vmatpush1.bf16.msra.mxu0 0
        %1534 = vmatprep.subr.bf16.mxu0 0
        %1535 = vmatpush1.bf16.msra.mxu0 0
        %1536 = vmatprep.subr.bf16.mxu0 0
        %1537 = vmatpush1.bf16.msra.mxu0 0
        %1538 = vmatprep.subr.bf16.mxu0 0
        %1539 = vmatpush1.bf16.msra.mxu0 0
        %1540 = vmatprep.subr.bf16.mxu0 0
        %1541 = vmatpush1.bf16.msra.mxu0 0
        %1542 = vmatprep.subr.bf16.mxu0 0
        %1543 = vmatpush1.bf16.msra.mxu0 0
        %1544 = vmatprep.subr.bf16.mxu0 0
        %1545 = vmatpush1.bf16.msra.mxu0 0
        %1546 = vmatprep.subr.bf16.mxu0 0
        %1547 = vmatpush1.bf16.msra.mxu0 0
        %1548 = vmatprep.subr.bf16.mxu0 0
        %1549 = vmatpush1.bf16.msra.mxu0 0
        %1550 = vmatprep.subr.bf16.mxu0 0
        %1551 = vmatpush1.bf16.msra.mxu0 0
        %1552 = vmatprep.mubr.bf16.mxu0 0
        %1553 = vmatmul.mubr.bf16.gmra.mrb[0].mxu0 %v1512
        %v1554 = vpop.f32.mrb[0].mxu0
        %v1555 = vadd.f32 0.0, %v1554
        %v1556 = vpop.f32.mrb[0].mxu0
        %v1557 = vpop.f32.mrb[0].mxu0
        %v1558 = vadd.f32 0.0, %v1557
        %v1559 = vpop.f32.mrb[0].mxu0
        %1560 = vmatprep.mubr.bf16.mxu0 0
        %1561 = vmatmul.mubr.bf16.gmra.mrb[0].mxu0 %v1515
        %v1562 = vpop.f32.mrb[0].mxu0
        %v1563 = vadd.f32 0.0, %v1562
        %v1564 = vpop.f32.mrb[0].mxu0
        %v1565 = vpop.f32.mrb[0].mxu0
        %v1566 = vadd.f32 0.0, %v1565
        %v1567 = vpop.f32.mrb[0].mxu0
        %1568 = vdwg.mxu0
        %v1569 = vadd.f32 %v1500, %v1555
        %v1570 = vadd.f32 %v1501, %v1558
        %v1571 = vadd.f32 %v1502, %v1563
        %v1572 = vadd.f32 %v1503, %v1566
        %v1573 = vld [vmem:[%s2] sm:$0x1]
        %v1575 = vlaneseq
        %v1576 = vshrl.u32 %v1575, 7
        %v1577 = vsub.s32 0, %v1576
        %v1578 = vrot.slane %v1573, %v1577
        %v1580 = vadd.f32 %v1569, %v1578
        %v1581 = vadd.f32 %v1570, %v1578
        %v1582 = vadd.f32 %v1571, %v1578
        %v1583 = vadd.f32 %v1572, %v1578
        %s1584 = scalar_lea.vmem %s248, 32 [#allocation3]
        %1585 = vst [vmem:[%s1584] sm:$0xff] %v1580
        %1586 = vst [vmem:[%s1584 + $0x8] sm:$0xff] %v1581
        %1587 = vst [vmem:[%s1584 + $0x10] sm:$0xff] %v1582
        %1588 = vst [vmem:[%s1584 + $0x18] sm:$0xff] %v1583
        %v1589 = vmax.f32 %v1580, 0.0
        %v1590 = vmax.f32 %v1581, 0.0
        %v1591 = vmax.f32 %v1582, 0.0
        %v1592 = vmax.f32 %v1583, 0.0
        %s1593 = scalar_lea.vmem [#allocation2], 96
        %1594 = vst [vmem:[%s1593 + $0x1] sm:$0xf] %v1589
        %1595 = vst [vmem:[%s1593 + $0x11] sm:$0xf] %v1590
        %1596 = vst [vmem:[%s1593 + $0x21] sm:$0xf] %v1591
        %1597 = vst [vmem:[%s1593 + $0x31] sm:$0xf] %v1592
        %v1598 = vld [vmem:[%s720] sm:$0xff]
        %v1599 = vld [vmem:[%s720 + $0x10] sm:$0xff]
        %v1600 = vld [vmem:[%s720 + $0x20] sm:$0xff]
        %v1601 = vld [vmem:[%s720 + $0x30] sm:$0xff]
        %v1602 = vpack.c.bf16 %v1599, %v1598
        %v1603 = vpack.c.bf16 %v1601, %v1600
        %v1604 = vld [vmem:[%s1] sm:$0x3]
        %v1605 = vld [vmem:[%s791] sm:$0xff]
        %v1606 = vld [vmem:[%s791 + $0x10] sm:$0xff]
        %v1607 = vld [vmem:[%s791 + $0x20] sm:$0xff]
        %v1608 = vld [vmem:[%s791 + $0x30] sm:$0xff]
        %v1609 = vpack.c.bf16 %v1606, %v1605
        %v1610 = vpack.c.bf16 %v1608, %v1607
        %v1611 = vld [vmem:[%s316] sm:$0x3]
        %v1613 = vsel %vm318, %v1609, 0
        %v1616 = vsel %vm318, %v1610, 0
        %v1619 = vsel %vm325, %v1611, 0
        %1621 = vmatprep.subr.bf16.mxu0 0
        %1622 = vmatpush1.bf16.msra.mxu0 %v1619
        %1623 = vmatprep.subr.bf16.mxu0 0
        %1624 = vmatpush1.bf16.msra.mxu0 0
        %1625 = vmatprep.subr.bf16.mxu0 0
        %1626 = vmatpush1.bf16.msra.mxu0 0
        %1627 = vmatprep.subr.bf16.mxu0 0
        %1628 = vmatpush1.bf16.msra.mxu0 0
        %1629 = vmatprep.subr.bf16.mxu0 0
        %1630 = vmatpush1.bf16.msra.mxu0 0
        %1631 = vmatprep.subr.bf16.mxu0 0
        %1632 = vmatpush1.bf16.msra.mxu0 0
        %1633 = vmatprep.subr.bf16.mxu0 0
        %1634 = vmatpush1.bf16.msra.mxu0 0
        %1635 = vmatprep.subr.bf16.mxu0 0
        %1636 = vmatpush1.bf16.msra.mxu0 0
        %1637 = vmatprep.subr.bf16.mxu0 0
        %1638 = vmatpush1.bf16.msra.mxu0 0
        %1639 = vmatprep.subr.bf16.mxu0 0
        %1640 = vmatpush1.bf16.msra.mxu0 0
        %1641 = vmatprep.subr.bf16.mxu0 0
        %1642 = vmatpush1.bf16.msra.mxu0 0
        %1643 = vmatprep.subr.bf16.mxu0 0
        %1644 = vmatpush1.bf16.msra.mxu0 0
        %1645 = vmatprep.subr.bf16.mxu0 0
        %1646 = vmatpush1.bf16.msra.mxu0 0
        %1647 = vmatprep.subr.bf16.mxu0 0
        %1648 = vmatpush1.bf16.msra.mxu0 0
        %1649 = vmatprep.subr.bf16.mxu0 0
        %1650 = vmatpush1.bf16.msra.mxu0 0
        %1651 = vmatprep.subr.bf16.mxu0 0
        %1652 = vmatpush1.bf16.msra.mxu0 0
        %1653 = vmatprep.mubr.bf16.mxu0 0
        %1654 = vmatmul.mubr.bf16.gmra.mrb[0].mxu0 %v1613
        %v1655 = vpop.f32.mrb[0].mxu0
        %v1656 = vadd.f32 0.0, %v1655
        %v1657 = vpop.f32.mrb[0].mxu0
        %v1658 = vpop.f32.mrb[0].mxu0
        %v1659 = vadd.f32 0.0, %v1658
        %v1660 = vpop.f32.mrb[0].mxu0
        %1661 = vmatprep.mubr.bf16.mxu0 0
        %1662 = vmatmul.mubr.bf16.gmra.mrb[0].mxu0 %v1616
        %v1663 = vpop.f32.mrb[0].mxu0
        %v1664 = vadd.f32 0.0, %v1663
        %v1665 = vpop.f32.mrb[0].mxu0
        %v1666 = vpop.f32.mrb[0].mxu0
        %v1667 = vadd.f32 0.0, %v1666
        %v1668 = vpop.f32.mrb[0].mxu0
        %1669 = vdwg.mxu0
        %v1671 = vsel %vm318, %v1602, 0
        %v1674 = vsel %vm318, %v1603, 0
        %v1677 = vsel %vm325, %v1604, 0
        %1679 = vmatprep.subr.bf16.mxu0 0
        %1680 = vmatpush1.bf16.msra.mxu0 %v1677
        %1681 = vmatprep.subr.bf16.mxu0 0
        %1682 = vmatpush1.bf16.msra.mxu0 0
        %1683 = vmatprep.subr.bf16.mxu0 0
        %1684 = vmatpush1.bf16.msra.mxu0 0
        %1685 = vmatprep.subr.bf16.mxu0 0
        %1686 = vmatpush1.bf16.msra.mxu0 0
        %1687 = vmatprep.subr.bf16.mxu0 0
        %1688 = vmatpush1.bf16.msra.mxu0 0
        %1689 = vmatprep.subr.bf16.mxu0 0
        %1690 = vmatpush1.bf16.msra.mxu0 0
        %1691 = vmatprep.subr.bf16.mxu0 0
        %1692 = vmatpush1.bf16.msra.mxu0 0
        %1693 = vmatprep.subr.bf16.mxu0 0
        %1694 = vmatpush1.bf16.msra.mxu0 0
        %1695 = vmatprep.subr.bf16.mxu0 0
        %1696 = vmatpush1.bf16.msra.mxu0 0
        %1697 = vmatprep.subr.bf16.mxu0 0
        %1698 = vmatpush1.bf16.msra.mxu0 0
        %1699 = vmatprep.subr.bf16.mxu0 0
        %1700 = vmatpush1.bf16.msra.mxu0 0
        %1701 = vmatprep.subr.bf16.mxu0 0
        %1702 = vmatpush1.bf16.msra.mxu0 0
        %1703 = vmatprep.subr.bf16.mxu0 0
        %1704 = vmatpush1.bf16.msra.mxu0 0
        %1705 = vmatprep.subr.bf16.mxu0 0
        %1706 = vmatpush1.bf16.msra.mxu0 0
        %1707 = vmatprep.subr.bf16.mxu0 0
        %1708 = vmatpush1.bf16.msra.mxu0 0
        %1709 = vmatprep.subr.bf16.mxu0 0
        %1710 = vmatpush1.bf16.msra.mxu0 0
        %1711 = vmatprep.mubr.bf16.mxu0 0
        %1712 = vmatmul.mubr.bf16.gmra.mrb[0].mxu0 %v1671
        %v1713 = vpop.f32.mrb[0].mxu0
        %v1714 = vadd.f32 %v1656, %v1713
        %v1715 = vpop.f32.mrb[0].mxu0
        %v1716 = vpop.f32.mrb[0].mxu0
        %v1717 = vadd.f32 %v1659, %v1716
        %v1718 = vpop.f32.mrb[0].mxu0
        %1719 = vmatprep.mubr.bf16.mxu0 0
        %1720 = vmatmul.mubr.bf16.gmra.mrb[0].mxu0 %v1674
        %v1721 = vpop.f32.mrb[0].mxu0
        %v1722 = vadd.f32 %v1664, %v1721
        %v1723 = vpop.f32.mrb[0].mxu0
        %v1724 = vpop.f32.mrb[0].mxu0
        %v1725 = vadd.f32 %v1667, %v1724
        %v1726 = vpop.f32.mrb[0].mxu0
        %1727 = vdwg.mxu0
        %v1728 = vld [vmem:[%s862] sm:$0xff]
        %v1729 = vld [vmem:[%s862 + $0x10] sm:$0xff]
        %v1730 = vld [vmem:[%s862 + $0x20] sm:$0xff]
        %v1731 = vld [vmem:[%s862 + $0x30] sm:$0xff]
        %v1732 = vpack.c.bf16 %v1729, %v1728
        %v1733 = vpack.c.bf16 %v1731, %v1730
        %v1734 = vld [vmem:[%s443] sm:$0x3]
        %v1736 = vsel %vm318, %v1732, 0
        %v1739 = vsel %vm318, %v1733, 0
        %v1742 = vsel %vm325, %v1734, 0
        %1744 = vmatprep.subr.bf16.mxu0 0
        %1745 = vmatpush1.bf16.msra.mxu0 %v1742
        %1746 = vmatprep.subr.bf16.mxu0 0
        %1747 = vmatpush1.bf16.msra.mxu0 0
        %1748 = vmatprep.subr.bf16.mxu0 0
        %1749 = vmatpush1.bf16.msra.mxu0 0
        %1750 = vmatprep.subr.bf16.mxu0 0
        %1751 = vmatpush1.bf16.msra.mxu0 0
        %1752 = vmatprep.subr.bf16.mxu0 0
        %1753 = vmatpush1.bf16.msra.mxu0 0
        %1754 = vmatprep.subr.bf16.mxu0 0
        %1755 = vmatpush1.bf16.msra.mxu0 0
        %1756 = vmatprep.subr.bf16.mxu0 0
        %1757 = vmatpush1.bf16.msra.mxu0 0
        %1758 = vmatprep.subr.bf16.mxu0 0
        %1759 = vmatpush1.bf16.msra.mxu0 0
        %1760 = vmatprep.subr.bf16.mxu0 0
        %1761 = vmatpush1.bf16.msra.mxu0 0
        %1762 = vmatprep.subr.bf16.mxu0 0
        %1763 = vmatpush1.bf16.msra.mxu0 0
        %1764 = vmatprep.subr.bf16.mxu0 0
        %1765 = vmatpush1.bf16.msra.mxu0 0
        %1766 = vmatprep.subr.bf16.mxu0 0
        %1767 = vmatpush1.bf16.msra.mxu0 0
        %1768 = vmatprep.subr.bf16.mxu0 0
        %1769 = vmatpush1.bf16.msra.mxu0 0
        %1770 = vmatprep.subr.bf16.mxu0 0
        %1771 = vmatpush1.bf16.msra.mxu0 0
        %1772 = vmatprep.subr.bf16.mxu0 0
        %1773 = vmatpush1.bf16.msra.mxu0 0
        %1774 = vmatprep.subr.bf16.mxu0 0
        %1775 = vmatpush1.bf16.msra.mxu0 0
        %1776 = vmatprep.mubr.bf16.mxu0 0
        %1777 = vmatmul.mubr.bf16.gmra.mrb[0].mxu0 %v1736
        %v1778 = vpop.f32.mrb[0].mxu0
        %v1779 = vadd.f32 0.0, %v1778
        %v1780 = vpop.f32.mrb[0].mxu0
        %v1781 = vpop.f32.mrb[0].mxu0
        %v1782 = vadd.f32 0.0, %v1781
        %v1783 = vpop.f32.mrb[0].mxu0
        %1784 = vmatprep.mubr.bf16.mxu0 0
        %1785 = vmatmul.mubr.bf16.gmra.mrb[0].mxu0 %v1739
        %v1786 = vpop.f32.mrb[0].mxu0
        %v1787 = vadd.f32 0.0, %v1786
        %v1788 = vpop.f32.mrb[0].mxu0
        %v1789 = vpop.f32.mrb[0].mxu0
        %v1790 = vadd.f32 0.0, %v1789
        %v1791 = vpop.f32.mrb[0].mxu0
        %1792 = vdwg.mxu0
        %v1793 = vadd.f32 %v1714, %v1779
        %v1794 = vadd.f32 %v1717, %v1782
        %v1795 = vadd.f32 %v1722, %v1787
        %v1796 = vadd.f32 %v1725, %v1790
        %s1797 = scalar_lea.vmem %s260, 960
        %v1798 = vld [vmem:[%s1797] sm:$0xff]
        %v1799 = vld [vmem:[%s1797 + $0x10] sm:$0xff]
        %v1800 = vld [vmem:[%s1797 + $0x20] sm:$0xff]
        %v1801 = vld [vmem:[%s1797 + $0x30] sm:$0xff]
        %v1802 = vpack.c.bf16 %v1799, %v1798
        %v1803 = vpack.c.bf16 %v1801, %v1800
        %v1804 = vld [vmem:[%s514] sm:$0x3]
        %v1806 = vsel %vm318, %v1802, 0
        %v1809 = vsel %vm318, %v1803, 0
        %v1812 = vsel %vm325, %v1804, 0
        %1814 = vmatprep.subr.bf16.mxu0 0
        %1815 = vmatpush1.bf16.msra.mxu0 %v1812
        %1816 = vmatprep.subr.bf16.mxu0 0
        %1817 = vmatpush1.bf16.msra.mxu0 0
        %1818 = vmatprep.subr.bf16.mxu0 0
        %1819 = vmatpush1.bf16.msra.mxu0 0
        %1820 = vmatprep.subr.bf16.mxu0 0
        %1821 = vmatpush1.bf16.msra.mxu0 0
        %1822 = vmatprep.subr.bf16.mxu0 0
        %1823 = vmatpush1.bf16.msra.mxu0 0
        %1824 = vmatprep.subr.bf16.mxu0 0
        %1825 = vmatpush1.bf16.msra.mxu0 0
        %1826 = vmatprep.subr.bf16.mxu0 0
        %1827 = vmatpush1.bf16.msra.mxu0 0
        %1828 = vmatprep.subr.bf16.mxu0 0
        %1829 = vmatpush1.bf16.msra.mxu0 0
        %1830 = vmatprep.subr.bf16.mxu0 0
        %1831 = vmatpush1.bf16.msra.mxu0 0
        %1832 = vmatprep.subr.bf16.mxu0 0
        %1833 = vmatpush1.bf16.msra.mxu0 0
        %1834 = vmatprep.subr.bf16.mxu0 0
        %1835 = vmatpush1.bf16.msra.mxu0 0
        %1836 = vmatprep.subr.bf16.mxu0 0
        %1837 = vmatpush1.bf16.msra.mxu0 0
        %1838 = vmatprep.subr.bf16.mxu0 0
        %1839 = vmatpush1.bf16.msra.mxu0 0
        %1840 = vmatprep.subr.bf16.mxu0 0
        %1841 = vmatpush1.bf16.msra.mxu0 0
        %1842 = vmatprep.subr.bf16.mxu0 0
        %1843 = vmatpush1.bf16.msra.mxu0 0
        %1844 = vmatprep.subr.bf16.mxu0 0
        %1845 = vmatpush1.bf16.msra.mxu0 0
        %1846 = vmatprep.mubr.bf16.mxu0 0
        %1847 = vmatmul.mubr.bf16.gmra.mrb[0].mxu0 %v1806
        %v1848 = vpop.f32.mrb[0].mxu0
        %v1849 = vadd.f32 0.0, %v1848
        %v1850 = vpop.f32.mrb[0].mxu0
        %v1851 = vpop.f32.mrb[0].mxu0
        %v1852 = vadd.f32 0.0, %v1851
        %v1853 = vpop.f32.mrb[0].mxu0
        %1854 = vmatprep.mubr.bf16.mxu0 0
        %1855 = vmatmul.mubr.bf16.gmra.mrb[0].mxu0 %v1809
        %v1856 = vpop.f32.mrb[0].mxu0
        %v1857 = vadd.f32 0.0, %v1856
        %v1858 = vpop.f32.mrb[0].mxu0
        %v1859 = vpop.f32.mrb[0].mxu0
        %v1860 = vadd.f32 0.0, %v1859
        %v1861 = vpop.f32.mrb[0].mxu0
        %1862 = vdwg.mxu0
        %v1863 = vadd.f32 %v1793, %v1849
        %v1864 = vadd.f32 %v1794, %v1852
        %v1865 = vadd.f32 %v1795, %v1857
        %v1866 = vadd.f32 %v1796, %v1860
        %s1867 = scalar_lea.vmem %s260, 1040
        %v1868 = vld [vmem:[%s1867] sm:$0xff]
        %v1869 = vld [vmem:[%s1867 + $0x10] sm:$0xff]
        %v1870 = vld [vmem:[%s1867 + $0x20] sm:$0xff]
        %v1871 = vld [vmem:[%s1867 + $0x30] sm:$0xff]
        %v1872 = vpack.c.bf16 %v1869, %v1868
        %v1873 = vpack.c.bf16 %v1871, %v1870
        %v1874 = vld [vmem:[%s585] sm:$0x3]
        %v1876 = vsel %vm318, %v1872, 0
        %v1879 = vsel %vm318, %v1873, 0
        %v1882 = vsel %vm325, %v1874, 0
        %1884 = vmatprep.subr.bf16.mxu0 0
        %1885 = vmatpush1.bf16.msra.mxu0 %v1882
        %1886 = vmatprep.subr.bf16.mxu0 0
        %1887 = vmatpush1.bf16.msra.mxu0 0
        %1888 = vmatprep.subr.bf16.mxu0 0
        %1889 = vmatpush1.bf16.msra.mxu0 0
        %1890 = vmatprep.subr.bf16.mxu0 0
        %1891 = vmatpush1.bf16.msra.mxu0 0
        %1892 = vmatprep.subr.bf16.mxu0 0
        %1893 = vmatpush1.bf16.msra.mxu0 0
        %1894 = vmatprep.subr.bf16.mxu0 0
        %1895 = vmatpush1.bf16.msra.mxu0 0
        %1896 = vmatprep.subr.bf16.mxu0 0
        %1897 = vmatpush1.bf16.msra.mxu0 0
        %1898 = vmatprep.subr.bf16.mxu0 0
        %1899 = vmatpush1.bf16.msra.mxu0 0
        %1900 = vmatprep.subr.bf16.mxu0 0
        %1901 = vmatpush1.bf16.msra.mxu0 0
        %1902 = vmatprep.subr.bf16.mxu0 0
        %1903 = vmatpush1.bf16.msra.mxu0 0
        %1904 = vmatprep.subr.bf16.mxu0 0
        %1905 = vmatpush1.bf16.msra.mxu0 0
        %1906 = vmatprep.subr.bf16.mxu0 0
        %1907 = vmatpush1.bf16.msra.mxu0 0
        %1908 = vmatprep.subr.bf16.mxu0 0
        %1909 = vmatpush1.bf16.msra.mxu0 0
        %1910 = vmatprep.subr.bf16.mxu0 0
        %1911 = vmatpush1.bf16.msra.mxu0 0
        %1912 = vmatprep.subr.bf16.mxu0 0
        %1913 = vmatpush1.bf16.msra.mxu0 0
        %1914 = vmatprep.subr.bf16.mxu0 0
        %1915 = vmatpush1.bf16.msra.mxu0 0
        %1916 = vmatprep.mubr.bf16.mxu0 0
        %1917 = vmatmul.mubr.bf16.gmra.mrb[0].mxu0 %v1876
        %v1918 = vpop.f32.mrb[0].mxu0
        %v1919 = vadd.f32 0.0, %v1918
        %v1920 = vpop.f32.mrb[0].mxu0
        %v1921 = vpop.f32.mrb[0].mxu0
        %v1922 = vadd.f32 0.0, %v1921
        %v1923 = vpop.f32.mrb[0].mxu0
        %1924 = vmatprep.mubr.bf16.mxu0 0
        %1925 = vmatmul.mubr.bf16.gmra.mrb[0].mxu0 %v1879
        %v1926 = vpop.f32.mrb[0].mxu0
        %v1927 = vadd.f32 0.0, %v1926
        %v1928 = vpop.f32.mrb[0].mxu0
        %v1929 = vpop.f32.mrb[0].mxu0
        %v1930 = vadd.f32 0.0, %v1929
        %v1931 = vpop.f32.mrb[0].mxu0
        %1932 = vdwg.mxu0
        %v1933 = vadd.f32 %v1863, %v1919
        %v1934 = vadd.f32 %v1864, %v1922
        %v1935 = vadd.f32 %v1865, %v1927
        %v1936 = vadd.f32 %v1866, %v1930
        %s1937 = scalar_lea.vmem %s260, 1120
        %v1938 = vld [vmem:[%s1937] sm:$0xff]
        %v1939 = vld [vmem:[%s1937 + $0x10] sm:$0xff]
        %v1940 = vld [vmem:[%s1937 + $0x20] sm:$0xff]
        %v1941 = vld [vmem:[%s1937 + $0x30] sm:$0xff]
        %v1942 = vpack.c.bf16 %v1939, %v1938
        %v1943 = vpack.c.bf16 %v1941, %v1940
        %v1944 = vld [vmem:[%s656] sm:$0x3]
        %v1946 = vsel %vm318, %v1942, 0
        %v1949 = vsel %vm318, %v1943, 0
        %v1952 = vsel %vm325, %v1944, 0
        %1954 = vmatprep.subr.bf16.mxu0 0
        %1955 = vmatpush1.bf16.msra.mxu0 %v1952
        %1956 = vmatprep.subr.bf16.mxu0 0
        %1957 = vmatpush1.bf16.msra.mxu0 0
        %1958 = vmatprep.subr.bf16.mxu0 0
        %1959 = vmatpush1.bf16.msra.mxu0 0
        %1960 = vmatprep.subr.bf16.mxu0 0
        %1961 = vmatpush1.bf16.msra.mxu0 0
        %1962 = vmatprep.subr.bf16.mxu0 0
        %1963 = vmatpush1.bf16.msra.mxu0 0
        %1964 = vmatprep.subr.bf16.mxu0 0
        %1965 = vmatpush1.bf16.msra.mxu0 0
        %1966 = vmatprep.subr.bf16.mxu0 0
        %1967 = vmatpush1.bf16.msra.mxu0 0
        %1968 = vmatprep.subr.bf16.mxu0 0
        %1969 = vmatpush1.bf16.msra.mxu0 0
        %1970 = vmatprep.subr.bf16.mxu0 0
        %1971 = vmatpush1.bf16.msra.mxu0 0
        %1972 = vmatprep.subr.bf16.mxu0 0
        %1973 = vmatpush1.bf16.msra.mxu0 0
        %1974 = vmatprep.subr.bf16.mxu0 0
        %1975 = vmatpush1.bf16.msra.mxu0 0
        %1976 = vmatprep.subr.bf16.mxu0 0
        %1977 = vmatpush1.bf16.msra.mxu0 0
        %1978 = vmatprep.subr.bf16.mxu0 0
        %1979 = vmatpush1.bf16.msra.mxu0 0
        %1980 = vmatprep.subr.bf16.mxu0 0
        %1981 = vmatpush1.bf16.msra.mxu0 0
        %1982 = vmatprep.subr.bf16.mxu0 0
        %1983 = vmatpush1.bf16.msra.mxu0 0
        %1984 = vmatprep.subr.bf16.mxu0 0
        %1985 = vmatpush1.bf16.msra.mxu0 0
        %1986 = vmatprep.mubr.bf16.mxu0 0
        %1987 = vmatmul.mubr.bf16.gmra.mrb[0].mxu0 %v1946
        %v1988 = vpop.f32.mrb[0].mxu0
        %v1989 = vadd.f32 0.0, %v1988
        %v1990 = vpop.f32.mrb[0].mxu0
        %v1991 = vpop.f32.mrb[0].mxu0
        %v1992 = vadd.f32 0.0, %v1991
        %v1993 = vpop.f32.mrb[0].mxu0
        %1994 = vmatprep.mubr.bf16.mxu0 0
        %1995 = vmatmul.mubr.bf16.gmra.mrb[0].mxu0 %v1949
        %v1996 = vpop.f32.mrb[0].mxu0
        %v1997 = vadd.f32 0.0, %v1996
        %v1998 = vpop.f32.mrb[0].mxu0
        %v1999 = vpop.f32.mrb[0].mxu0
        %v2000 = vadd.f32 0.0, %v1999
        %v2001 = vpop.f32.mrb[0].mxu0
        %2002 = vdwg.mxu0
        %v2003 = vadd.f32 %v1933, %v1989
        %v2004 = vadd.f32 %v1934, %v1992
        %v2005 = vadd.f32 %v1935, %v1997
        %v2006 = vadd.f32 %v1936, %v2000
        %s2007 = scalar_lea.vmem %s260, 16
        %v2008 = vld [vmem:[%s2007] sm:$0xff]
        %v2009 = vld [vmem:[%s2007 + $0x10] sm:$0xff]
        %v2010 = vld [vmem:[%s2007 + $0x20] sm:$0xff]
        %v2011 = vld [vmem:[%s2007 + $0x30] sm:$0xff]
        %v2012 = vpack.c.bf16 %v2009, %v2008
        %v2013 = vpack.c.bf16 %v2011, %v2010
        %v2014 = vld [vmem:[%s727] sm:$0x3]
        %v2016 = vsel %vm318, %v2012, 0
        %v2019 = vsel %vm318, %v2013, 0
        %v2022 = vsel %vm325, %v2014, 0
        %2024 = vmatprep.subr.bf16.mxu0 0
        %2025 = vmatpush1.bf16.msra.mxu0 %v2022
        %2026 = vmatprep.subr.bf16.mxu0 0
        %2027 = vmatpush1.bf16.msra.mxu0 0
        %2028 = vmatprep.subr.bf16.mxu0 0
        %2029 = vmatpush1.bf16.msra.mxu0 0
        %2030 = vmatprep.subr.bf16.mxu0 0
        %2031 = vmatpush1.bf16.msra.mxu0 0
        %2032 = vmatprep.subr.bf16.mxu0 0
        %2033 = vmatpush1.bf16.msra.mxu0 0
        %2034 = vmatprep.subr.bf16.mxu0 0
        %2035 = vmatpush1.bf16.msra.mxu0 0
        %2036 = vmatprep.subr.bf16.mxu0 0
        %2037 = vmatpush1.bf16.msra.mxu0 0
        %2038 = vmatprep.subr.bf16.mxu0 0
        %2039 = vmatpush1.bf16.msra.mxu0 0
        %2040 = vmatprep.subr.bf16.mxu0 0
        %2041 = vmatpush1.bf16.msra.mxu0 0
        %2042 = vmatprep.subr.bf16.mxu0 0
        %2043 = vmatpush1.bf16.msra.mxu0 0
        %2044 = vmatprep.subr.bf16.mxu0 0
        %2045 = vmatpush1.bf16.msra.mxu0 0
        %2046 = vmatprep.subr.bf16.mxu0 0
        %2047 = vmatpush1.bf16.msra.mxu0 0
        %2048 = vmatprep.subr.bf16.mxu0 0
        %2049 = vmatpush1.bf16.msra.mxu0 0
        %2050 = vmatprep.subr.bf16.mxu0 0
        %2051 = vmatpush1.bf16.msra.mxu0 0
        %2052 = vmatprep.subr.bf16.mxu0 0
        %2053 = vmatpush1.bf16.msra.mxu0 0
        %2054 = vmatprep.subr.bf16.mxu0 0
        %2055 = vmatpush1.bf16.msra.mxu0 0
        %2056 = vmatprep.mubr.bf16.mxu0 0
        %2057 = vmatmul.mubr.bf16.gmra.mrb[0].mxu0 %v2016
        %v2058 = vpop.f32.mrb[0].mxu0
        %v2059 = vadd.f32 0.0, %v2058
        %v2060 = vpop.f32.mrb[0].mxu0
        %v2061 = vpop.f32.mrb[0].mxu0
        %v2062 = vadd.f32 0.0, %v2061
        %v2063 = vpop.f32.mrb[0].mxu0
        %2064 = vmatprep.mubr.bf16.mxu0 0
        %2065 = vmatmul.mubr.bf16.gmra.mrb[0].mxu0 %v2019
        %v2066 = vpop.f32.mrb[0].mxu0
        %v2067 = vadd.f32 0.0, %v2066
        %v2068 = vpop.f32.mrb[0].mxu0
        %v2069 = vpop.f32.mrb[0].mxu0
        %v2070 = vadd.f32 0.0, %v2069
        %v2071 = vpop.f32.mrb[0].mxu0
        %2072 = vdwg.mxu0
        %v2073 = vadd.f32 %v2003, %v2059
        %v2074 = vadd.f32 %v2004, %v2062
        %v2075 = vadd.f32 %v2005, %v2067
        %v2076 = vadd.f32 %v2006, %v2070
        %s2077 = scalar_lea.vmem %s260, 96
        %v2078 = vld [vmem:[%s2077] sm:$0xff]
        %v2079 = vld [vmem:[%s2077 + $0x10] sm:$0xff]
        %v2080 = vld [vmem:[%s2077 + $0x20] sm:$0xff]
        %v2081 = vld [vmem:[%s2077 + $0x30] sm:$0xff]
        %v2082 = vpack.c.bf16 %v2079, %v2078
        %v2083 = vpack.c.bf16 %v2081, %v2080
        %v2084 = vld [vmem:[%s798] sm:$0x3]
        %v2086 = vsel %vm318, %v2082, 0
        %v2089 = vsel %vm318, %v2083, 0
        %v2092 = vsel %vm325, %v2084, 0
        %2094 = vmatprep.subr.bf16.mxu0 0
        %2095 = vmatpush1.bf16.msra.mxu0 %v2092
        %2096 = vmatprep.subr.bf16.mxu0 0
        %2097 = vmatpush1.bf16.msra.mxu0 0
        %2098 = vmatprep.subr.bf16.mxu0 0
        %2099 = vmatpush1.bf16.msra.mxu0 0
        %2100 = vmatprep.subr.bf16.mxu0 0
        %2101 = vmatpush1.bf16.msra.mxu0 0
        %2102 = vmatprep.subr.bf16.mxu0 0
        %2103 = vmatpush1.bf16.msra.mxu0 0
        %2104 = vmatprep.subr.bf16.mxu0 0
        %2105 = vmatpush1.bf16.msra.mxu0 0
        %2106 = vmatprep.subr.bf16.mxu0 0
        %2107 = vmatpush1.bf16.msra.mxu0 0
        %2108 = vmatprep.subr.bf16.mxu0 0
        %2109 = vmatpush1.bf16.msra.mxu0 0
        %2110 = vmatprep.subr.bf16.mxu0 0
        %2111 = vmatpush1.bf16.msra.mxu0 0
        %2112 = vmatprep.subr.bf16.mxu0 0
        %2113 = vmatpush1.bf16.msra.mxu0 0
        %2114 = vmatprep.subr.bf16.mxu0 0
        %2115 = vmatpush1.bf16.msra.mxu0 0
        %2116 = vmatprep.subr.bf16.mxu0 0
        %2117 = vmatpush1.bf16.msra.mxu0 0
        %2118 = vmatprep.subr.bf16.mxu0 0
        %2119 = vmatpush1.bf16.msra.mxu0 0
        %2120 = vmatprep.subr.bf16.mxu0 0
        %2121 = vmatpush1.bf16.msra.mxu0 0
        %2122 = vmatprep.subr.bf16.mxu0 0
        %2123 = vmatpush1.bf16.msra.mxu0 0
        %2124 = vmatprep.subr.bf16.mxu0 0
        %2125 = vmatpush1.bf16.msra.mxu0 0
        %2126 = vmatprep.mubr.bf16.mxu0 0
        %2127 = vmatmul.mubr.bf16.gmra.mrb[0].mxu0 %v2086
        %v2128 = vpop.f32.mrb[0].mxu0
        %v2129 = vadd.f32 0.0, %v2128
        %v2130 = vpop.f32.mrb[0].mxu0
        %v2131 = vpop.f32.mrb[0].mxu0
        %v2132 = vadd.f32 0.0, %v2131
        %v2133 = vpop.f32.mrb[0].mxu0
        %2134 = vmatprep.mubr.bf16.mxu0 0
        %2135 = vmatmul.mubr.bf16.gmra.mrb[0].mxu0 %v2089
        %v2136 = vpop.f32.mrb[0].mxu0
        %v2137 = vadd.f32 0.0, %v2136
        %v2138 = vpop.f32.mrb[0].mxu0
        %v2139 = vpop.f32.mrb[0].mxu0
        %v2140 = vadd.f32 0.0, %v2139
        %v2141 = vpop.f32.mrb[0].mxu0
        %2142 = vdwg.mxu0
        %v2143 = vadd.f32 %v2073, %v2129
        %v2144 = vadd.f32 %v2074, %v2132
        %v2145 = vadd.f32 %v2075, %v2137
        %v2146 = vadd.f32 %v2076, %v2140
        %s2147 = scalar_lea.vmem %s260, 176
        %v2148 = vld [vmem:[%s2147] sm:$0xff]
        %v2149 = vld [vmem:[%s2147 + $0x10] sm:$0xff]
        %v2150 = vld [vmem:[%s2147 + $0x20] sm:$0xff]
        %v2151 = vld [vmem:[%s2147 + $0x30] sm:$0xff]
        %v2152 = vpack.c.bf16 %v2149, %v2148
        %v2153 = vpack.c.bf16 %v2151, %v2150
        %v2154 = vld [vmem:[%s869] sm:$0x3]
        %v2156 = vsel %vm318, %v2152, 0
        %v2159 = vsel %vm318, %v2153, 0
        %v2162 = vsel %vm325, %v2154, 0
        %2164 = vmatprep.subr.bf16.mxu0 0
        %2165 = vmatpush1.bf16.msra.mxu0 %v2162
        %2166 = vmatprep.subr.bf16.mxu0 0
        %2167 = vmatpush1.bf16.msra.mxu0 0
        %2168 = vmatprep.subr.bf16.mxu0 0
        %2169 = vmatpush1.bf16.msra.mxu0 0
        %2170 = vmatprep.subr.bf16.mxu0 0
        %2171 = vmatpush1.bf16.msra.mxu0 0
        %2172 = vmatprep.subr.bf16.mxu0 0
        %2173 = vmatpush1.bf16.msra.mxu0 0
        %2174 = vmatprep.subr.bf16.mxu0 0
        %2175 = vmatpush1.bf16.msra.mxu0 0
        %2176 = vmatprep.subr.bf16.mxu0 0
        %2177 = vmatpush1.bf16.msra.mxu0 0
        %2178 = vmatprep.subr.bf16.mxu0 0
        %2179 = vmatpush1.bf16.msra.mxu0 0
        %2180 = vmatprep.subr.bf16.mxu0 0
        %2181 = vmatpush1.bf16.msra.mxu0 0
        %2182 = vmatprep.subr.bf16.mxu0 0
        %2183 = vmatpush1.bf16.msra.mxu0 0
        %2184 = vmatprep.subr.bf16.mxu0 0
        %2185 = vmatpush1.bf16.msra.mxu0 0
        %2186 = vmatprep.subr.bf16.mxu0 0
        %2187 = vmatpush1.bf16.msra.mxu0 0
        %2188 = vmatprep.subr.bf16.mxu0 0
        %2189 = vmatpush1.bf16.msra.mxu0 0
        %2190 = vmatprep.subr.bf16.mxu0 0
        %2191 = vmatpush1.bf16.msra.mxu0 0
        %2192 = vmatprep.subr.bf16.mxu0 0
        %2193 = vmatpush1.bf16.msra.mxu0 0
        %2194 = vmatprep.subr.bf16.mxu0 0
        %2195 = vmatpush1.bf16.msra.mxu0 0
        %2196 = vmatprep.mubr.bf16.mxu0 0
        %2197 = vmatmul.mubr.bf16.gmra.mrb[0].mxu0 %v2156
        %v2198 = vpop.f32.mrb[0].mxu0
        %v2199 = vadd.f32 0.0, %v2198
        %v2200 = vpop.f32.mrb[0].mxu0
        %v2201 = vpop.f32.mrb[0].mxu0
        %v2202 = vadd.f32 0.0, %v2201
        %v2203 = vpop.f32.mrb[0].mxu0
        %2204 = vmatprep.mubr.bf16.mxu0 0
        %2205 = vmatmul.mubr.bf16.gmra.mrb[0].mxu0 %v2159
        %v2206 = vpop.f32.mrb[0].mxu0
        %v2207 = vadd.f32 0.0, %v2206
        %v2208 = vpop.f32.mrb[0].mxu0
        %v2209 = vpop.f32.mrb[0].mxu0
        %v2210 = vadd.f32 0.0, %v2209
        %v2211 = vpop.f32.mrb[0].mxu0
        %2212 = vdwg.mxu0
        %v2213 = vadd.f32 %v2143, %v2199
        %v2214 = vadd.f32 %v2144, %v2202
        %v2215 = vadd.f32 %v2145, %v2207
        %v2216 = vadd.f32 %v2146, %v2210
        %v2217 = vld [vmem:[%s2] sm:$0x1]
        %v2219 = vlaneseq
        %v2220 = vshrl.u32 %v2219, 7
        %v2221 = vsub.s32 0, %v2220
        %v2222 = vrot.slane %v2217, %v2221
        %v2224 = vadd.f32 %v2213, %v2222
        %v2225 = vadd.f32 %v2214, %v2222
        %v2226 = vadd.f32 %v2215, %v2222
        %v2227 = vadd.f32 %v2216, %v2222
        %s2228 = scalar_lea.vmem %s248, 64 [#allocation3]
        %2229 = vst [vmem:[%s2228] sm:$0xff] %v2224
        %2230 = vst [vmem:[%s2228 + $0x8] sm:$0xff] %v2225
        %2231 = vst [vmem:[%s2228 + $0x10] sm:$0xff] %v2226
        %2232 = vst [vmem:[%s2228 + $0x18] sm:$0xff] %v2227
        %v2233 = vmax.f32 %v2224, 0.0
        %v2234 = vmax.f32 %v2225, 0.0
        %v2235 = vmax.f32 %v2226, 0.0
        %v2236 = vmax.f32 %v2227, 0.0
        %s2237 = scalar_lea.vmem [#allocation2], 176
        %2238 = vst [vmem:[%s2237 + $0x1] sm:$0xf] %v2233
        %2239 = vst [vmem:[%s2237 + $0x11] sm:$0xf] %v2234
        %2240 = vst [vmem:[%s2237 + $0x21] sm:$0xf] %v2235
        %2241 = vst [vmem:[%s2237 + $0x31] sm:$0xf] %v2236
        %v2242 = vld [vmem:[%s862] sm:$0xff]
        %v2243 = vld [vmem:[%s862 + $0x10] sm:$0xff]
        %v2244 = vld [vmem:[%s862 + $0x20] sm:$0xff]
        %v2245 = vld [vmem:[%s862 + $0x30] sm:$0xff]
        %v2246 = vpack.c.bf16 %v2243, %v2242
        %v2247 = vpack.c.bf16 %v2245, %v2244
        %v2248 = vld [vmem:[%s1] sm:$0x3]
        %v2249 = vld [vmem:[%s1434] sm:$0xff]
        %v2250 = vld [vmem:[%s1434 + $0x10] sm:$0xff]
        %v2251 = vld [vmem:[%s1434 + $0x20] sm:$0xff]
        %v2252 = vld [vmem:[%s1434 + $0x30] sm:$0xff]
        %v2253 = vpack.c.bf16 %v2250, %v2249
        %v2254 = vpack.c.bf16 %v2252, %v2251
        %v2255 = vld [vmem:[%s316] sm:$0x3]
        %v2257 = vsel %vm318, %v2253, 0
        %v2260 = vsel %vm318, %v2254, 0
        %v2263 = vsel %vm325, %v2255, 0
        %2265 = vmatprep.subr.bf16.mxu0 0
        %2266 = vmatpush1.bf16.msra.mxu0 %v2263
        %2267 = vmatprep.subr.bf16.mxu0 0
        %2268 = vmatpush1.bf16.msra.mxu0 0
        %2269 = vmatprep.subr.bf16.mxu0 0
        %2270 = vmatpush1.bf16.msra.mxu0 0
        %2271 = vmatprep.subr.bf16.mxu0 0
        %2272 = vmatpush1.bf16.msra.mxu0 0
        %2273 = vmatprep.subr.bf16.mxu0 0
        %2274 = vmatpush1.bf16.msra.mxu0 0
        %2275 = vmatprep.subr.bf16.mxu0 0
        %2276 = vmatpush1.bf16.msra.mxu0 0
        %2277 = vmatprep.subr.bf16.mxu0 0
        %2278 = vmatpush1.bf16.msra.mxu0 0
        %2279 = vmatprep.subr.bf16.mxu0 0
        %2280 = vmatpush1.bf16.msra.mxu0 0
        %2281 = vmatprep.subr.bf16.mxu0 0
        %2282 = vmatpush1.bf16.msra.mxu0 0
        %2283 = vmatprep.subr.bf16.mxu0 0
        %2284 = vmatpush1.bf16.msra.mxu0 0
        %2285 = vmatprep.subr.bf16.mxu0 0
        %2286 = vmatpush1.bf16.msra.mxu0 0
        %2287 = vmatprep.subr.bf16.mxu0 0
        %2288 = vmatpush1.bf16.msra.mxu0 0
        %2289 = vmatprep.subr.bf16.mxu0 0
        %2290 = vmatpush1.bf16.msra.mxu0 0
        %2291 = vmatprep.subr.bf16.mxu0 0
        %2292 = vmatpush1.bf16.msra.mxu0 0
        %2293 = vmatprep.subr.bf16.mxu0 0
        %2294 = vmatpush1.bf16.msra.mxu0 0
        %2295 = vmatprep.subr.bf16.mxu0 0
        %2296 = vmatpush1.bf16.msra.mxu0 0
        %2297 = vmatprep.mubr.bf16.mxu0 0
        %2298 = vmatmul.mubr.bf16.gmra.mrb[0].mxu0 %v2257
        %v2299 = vpop.f32.mrb[0].mxu0
        %v2300 = vadd.f32 0.0, %v2299
        %v2301 = vpop.f32.mrb[0].mxu0
        %v2302 = vpop.f32.mrb[0].mxu0
        %v2303 = vadd.f32 0.0, %v2302
        %v2304 = vpop.f32.mrb[0].mxu0
        %2305 = vmatprep.mubr.bf16.mxu0 0
        %2306 = vmatmul.mubr.bf16.gmra.mrb[0].mxu0 %v2260
        %v2307 = vpop.f32.mrb[0].mxu0
        %v2308 = vadd.f32 0.0, %v2307
        %v2309 = vpop.f32.mrb[0].mxu0
        %v2310 = vpop.f32.mrb[0].mxu0
        %v2311 = vadd.f32 0.0, %v2310
        %v2312 = vpop.f32.mrb[0].mxu0
        %2313 = vdwg.mxu0
        %v2315 = vsel %vm318, %v2246, 0
        %v2318 = vsel %vm318, %v2247, 0
        %v2321 = vsel %vm325, %v2248, 0
        %2323 = vmatprep.subr.bf16.mxu0 0
        %2324 = vmatpush1.bf16.msra.mxu0 %v2321
        %2325 = vmatprep.subr.bf16.mxu0 0
        %2326 = vmatpush1.bf16.msra.mxu0 0
        %2327 = vmatprep.subr.bf16.mxu0 0
        %2328 = vmatpush1.bf16.msra.mxu0 0
        %2329 = vmatprep.subr.bf16.mxu0 0
        %2330 = vmatpush1.bf16.msra.mxu0 0
        %2331 = vmatprep.subr.bf16.mxu0 0
        %2332 = vmatpush1.bf16.msra.mxu0 0
        %2333 = vmatprep.subr.bf16.mxu0 0
        %2334 = vmatpush1.bf16.msra.mxu0 0
        %2335 = vmatprep.subr.bf16.mxu0 0
        %2336 = vmatpush1.bf16.msra.mxu0 0
        %2337 = vmatprep.subr.bf16.mxu0 0
        %2338 = vmatpush1.bf16.msra.mxu0 0
        %2339 = vmatprep.subr.bf16.mxu0 0
        %2340 = vmatpush1.bf16.msra.mxu0 0
        %2341 = vmatprep.subr.bf16.mxu0 0
        %2342 = vmatpush1.bf16.msra.mxu0 0
        %2343 = vmatprep.subr.bf16.mxu0 0
        %2344 = vmatpush1.bf16.msra.mxu0 0
        %2345 = vmatprep.subr.bf16.mxu0 0
        %2346 = vmatpush1.bf16.msra.mxu0 0
        %2347 = vmatprep.subr.bf16.mxu0 0
        %2348 = vmatpush1.bf16.msra.mxu0 0
        %2349 = vmatprep.subr.bf16.mxu0 0
        %2350 = vmatpush1.bf16.msra.mxu0 0
        %2351 = vmatprep.subr.bf16.mxu0 0
        %2352 = vmatpush1.bf16.msra.mxu0 0
        %2353 = vmatprep.subr.bf16.mxu0 0
        %2354 = vmatpush1.bf16.msra.mxu0 0
        %2355 = vmatprep.mubr.bf16.mxu0 0
        %2356 = vmatmul.mubr.bf16.gmra.mrb[0].mxu0 %v2315
        %v2357 = vpop.f32.mrb[0].mxu0
        %v2358 = vadd.f32 %v2300, %v2357
        %v2359 = vpop.f32.mrb[0].mxu0
        %v2360 = vpop.f32.mrb[0].mxu0
        %v2361 = vadd.f32 %v2303, %v2360
        %v2362 = vpop.f32.mrb[0].mxu0
        %2363 = vmatprep.mubr.bf16.mxu0 0
        %2364 = vmatmul.mubr.bf16.gmra.mrb[0].mxu0 %v2318
        %v2365 = vpop.f32.mrb[0].mxu0
        %v2366 = vadd.f32 %v2308, %v2365
        %v2367 = vpop.f32.mrb[0].mxu0
        %v2368 = vpop.f32.mrb[0].mxu0
        %v2369 = vadd.f32 %v2311, %v2368
        %v2370 = vpop.f32.mrb[0].mxu0
        %2371 = vdwg.mxu0
        %v2372 = vld [vmem:[%s720 + $0x1] sm:$0xff]
        %v2373 = vld [vmem:[%s720 + $0x11] sm:$0xff]
        %v2374 = vld [vmem:[%s720 + $0x21] sm:$0xff]
        %v2375 = vld [vmem:[%s720 + $0x31] sm:$0xff]
        %v2376 = vpack.c.bf16 %v2373, %v2372
        %v2377 = vpack.c.bf16 %v2375, %v2374
        %v2378 = vld [vmem:[%s443] sm:$0x3]
        %v2380 = vsel %vm318, %v2376, 0
        %v2383 = vsel %vm318, %v2377, 0
        %v2386 = vsel %vm325, %v2378, 0
        %2388 = vmatprep.subr.bf16.mxu0 0
        %2389 = vmatpush1.bf16.msra.mxu0 %v2386
        %2390 = vmatprep.subr.bf16.mxu0 0
        %2391 = vmatpush1.bf16.msra.mxu0 0
        %2392 = vmatprep.subr.bf16.mxu0 0
        %2393 = vmatpush1.bf16.msra.mxu0 0
        %2394 = vmatprep.subr.bf16.mxu0 0
        %2395 = vmatpush1.bf16.msra.mxu0 0
        %2396 = vmatprep.subr.bf16.mxu0 0
        %2397 = vmatpush1.bf16.msra.mxu0 0
        %2398 = vmatprep.subr.bf16.mxu0 0
        %2399 = vmatpush1.bf16.msra.mxu0 0
        %2400 = vmatprep.subr.bf16.mxu0 0
        %2401 = vmatpush1.bf16.msra.mxu0 0
        %2402 = vmatprep.subr.bf16.mxu0 0
        %2403 = vmatpush1.bf16.msra.mxu0 0
        %2404 = vmatprep.subr.bf16.mxu0 0
        %2405 = vmatpush1.bf16.msra.mxu0 0
        %2406 = vmatprep.subr.bf16.mxu0 0
        %2407 = vmatpush1.bf16.msra.mxu0 0
        %2408 = vmatprep.subr.bf16.mxu0 0
        %2409 = vmatpush1.bf16.msra.mxu0 0
        %2410 = vmatprep.subr.bf16.mxu0 0
        %2411 = vmatpush1.bf16.msra.mxu0 0
        %2412 = vmatprep.subr.bf16.mxu0 0
        %2413 = vmatpush1.bf16.msra.mxu0 0
        %2414 = vmatprep.subr.bf16.mxu0 0
        %2415 = vmatpush1.bf16.msra.mxu0 0
        %2416 = vmatprep.subr.bf16.mxu0 0
        %2417 = vmatpush1.bf16.msra.mxu0 0
        %2418 = vmatprep.subr.bf16.mxu0 0
        %2419 = vmatpush1.bf16.msra.mxu0 0
        %2420 = vmatprep.mubr.bf16.mxu0 0
        %2421 = vmatmul.mubr.bf16.gmra.mrb[0].mxu0 %v2380
        %v2422 = vpop.f32.mrb[0].mxu0
        %v2423 = vadd.f32 0.0, %v2422
        %v2424 = vpop.f32.mrb[0].mxu0
        %v2425 = vpop.f32.mrb[0].mxu0
        %v2426 = vadd.f32 0.0, %v2425
        %v2427 = vpop.f32.mrb[0].mxu0
        %2428 = vmatprep.mubr.bf16.mxu0 0
        %2429 = vmatmul.mubr.bf16.gmra.mrb[0].mxu0 %v2383
        %v2430 = vpop.f32.mrb[0].mxu0
        %v2431 = vadd.f32 0.0, %v2430
        %v2432 = vpop.f32.mrb[0].mxu0
        %v2433 = vpop.f32.mrb[0].mxu0
        %v2434 = vadd.f32 0.0, %v2433
        %v2435 = vpop.f32.mrb[0].mxu0
        %2436 = vdwg.mxu0
        %v2437 = vadd.f32 %v2358, %v2423
        %v2438 = vadd.f32 %v2361, %v2426
        %v2439 = vadd.f32 %v2366, %v2431
        %v2440 = vadd.f32 %v2369, %v2434
        %v2441 = vld [vmem:[%s1937] sm:$0xff]
        %v2442 = vld [vmem:[%s1937 + $0x10] sm:$0xff]
        %v2443 = vld [vmem:[%s1937 + $0x20] sm:$0xff]
        %v2444 = vld [vmem:[%s1937 + $0x30] sm:$0xff]
        %v2445 = vpack.c.bf16 %v2442, %v2441
        %v2446 = vpack.c.bf16 %v2444, %v2443
        %v2447 = vld [vmem:[%s514] sm:$0x3]
        %v2449 = vsel %vm318, %v2445, 0
        %v2452 = vsel %vm318, %v2446, 0
        %v2455 = vsel %vm325, %v2447, 0
        %2457 = vmatprep.subr.bf16.mxu0 0
        %2458 = vmatpush1.bf16.msra.mxu0 %v2455
        %2459 = vmatprep.subr.bf16.mxu0 0
        %2460 = vmatpush1.bf16.msra.mxu0 0
        %2461 = vmatprep.subr.bf16.mxu0 0
        %2462 = vmatpush1.bf16.msra.mxu0 0
        %2463 = vmatprep.subr.bf16.mxu0 0
        %2464 = vmatpush1.bf16.msra.mxu0 0
        %2465 = vmatprep.subr.bf16.mxu0 0
        %2466 = vmatpush1.bf16.msra.mxu0 0
        %2467 = vmatprep.subr.bf16.mxu0 0
        %2468 = vmatpush1.bf16.msra.mxu0 0
        %2469 = vmatprep.subr.bf16.mxu0 0
        %2470 = vmatpush1.bf16.msra.mxu0 0
        %2471 = vmatprep.subr.bf16.mxu0 0
        %2472 = vmatpush1.bf16.msra.mxu0 0
        %2473 = vmatprep.subr.bf16.mxu0 0
        %2474 = vmatpush1.bf16.msra.mxu0 0
        %2475 = vmatprep.subr.bf16.mxu0 0
        %2476 = vmatpush1.bf16.msra.mxu0 0
        %2477 = vmatprep.subr.bf16.mxu0 0
        %2478 = vmatpush1.bf16.msra.mxu0 0
        %2479 = vmatprep.subr.bf16.mxu0 0
        %2480 = vmatpush1.bf16.msra.mxu0 0
        %2481 = vmatprep.subr.bf16.mxu0 0
        %2482 = vmatpush1.bf16.msra.mxu0 0
        %2483 = vmatprep.subr.bf16.mxu0 0
        %2484 = vmatpush1.bf16.msra.mxu0 0
        %2485 = vmatprep.subr.bf16.mxu0 0
        %2486 = vmatpush1.bf16.msra.mxu0 0
        %2487 = vmatprep.subr.bf16.mxu0 0
        %2488 = vmatpush1.bf16.msra.mxu0 0
        %2489 = vmatprep.mubr.bf16.mxu0 0
        %2490 = vmatmul.mubr.bf16.gmra.mrb[0].mxu0 %v2449
        %v2491 = vpop.f32.mrb[0].mxu0
        %v2492 = vadd.f32 0.0, %v2491
        %v2493 = vpop.f32.mrb[0].mxu0
        %v2494 = vpop.f32.mrb[0].mxu0
        %v2495 = vadd.f32 0.0, %v2494
        %v2496 = vpop.f32.mrb[0].mxu0
        %2497 = vmatprep.mubr.bf16.mxu0 0
        %2498 = vmatmul.mubr.bf16.gmra.mrb[0].mxu0 %v2452
        %v2499 = vpop.f32.mrb[0].mxu0
        %v2500 = vadd.f32 0.0, %v2499
        %v2501 = vpop.f32.mrb[0].mxu0
        %v2502 = vpop.f32.mrb[0].mxu0
        %v2503 = vadd.f32 0.0, %v2502
        %v2504 = vpop.f32.mrb[0].mxu0
        %2505 = vdwg.mxu0
        %v2506 = vadd.f32 %v2437, %v2492
        %v2507 = vadd.f32 %v2438, %v2495
        %v2508 = vadd.f32 %v2439, %v2500
        %v2509 = vadd.f32 %v2440, %v2503
        %s2510 = scalar_lea.vmem %s260, 1200
        %v2511 = vld [vmem:[%s2510] sm:$0xff]
        %v2512 = vld [vmem:[%s2510 + $0x10] sm:$0xff]
        %v2513 = vld [vmem:[%s2510 + $0x20] sm:$0xff]
        %v2514 = vld [vmem:[%s2510 + $0x30] sm:$0xff]
        %v2515 = vpack.c.bf16 %v2512, %v2511
        %v2516 = vpack.c.bf16 %v2514, %v2513
        %v2517 = vld [vmem:[%s585] sm:$0x3]
        %v2519 = vsel %vm318, %v2515, 0
        %v2522 = vsel %vm318, %v2516, 0
        %v2525 = vsel %vm325, %v2517, 0
        %2527 = vmatprep.subr.bf16.mxu0 0
        %2528 = vmatpush1.bf16.msra.mxu0 %v2525
        %2529 = vmatprep.subr.bf16.mxu0 0
        %2530 = vmatpush1.bf16.msra.mxu0 0
        %2531 = vmatprep.subr.bf16.mxu0 0
        %2532 = vmatpush1.bf16.msra.mxu0 0
        %2533 = vmatprep.subr.bf16.mxu0 0
        %2534 = vmatpush1.bf16.msra.mxu0 0
        %2535 = vmatprep.subr.bf16.mxu0 0
        %2536 = vmatpush1.bf16.msra.mxu0 0
        %2537 = vmatprep.subr.bf16.mxu0 0
        %2538 = vmatpush1.bf16.msra.mxu0 0
        %2539 = vmatprep.subr.bf16.mxu0 0
        %2540 = vmatpush1.bf16.msra.mxu0 0
        %2541 = vmatprep.subr.bf16.mxu0 0
        %2542 = vmatpush1.bf16.msra.mxu0 0
        %2543 = vmatprep.subr.bf16.mxu0 0
        %2544 = vmatpush1.bf16.msra.mxu0 0
        %2545 = vmatprep.subr.bf16.mxu0 0
        %2546 = vmatpush1.bf16.msra.mxu0 0
        %2547 = vmatprep.subr.bf16.mxu0 0
        %2548 = vmatpush1.bf16.msra.mxu0 0
        %2549 = vmatprep.subr.bf16.mxu0 0
        %2550 = vmatpush1.bf16.msra.mxu0 0
        %2551 = vmatprep.subr.bf16.mxu0 0
        %2552 = vmatpush1.bf16.msra.mxu0 0
        %2553 = vmatprep.subr.bf16.mxu0 0
        %2554 = vmatpush1.bf16.msra.mxu0 0
        %2555 = vmatprep.subr.bf16.mxu0 0
        %2556 = vmatpush1.bf16.msra.mxu0 0
        %2557 = vmatprep.subr.bf16.mxu0 0
        %2558 = vmatpush1.bf16.msra.mxu0 0
        %2559 = vmatprep.mubr.bf16.mxu0 0
        %2560 = vmatmul.mubr.bf16.gmra.mrb[0].mxu0 %v2519
        %v2561 = vpop.f32.mrb[0].mxu0
        %v2562 = vadd.f32 0.0, %v2561
        %v2563 = vpop.f32.mrb[0].mxu0
        %v2564 = vpop.f32.mrb[0].mxu0
        %v2565 = vadd.f32 0.0, %v2564
        %v2566 = vpop.f32.mrb[0].mxu0
        %2567 = vmatprep.mubr.bf16.mxu0 0
        %2568 = vmatmul.mubr.bf16.gmra.mrb[0].mxu0 %v2522
        %v2569 = vpop.f32.mrb[0].mxu0
        %v2570 = vadd.f32 0.0, %v2569
        %v2571 = vpop.f32.mrb[0].mxu0
        %v2572 = vpop.f32.mrb[0].mxu0
        %v2573 = vadd.f32 0.0, %v2572
        %v2574 = vpop.f32.mrb[0].mxu0
        %2575 = vdwg.mxu0
        %v2576 = vadd.f32 %v2506, %v2562
        %v2577 = vadd.f32 %v2507, %v2565
        %v2578 = vadd.f32 %v2508, %v2570
        %v2579 = vadd.f32 %v2509, %v2573
        %v2580 = vld [vmem:[%s1797 + $0x1] sm:$0xff]
        %v2581 = vld [vmem:[%s1797 + $0x11] sm:$0xff]
        %v2582 = vld [vmem:[%s1797 + $0x21] sm:$0xff]
        %v2583 = vld [vmem:[%s1797 + $0x31] sm:$0xff]
        %v2584 = vpack.c.bf16 %v2581, %v2580
        %v2585 = vpack.c.bf16 %v2583, %v2582
        %v2586 = vld [vmem:[%s656] sm:$0x3]
        %v2588 = vsel %vm318, %v2584, 0
        %v2591 = vsel %vm318, %v2585, 0
        %v2594 = vsel %vm325, %v2586, 0
        %2596 = vmatprep.subr.bf16.mxu0 0
        %2597 = vmatpush1.bf16.msra.mxu0 %v2594
        %2598 = vmatprep.subr.bf16.mxu0 0
        %2599 = vmatpush1.bf16.msra.mxu0 0
        %2600 = vmatprep.subr.bf16.mxu0 0
        %2601 = vmatpush1.bf16.msra.mxu0 0
        %2602 = vmatprep.subr.bf16.mxu0 0
        %2603 = vmatpush1.bf16.msra.mxu0 0
        %2604 = vmatprep.subr.bf16.mxu0 0
        %2605 = vmatpush1.bf16.msra.mxu0 0
        %2606 = vmatprep.subr.bf16.mxu0 0
        %2607 = vmatpush1.bf16.msra.mxu0 0
        %2608 = vmatprep.subr.bf16.mxu0 0
        %2609 = vmatpush1.bf16.msra.mxu0 0
        %2610 = vmatprep.subr.bf16.mxu0 0
        %2611 = vmatpush1.bf16.msra.mxu0 0
        %2612 = vmatprep.subr.bf16.mxu0 0
        %2613 = vmatpush1.bf16.msra.mxu0 0
        %2614 = vmatprep.subr.bf16.mxu0 0
        %2615 = vmatpush1.bf16.msra.mxu0 0
        %2616 = vmatprep.subr.bf16.mxu0 0
        %2617 = vmatpush1.bf16.msra.mxu0 0
        %2618 = vmatprep.subr.bf16.mxu0 0
        %2619 = vmatpush1.bf16.msra.mxu0 0
        %2620 = vmatprep.subr.bf16.mxu0 0
        %2621 = vmatpush1.bf16.msra.mxu0 0
        %2622 = vmatprep.subr.bf16.mxu0 0
        %2623 = vmatpush1.bf16.msra.mxu0 0
        %2624 = vmatprep.subr.bf16.mxu0 0
        %2625 = vmatpush1.bf16.msra.mxu0 0
        %2626 = vmatprep.subr.bf16.mxu0 0
        %2627 = vmatpush1.bf16.msra.mxu0 0
        %2628 = vmatprep.mubr.bf16.mxu0 0
        %2629 = vmatmul.mubr.bf16.gmra.mrb[0].mxu0 %v2588
        %v2630 = vpop.f32.mrb[0].mxu0
        %v2631 = vadd.f32 0.0, %v2630
        %v2632 = vpop.f32.mrb[0].mxu0
        %v2633 = vpop.f32.mrb[0].mxu0
        %v2634 = vadd.f32 0.0, %v2633
        %v2635 = vpop.f32.mrb[0].mxu0
        %2636 = vmatprep.mubr.bf16.mxu0 0
        %2637 = vmatmul.mubr.bf16.gmra.mrb[0].mxu0 %v2591
        %v2638 = vpop.f32.mrb[0].mxu0
        %v2639 = vadd.f32 0.0, %v2638
        %v2640 = vpop.f32.mrb[0].mxu0
        %v2641 = vpop.f32.mrb[0].mxu0
        %v2642 = vadd.f32 0.0, %v2641
        %v2643 = vpop.f32.mrb[0].mxu0
        %2644 = vdwg.mxu0
        %v2645 = vadd.f32 %v2576, %v2631
        %v2646 = vadd.f32 %v2577, %v2634
        %v2647 = vadd.f32 %v2578, %v2639
        %v2648 = vadd.f32 %v2579, %v2642
        %v2649 = vld [vmem:[%s2147] sm:$0xff]
        %v2650 = vld [vmem:[%s2147 + $0x10] sm:$0xff]
        %v2651 = vld [vmem:[%s2147 + $0x20] sm:$0xff]
        %v2652 = vld [vmem:[%s2147 + $0x30] sm:$0xff]
        %v2653 = vpack.c.bf16 %v2650, %v2649
        %v2654 = vpack.c.bf16 %v2652, %v2651
        %v2655 = vld [vmem:[%s727] sm:$0x3]
        %v2657 = vsel %vm318, %v2653, 0
        %v2660 = vsel %vm318, %v2654, 0
        %v2663 = vsel %vm325, %v2655, 0
        %2665 = vmatprep.subr.bf16.mxu0 0
        %2666 = vmatpush1.bf16.msra.mxu0 %v2663
        %2667 = vmatprep.subr.bf16.mxu0 0
        %2668 = vmatpush1.bf16.msra.mxu0 0
        %2669 = vmatprep.subr.bf16.mxu0 0
        %2670 = vmatpush1.bf16.msra.mxu0 0
        %2671 = vmatprep.subr.bf16.mxu0 0
        %2672 = vmatpush1.bf16.msra.mxu0 0
        %2673 = vmatprep.subr.bf16.mxu0 0
        %2674 = vmatpush1.bf16.msra.mxu0 0
        %2675 = vmatprep.subr.bf16.mxu0 0
        %2676 = vmatpush1.bf16.msra.mxu0 0
        %2677 = vmatprep.subr.bf16.mxu0 0
        %2678 = vmatpush1.bf16.msra.mxu0 0
        %2679 = vmatprep.subr.bf16.mxu0 0
        %2680 = vmatpush1.bf16.msra.mxu0 0
        %2681 = vmatprep.subr.bf16.mxu0 0
        %2682 = vmatpush1.bf16.msra.mxu0 0
        %2683 = vmatprep.subr.bf16.mxu0 0
        %2684 = vmatpush1.bf16.msra.mxu0 0
        %2685 = vmatprep.subr.bf16.mxu0 0
        %2686 = vmatpush1.bf16.msra.mxu0 0
        %2687 = vmatprep.subr.bf16.mxu0 0
        %2688 = vmatpush1.bf16.msra.mxu0 0
        %2689 = vmatprep.subr.bf16.mxu0 0
        %2690 = vmatpush1.bf16.msra.mxu0 0
        %2691 = vmatprep.subr.bf16.mxu0 0
        %2692 = vmatpush1.bf16.msra.mxu0 0
        %2693 = vmatprep.subr.bf16.mxu0 0
        %2694 = vmatpush1.bf16.msra.mxu0 0
        %2695 = vmatprep.subr.bf16.mxu0 0
        %2696 = vmatpush1.bf16.msra.mxu0 0
        %2697 = vmatprep.mubr.bf16.mxu0 0
        %2698 = vmatmul.mubr.bf16.gmra.mrb[0].mxu0 %v2657
        %v2699 = vpop.f32.mrb[0].mxu0
        %v2700 = vadd.f32 0.0, %v2699
        %v2701 = vpop.f32.mrb[0].mxu0
        %v2702 = vpop.f32.mrb[0].mxu0
        %v2703 = vadd.f32 0.0, %v2702
        %v2704 = vpop.f32.mrb[0].mxu0
        %2705 = vmatprep.mubr.bf16.mxu0 0
        %2706 = vmatmul.mubr.bf16.gmra.mrb[0].mxu0 %v2660
        %v2707 = vpop.f32.mrb[0].mxu0
        %v2708 = vadd.f32 0.0, %v2707
        %v2709 = vpop.f32.mrb[0].mxu0
        %v2710 = vpop.f32.mrb[0].mxu0
        %v2711 = vadd.f32 0.0, %v2710
        %v2712 = vpop.f32.mrb[0].mxu0
        %2713 = vdwg.mxu0
        %v2714 = vadd.f32 %v2645, %v2700
        %v2715 = vadd.f32 %v2646, %v2703
        %v2716 = vadd.f32 %v2647, %v2708
        %v2717 = vadd.f32 %v2648, %v2711
        %s2718 = scalar_lea.vmem %s260, 256
        %v2719 = vld [vmem:[%s2718] sm:$0xff]
        %v2720 = vld [vmem:[%s2718 + $0x10] sm:$0xff]
        %v2721 = vld [vmem:[%s2718 + $0x20] sm:$0xff]
        %v2722 = vld [vmem:[%s2718 + $0x30] sm:$0xff]
        %v2723 = vpack.c.bf16 %v2720, %v2719
        %v2724 = vpack.c.bf16 %v2722, %v2721
        %v2725 = vld [vmem:[%s798] sm:$0x3]
        %v2727 = vsel %vm318, %v2723, 0
        %v2730 = vsel %vm318, %v2724, 0
        %v2733 = vsel %vm325, %v2725, 0
        %2735 = vmatprep.subr.bf16.mxu0 0
        %2736 = vmatpush1.bf16.msra.mxu0 %v2733
        %2737 = vmatprep.subr.bf16.mxu0 0
        %2738 = vmatpush1.bf16.msra.mxu0 0
        %2739 = vmatprep.subr.bf16.mxu0 0
        %2740 = vmatpush1.bf16.msra.mxu0 0
        %2741 = vmatprep.subr.bf16.mxu0 0
        %2742 = vmatpush1.bf16.msra.mxu0 0
        %2743 = vmatprep.subr.bf16.mxu0 0
        %2744 = vmatpush1.bf16.msra.mxu0 0
        %2745 = vmatprep.subr.bf16.mxu0 0
        %2746 = vmatpush1.bf16.msra.mxu0 0
        %2747 = vmatprep.subr.bf16.mxu0 0
        %2748 = vmatpush1.bf16.msra.mxu0 0
        %2749 = vmatprep.subr.bf16.mxu0 0
        %2750 = vmatpush1.bf16.msra.mxu0 0
        %2751 = vmatprep.subr.bf16.mxu0 0
        %2752 = vmatpush1.bf16.msra.mxu0 0
        %2753 = vmatprep.subr.bf16.mxu0 0
        %2754 = vmatpush1.bf16.msra.mxu0 0
        %2755 = vmatprep.subr.bf16.mxu0 0
        %2756 = vmatpush1.bf16.msra.mxu0 0
        %2757 = vmatprep.subr.bf16.mxu0 0
        %2758 = vmatpush1.bf16.msra.mxu0 0
        %2759 = vmatprep.subr.bf16.mxu0 0
        %2760 = vmatpush1.bf16.msra.mxu0 0
        %2761 = vmatprep.subr.bf16.mxu0 0
        %2762 = vmatpush1.bf16.msra.mxu0 0
        %2763 = vmatprep.subr.bf16.mxu0 0
        %2764 = vmatpush1.bf16.msra.mxu0 0
        %2765 = vmatprep.subr.bf16.mxu0 0
        %2766 = vmatpush1.bf16.msra.mxu0 0
        %2767 = vmatprep.mubr.bf16.mxu0 0
        %2768 = vmatmul.mubr.bf16.gmra.mrb[0].mxu0 %v2727
        %v2769 = vpop.f32.mrb[0].mxu0
        %v2770 = vadd.f32 0.0, %v2769
        %v2771 = vpop.f32.mrb[0].mxu0
        %v2772 = vpop.f32.mrb[0].mxu0
        %v2773 = vadd.f32 0.0, %v2772
        %v2774 = vpop.f32.mrb[0].mxu0
        %2775 = vmatprep.mubr.bf16.mxu0 0
        %2776 = vmatmul.mubr.bf16.gmra.mrb[0].mxu0 %v2730
        %v2777 = vpop.f32.mrb[0].mxu0
        %v2778 = vadd.f32 0.0, %v2777
        %v2779 = vpop.f32.mrb[0].mxu0
        %v2780 = vpop.f32.mrb[0].mxu0
        %v2781 = vadd.f32 0.0, %v2780
        %v2782 = vpop.f32.mrb[0].mxu0
        %2783 = vdwg.mxu0
        %v2784 = vadd.f32 %v2714, %v2770
        %v2785 = vadd.f32 %v2715, %v2773
        %v2786 = vadd.f32 %v2716, %v2778
        %v2787 = vadd.f32 %v2717, %v2781
        %v2788 = vld [vmem:[%s2007 + $0x1] sm:$0xff]
        %v2789 = vld [vmem:[%s2007 + $0x11] sm:$0xff]
        %v2790 = vld [vmem:[%s2007 + $0x21] sm:$0xff]
        %v2791 = vld [vmem:[%s2007 + $0x31] sm:$0xff]
        %v2792 = vpack.c.bf16 %v2789, %v2788
        %v2793 = vpack.c.bf16 %v2791, %v2790
        %v2794 = vld [vmem:[%s869] sm:$0x3]
        %v2796 = vsel %vm318, %v2792, 0
        %v2799 = vsel %vm318, %v2793, 0
        %v2802 = vsel %vm325, %v2794, 0
        %2804 = vmatprep.subr.bf16.mxu0 0
        %2805 = vmatpush1.bf16.msra.mxu0 %v2802
        %2806 = vmatprep.subr.bf16.mxu0 0
        %2807 = vmatpush1.bf16.msra.mxu0 0
        %2808 = vmatprep.subr.bf16.mxu0 0
        %2809 = vmatpush1.bf16.msra.mxu0 0
        %2810 = vmatprep.subr.bf16.mxu0 0
        %2811 = vmatpush1.bf16.msra.mxu0 0
        %2812 = vmatprep.subr.bf16.mxu0 0
        %2813 = vmatpush1.bf16.msra.mxu0 0
        %2814 = vmatprep.subr.bf16.mxu0 0
        %2815 = vmatpush1.bf16.msra.mxu0 0
        %2816 = vmatprep.subr.bf16.mxu0 0
        %2817 = vmatpush1.bf16.msra.mxu0 0
        %2818 = vmatprep.subr.bf16.mxu0 0
        %2819 = vmatpush1.bf16.msra.mxu0 0
        %2820 = vmatprep.subr.bf16.mxu0 0
        %2821 = vmatpush1.bf16.msra.mxu0 0
        %2822 = vmatprep.subr.bf16.mxu0 0
        %2823 = vmatpush1.bf16.msra.mxu0 0
        %2824 = vmatprep.subr.bf16.mxu0 0
        %2825 = vmatpush1.bf16.msra.mxu0 0
        %2826 = vmatprep.subr.bf16.mxu0 0
        %2827 = vmatpush1.bf16.msra.mxu0 0
        %2828 = vmatprep.subr.bf16.mxu0 0
        %2829 = vmatpush1.bf16.msra.mxu0 0
        %2830 = vmatprep.subr.bf16.mxu0 0
        %2831 = vmatpush1.bf16.msra.mxu0 0
        %2832 = vmatprep.subr.bf16.mxu0 0
        %2833 = vmatpush1.bf16.msra.mxu0 0
        %2834 = vmatprep.subr.bf16.mxu0 0
        %2835 = vmatpush1.bf16.msra.mxu0 0
        %2836 = vmatprep.mubr.bf16.mxu0 0
        %2837 = vmatmul.mubr.bf16.gmra.mrb[0].mxu0 %v2796
        %v2838 = vpop.f32.mrb[0].mxu0
        %v2839 = vadd.f32 0.0, %v2838
        %v2840 = vpop.f32.mrb[0].mxu0
        %v2841 = vpop.f32.mrb[0].mxu0
        %v2842 = vadd.f32 0.0, %v2841
        %v2843 = vpop.f32.mrb[0].mxu0
        %2844 = vmatprep.mubr.bf16.mxu0 0
        %2845 = vmatmul.mubr.bf16.gmra.mrb[0].mxu0 %v2799
        %v2846 = vpop.f32.mrb[0].mxu0
        %v2847 = vadd.f32 0.0, %v2846
        %v2848 = vpop.f32.mrb[0].mxu0
        %v2849 = vpop.f32.mrb[0].mxu0
        %v2850 = vadd.f32 0.0, %v2849
        %v2851 = vpop.f32.mrb[0].mxu0
        %2852 = vdwg.mxu0
        %v2853 = vadd.f32 %v2784, %v2839
        %v2854 = vadd.f32 %v2785, %v2842
        %v2855 = vadd.f32 %v2786, %v2847
        %v2856 = vadd.f32 %v2787, %v2850
        %v2857 = vld [vmem:[%s2] sm:$0x1]
        %v2859 = vlaneseq
        %v2860 = vshrl.u32 %v2859, 7
        %v2861 = vsub.s32 0, %v2860
        %v2862 = vrot.slane %v2857, %v2861
        %v2864 = vadd.f32 %v2853, %v2862
        %v2865 = vadd.f32 %v2854, %v2862
        %v2866 = vadd.f32 %v2855, %v2862
        %v2867 = vadd.f32 %v2856, %v2862
        %s2868 = scalar_lea.vmem %s248, 96 [#allocation3]
        %2869 = vst [vmem:[%s2868] sm:$0xff] %v2864
        %2870 = vst [vmem:[%s2868 + $0x8] sm:$0xff] %v2865
        %2871 = vst [vmem:[%s2868 + $0x10] sm:$0xff] %v2866
        %2872 = vst [vmem:[%s2868 + $0x18] sm:$0xff] %v2867
        %v2873 = vmax.f32 %v2864, 0.0
        %v2874 = vmax.f32 %v2865, 0.0
        %v2875 = vmax.f32 %v2866, 0.0
        %v2876 = vmax.f32 %v2867, 0.0
        %s2877 = scalar_lea.vmem [#allocation2], 256
        %2878 = vst [vmem:[%s2877 + $0x1] sm:$0xf] %v2873
        %2879 = vst [vmem:[%s2877 + $0x11] sm:$0xf] %v2874
        %2880 = vst [vmem:[%s2877 + $0x21] sm:$0xf] %v2875
        %2881 = vst [vmem:[%s2877 + $0x31] sm:$0xf] %v2876
        %s2882 = scalar_lea.vmem [#allocation2], 240
        %v2883 = vld [vmem:[%s2882] sm:$0xff]
        %v2884 = vld [vmem:[%s2882 + $0x10] sm:$0xff]
        %v2885 = vld [vmem:[%s2882 + $0x20] sm:$0xff]
        %v2886 = vld [vmem:[%s2882 + $0x30] sm:$0xff]
        %v2887 = vpack.c.bf16 %v2884, %v2883
        %v2888 = vpack.c.bf16 %v2886, %v2885
        %v2889 = vld [vmem:[%s3] sm:$0xf]
        %v2890 = vld [vmem:[%s3 + $0x4] sm:$0xf]
        %v2891 = vld [vmem:[%s3 + $0x8] sm:$0xf]
        %v2892 = vld [vmem:[%s3 + $0xc] sm:$0xf]
        %v2893 = vld [vmem:[%s3 + $0x10] sm:$0xf]
        %v2894 = vld [vmem:[%s3 + $0x14] sm:$0xf]
        %v2895 = vld [vmem:[%s3 + $0x18] sm:$0xf]
        %v2896 = vld [vmem:[%s3 + $0x1c] sm:$0xf]
        %v2897 = vld [vmem:[%s3 + $0x20] sm:$0xf]
        %v2898 = vld [vmem:[%s3 + $0x24] sm:$0xf]
        %v2899 = vld [vmem:[%s3 + $0x28] sm:$0xf]
        %v2900 = vld [vmem:[%s3 + $0x2c] sm:$0xf]
        %v2901 = vld [vmem:[%s3 + $0x30] sm:$0xf]
        %v2902 = vld [vmem:[%s3 + $0x34] sm:$0xf]
        %v2903 = vld [vmem:[%s3 + $0x38] sm:$0xf]
        %v2904 = vld [vmem:[%s3 + $0x3c] sm:$0xf]
        %s2905 = scalar_lea.vmem [#allocation2], 160
        %v2906 = vld [vmem:[%s2905 + $0x1] sm:$0xff]
        %v2907 = vld [vmem:[%s2905 + $0x11] sm:$0xff]
        %v2908 = vld [vmem:[%s2905 + $0x21] sm:$0xff]
        %v2909 = vld [vmem:[%s2905 + $0x31] sm:$0xff]
        %v2910 = vpack.c.bf16 %v2907, %v2906
        %v2911 = vpack.c.bf16 %v2909, %v2908
        %s2912 = scalar_lea.vmem %s3, 64
        %v2913 = vld [vmem:[%s2912] sm:$0xf]
        %v2914 = vld [vmem:[%s2912 + $0x4] sm:$0xf]
        %v2915 = vld [vmem:[%s2912 + $0x8] sm:$0xf]
        %v2916 = vld [vmem:[%s2912 + $0xc] sm:$0xf]
        %v2917 = vld [vmem:[%s2912 + $0x10] sm:$0xf]
        %v2918 = vld [vmem:[%s2912 + $0x14] sm:$0xf]
        %v2919 = vld [vmem:[%s2912 + $0x18] sm:$0xf]
        %v2920 = vld [vmem:[%s2912 + $0x1c] sm:$0xf]
        %v2921 = vld [vmem:[%s2912 + $0x20] sm:$0xf]
        %v2922 = vld [vmem:[%s2912 + $0x24] sm:$0xf]
        %v2923 = vld [vmem:[%s2912 + $0x28] sm:$0xf]
        %v2924 = vld [vmem:[%s2912 + $0x2c] sm:$0xf]
        %v2925 = vld [vmem:[%s2912 + $0x30] sm:$0xf]
        %v2926 = vld [vmem:[%s2912 + $0x34] sm:$0xf]
        %v2927 = vld [vmem:[%s2912 + $0x38] sm:$0xf]
        %v2928 = vld [vmem:[%s2912 + $0x3c] sm:$0xf]
        %v2945 = vunpack.c.l.b16 %v2913
        %v2946 = vunpack.c.l.b16 %v2914
        %v2947 = vunpack.c.l.b16 %v2915
        %v2948 = vunpack.c.l.b16 %v2916
        %v2949 = vunpack.c.l.b16 %v2917
        %v2950 = vunpack.c.l.b16 %v2918
        %v2951 = vunpack.c.l.b16 %v2919
        %v2952 = vunpack.c.l.b16 %v2920
        %v2953 = vunpack.c.l.b16 %v2921
        %v2954 = vunpack.c.l.b16 %v2922
        %v2955 = vunpack.c.l.b16 %v2923
        %v2956 = vunpack.c.l.b16 %v2924
        %v2957 = vunpack.c.l.b16 %v2925
        %v2958 = vunpack.c.l.b16 %v2926
        %v2959 = vunpack.c.l.b16 %v2927
        %v2960 = vunpack.c.l.b16 %v2928
        %v2961 = vpack.c.b16 %v2946, %v2945
        %v2962 = vpack.c.b16 %v2948, %v2947
        %v2963 = vpack.c.b16 %v2950, %v2949
        %v2964 = vpack.c.b16 %v2952, %v2951
        %v2965 = vpack.c.b16 %v2954, %v2953
        %v2966 = vpack.c.b16 %v2956, %v2955
        %v2967 = vpack.c.b16 %v2958, %v2957
        %v2968 = vpack.c.b16 %v2960, %v2959
        %2977 = vmatprep.subr.bf16.mxu0 0
        %2978 = vmatpush1.bf16.msra.mxu0 %v2961
        %2979 = vmatprep.subr.bf16.mxu0 0
        %2980 = vmatpush1.bf16.msra.mxu0 %v2962
        %2981 = vmatprep.subr.bf16.mxu0 0
        %2982 = vmatpush1.bf16.msra.mxu0 %v2963
        %2983 = vmatprep.subr.bf16.mxu0 0
        %2984 = vmatpush1.bf16.msra.mxu0 %v2964
        %2985 = vmatprep.subr.bf16.mxu0 0
        %2986 = vmatpush1.bf16.msra.mxu0 %v2965
        %2987 = vmatprep.subr.bf16.mxu0 0
        %2988 = vmatpush1.bf16.msra.mxu0 %v2966
        %2989 = vmatprep.subr.bf16.mxu0 0
        %2990 = vmatpush1.bf16.msra.mxu0 %v2967
        %2991 = vmatprep.subr.bf16.mxu0 0
        %2992 = vmatpush1.bf16.msra.mxu0 %v2968
        %2993 = vmatprep.subr.bf16.mxu0 0
        %2994 = vmatpush1.bf16.msra.mxu0 0
        %2995 = vmatprep.subr.bf16.mxu0 0
        %2996 = vmatpush1.bf16.msra.mxu0 0
        %2997 = vmatprep.subr.bf16.mxu0 0
        %2998 = vmatpush1.bf16.msra.mxu0 0
        %2999 = vmatprep.subr.bf16.mxu0 0
        %3000 = vmatpush1.bf16.msra.mxu0 0
        %3001 = vmatprep.subr.bf16.mxu0 0
        %3002 = vmatpush1.bf16.msra.mxu0 0
        %3003 = vmatprep.subr.bf16.mxu0 0
        %3004 = vmatpush1.bf16.msra.mxu0 0
        %3005 = vmatprep.subr.bf16.mxu0 0
        %3006 = vmatpush1.bf16.msra.mxu0 0
        %3007 = vmatprep.subr.bf16.mxu0 0
        %3008 = vmatpush1.bf16.msra.mxu0 0
        %3009 = vmatprep.mubr.bf16.mxu0 0
        %3010 = vmatmul.mubr.bf16.gmra.mrb[0].mxu0 %v2910
        %v3011 = vpop.f32.mrb[0].mxu0
        %v3012 = vadd.f32 0.0, %v3011
        %v3013 = vpop.f32.mrb[0].mxu0
        %v3014 = vpop.f32.mrb[0].mxu0
        %v3015 = vadd.f32 0.0, %v3014
        %v3016 = vpop.f32.mrb[0].mxu0
        %3017 = vmatprep.mubr.bf16.mxu0 0
        %3018 = vmatmul.mubr.bf16.gmra.mrb[0].mxu0 %v2911
        %v3019 = vpop.f32.mrb[0].mxu0
        %v3020 = vadd.f32 0.0, %v3019
        %v3021 = vpop.f32.mrb[0].mxu0
        %v3022 = vpop.f32.mrb[0].mxu0
        %v3023 = vadd.f32 0.0, %v3022
        %v3024 = vpop.f32.mrb[0].mxu0
        %3025 = vdwg.mxu0
        %v3042 = vunpack.c.l.b16 %v2889
        %v3043 = vunpack.c.l.b16 %v2890
        %v3044 = vunpack.c.l.b16 %v2891
        %v3045 = vunpack.c.l.b16 %v2892
        %v3046 = vunpack.c.l.b16 %v2893
        %v3047 = vunpack.c.l.b16 %v2894
        %v3048 = vunpack.c.l.b16 %v2895
        %v3049 = vunpack.c.l.b16 %v2896
        %v3050 = vunpack.c.l.b16 %v2897
        %v3051 = vunpack.c.l.b16 %v2898
        %v3052 = vunpack.c.l.b16 %v2899
        %v3053 = vunpack.c.l.b16 %v2900
        %v3054 = vunpack.c.l.b16 %v2901
        %v3055 = vunpack.c.l.b16 %v2902
        %v3056 = vunpack.c.l.b16 %v2903
        %v3057 = vunpack.c.l.b16 %v2904
        %v3058 = vpack.c.b16 %v3043, %v3042
        %v3059 = vpack.c.b16 %v3045, %v3044
        %v3060 = vpack.c.b16 %v3047, %v3046
        %v3061 = vpack.c.b16 %v3049, %v3048
        %v3062 = vpack.c.b16 %v3051, %v3050
        %v3063 = vpack.c.b16 %v3053, %v3052
        %v3064 = vpack.c.b16 %v3055, %v3054
        %v3065 = vpack.c.b16 %v3057, %v3056
        %3074 = vmatprep.subr.bf16.mxu0 0
        %3075 = vmatpush1.bf16.msra.mxu0 %v3058
        %3076 = vmatprep.subr.bf16.mxu0 0
        %3077 = vmatpush1.bf16.msra.mxu0 %v3059
        %3078 = vmatprep.subr.bf16.mxu0 0
        %3079 = vmatpush1.bf16.msra.mxu0 %v3060
        %3080 = vmatprep.subr.bf16.mxu0 0
        %3081 = vmatpush1.bf16.msra.mxu0 %v3061
        %3082 = vmatprep.subr.bf16.mxu0 0
        %3083 = vmatpush1.bf16.msra.mxu0 %v3062
        %3084 = vmatprep.subr.bf16.mxu0 0
        %3085 = vmatpush1.bf16.msra.mxu0 %v3063
        %3086 = vmatprep.subr.bf16.mxu0 0
        %3087 = vmatpush1.bf16.msra.mxu0 %v3064
        %3088 = vmatprep.subr.bf16.mxu0 0
        %3089 = vmatpush1.bf16.msra.mxu0 %v3065
        %3090 = vmatprep.subr.bf16.mxu0 0
        %3091 = vmatpush1.bf16.msra.mxu0 0
        %3092 = vmatprep.subr.bf16.mxu0 0
        %3093 = vmatpush1.bf16.msra.mxu0 0
        %3094 = vmatprep.subr.bf16.mxu0 0
        %3095 = vmatpush1.bf16.msra.mxu0 0
        %3096 = vmatprep.subr.bf16.mxu0 0
        %3097 = vmatpush1.bf16.msra.mxu0 0
        %3098 = vmatprep.subr.bf16.mxu0 0
        %3099 = vmatpush1.bf16.msra.mxu0 0
        %3100 = vmatprep.subr.bf16.mxu0 0
        %3101 = vmatpush1.bf16.msra.mxu0 0
        %3102 = vmatprep.subr.bf16.mxu0 0
        %3103 = vmatpush1.bf16.msra.mxu0 0
        %3104 = vmatprep.subr.bf16.mxu0 0
        %3105 = vmatpush1.bf16.msra.mxu0 0
        %3106 = vmatprep.mubr.bf16.mxu0 0
        %3107 = vmatmul.mubr.bf16.gmra.mrb[0].mxu0 %v2887
        %v3108 = vpop.f32.mrb[0].mxu0
        %v3109 = vadd.f32 %v3012, %v3108
        %v3110 = vpop.f32.mrb[0].mxu0
        %v3111 = vpop.f32.mrb[0].mxu0
        %v3112 = vadd.f32 %v3015, %v3111
        %v3113 = vpop.f32.mrb[0].mxu0
        %3114 = vmatprep.mubr.bf16.mxu0 0
        %3115 = vmatmul.mubr.bf16.gmra.mrb[0].mxu0 %v2888
        %v3116 = vpop.f32.mrb[0].mxu0
        %v3117 = vadd.f32 %v3020, %v3116
        %v3118 = vpop.f32.mrb[0].mxu0
        %v3119 = vpop.f32.mrb[0].mxu0
        %v3120 = vadd.f32 %v3023, %v3119
        %v3121 = vpop.f32.mrb[0].mxu0
        %3122 = vdwg.mxu0
        %v3123 = vld [vmem:[%s2882 + $0x1] sm:$0xff]
        %v3124 = vld [vmem:[%s2882 + $0x11] sm:$0xff]
        %v3125 = vld [vmem:[%s2882 + $0x21] sm:$0xff]
        %v3126 = vld [vmem:[%s2882 + $0x31] sm:$0xff]
        %v3127 = vpack.c.bf16 %v3124, %v3123
        %v3128 = vpack.c.bf16 %v3126, %v3125
        %s3129 = scalar_lea.vmem %s3, 128
        %v3130 = vld [vmem:[%s3129] sm:$0xf]
        %v3131 = vld [vmem:[%s3129 + $0x4] sm:$0xf]
        %v3132 = vld [vmem:[%s3129 + $0x8] sm:$0xf]
        %v3133 = vld [vmem:[%s3129 + $0xc] sm:$0xf]
        %v3134 = vld [vmem:[%s3129 + $0x10] sm:$0xf]
        %v3135 = vld [vmem:[%s3129 + $0x14] sm:$0xf]
        %v3136 = vld [vmem:[%s3129 + $0x18] sm:$0xf]
        %v3137 = vld [vmem:[%s3129 + $0x1c] sm:$0xf]
        %v3138 = vld [vmem:[%s3129 + $0x20] sm:$0xf]
        %v3139 = vld [vmem:[%s3129 + $0x24] sm:$0xf]
        %v3140 = vld [vmem:[%s3129 + $0x28] sm:$0xf]
        %v3141 = vld [vmem:[%s3129 + $0x2c] sm:$0xf]
        %v3142 = vld [vmem:[%s3129 + $0x30] sm:$0xf]
        %v3143 = vld [vmem:[%s3129 + $0x34] sm:$0xf]
        %v3144 = vld [vmem:[%s3129 + $0x38] sm:$0xf]
        %v3145 = vld [vmem:[%s3129 + $0x3c] sm:$0xf]
        %v3162 = vunpack.c.l.b16 %v3130
        %v3163 = vunpack.c.l.b16 %v3131
        %v3164 = vunpack.c.l.b16 %v3132
        %v3165 = vunpack.c.l.b16 %v3133
        %v3166 = vunpack.c.l.b16 %v3134
        %v3167 = vunpack.c.l.b16 %v3135
        %v3168 = vunpack.c.l.b16 %v3136
        %v3169 = vunpack.c.l.b16 %v3137
        %v3170 = vunpack.c.l.b16 %v3138
        %v3171 = vunpack.c.l.b16 %v3139
        %v3172 = vunpack.c.l.b16 %v3140
        %v3173 = vunpack.c.l.b16 %v3141
        %v3174 = vunpack.c.l.b16 %v3142
        %v3175 = vunpack.c.l.b16 %v3143
        %v3176 = vunpack.c.l.b16 %v3144
        %v3177 = vunpack.c.l.b16 %v3145
        %v3178 = vpack.c.b16 %v3163, %v3162
        %v3179 = vpack.c.b16 %v3165, %v3164
        %v3180 = vpack.c.b16 %v3167, %v3166
        %v3181 = vpack.c.b16 %v3169, %v3168
        %v3182 = vpack.c.b16 %v3171, %v3170
        %v3183 = vpack.c.b16 %v3173, %v3172
        %v3184 = vpack.c.b16 %v3175, %v3174
        %v3185 = vpack.c.b16 %v3177, %v3176
        %3194 = vmatprep.subr.bf16.mxu0 0
        %3195 = vmatpush1.bf16.msra.mxu0 %v3178
        %3196 = vmatprep.subr.bf16.mxu0 0
        %3197 = vmatpush1.bf16.msra.mxu0 %v3179
        %3198 = vmatprep.subr.bf16.mxu0 0
        %3199 = vmatpush1.bf16.msra.mxu0 %v3180
        %3200 = vmatprep.subr.bf16.mxu0 0
        %3201 = vmatpush1.bf16.msra.mxu0 %v3181
        %3202 = vmatprep.subr.bf16.mxu0 0
        %3203 = vmatpush1.bf16.msra.mxu0 %v3182
        %3204 = vmatprep.subr.bf16.mxu0 0
        %3205 = vmatpush1.bf16.msra.mxu0 %v3183
        %3206 = vmatprep.subr.bf16.mxu0 0
        %3207 = vmatpush1.bf16.msra.mxu0 %v3184
        %3208 = vmatprep.subr.bf16.mxu0 0
        %3209 = vmatpush1.bf16.msra.mxu0 %v3185
        %3210 = vmatprep.subr.bf16.mxu0 0
        %3211 = vmatpush1.bf16.msra.mxu0 0
        %3212 = vmatprep.subr.bf16.mxu0 0
        %3213 = vmatpush1.bf16.msra.mxu0 0
        %3214 = vmatprep.subr.bf16.mxu0 0
        %3215 = vmatpush1.bf16.msra.mxu0 0
        %3216 = vmatprep.subr.bf16.mxu0 0
        %3217 = vmatpush1.bf16.msra.mxu0 0
        %3218 = vmatprep.subr.bf16.mxu0 0
        %3219 = vmatpush1.bf16.msra.mxu0 0
        %3220 = vmatprep.subr.bf16.mxu0 0
        %3221 = vmatpush1.bf16.msra.mxu0 0
        %3222 = vmatprep.subr.bf16.mxu0 0
        %3223 = vmatpush1.bf16.msra.mxu0 0
        %3224 = vmatprep.subr.bf16.mxu0 0
        %3225 = vmatpush1.bf16.msra.mxu0 0
        %3226 = vmatprep.mubr.bf16.mxu0 0
        %3227 = vmatmul.mubr.bf16.gmra.mrb[0].mxu0 %v3127
        %v3228 = vpop.f32.mrb[0].mxu0
        %v3229 = vadd.f32 0.0, %v3228
        %v3230 = vpop.f32.mrb[0].mxu0
        %v3231 = vpop.f32.mrb[0].mxu0
        %v3232 = vadd.f32 0.0, %v3231
        %v3233 = vpop.f32.mrb[0].mxu0
        %3234 = vmatprep.mubr.bf16.mxu0 0
        %3235 = vmatmul.mubr.bf16.gmra.mrb[0].mxu0 %v3128
        %v3236 = vpop.f32.mrb[0].mxu0
        %v3237 = vadd.f32 0.0, %v3236
        %v3238 = vpop.f32.mrb[0].mxu0
        %v3239 = vpop.f32.mrb[0].mxu0
        %v3240 = vadd.f32 0.0, %v3239
        %v3241 = vpop.f32.mrb[0].mxu0
        %3242 = vdwg.mxu0
        %v3243 = vadd.f32 %v3109, %v3229
        %v3244 = vadd.f32 %v3112, %v3232
        %v3245 = vadd.f32 %v3117, %v3237
        %v3246 = vadd.f32 %v3120, %v3240
        %v3247 = vld [vmem:[%s1593] sm:$0xff]
        %v3248 = vld [vmem:[%s1593 + $0x10] sm:$0xff]
        %v3249 = vld [vmem:[%s1593 + $0x20] sm:$0xff]
        %v3250 = vld [vmem:[%s1593 + $0x30] sm:$0xff]
        %v3251 = vpack.c.bf16 %v3248, %v3247
        %v3252 = vpack.c.bf16 %v3250, %v3249
        %s3253 = scalar_lea.vmem %s3, 192
        %v3254 = vld [vmem:[%s3253] sm:$0xf]
        %v3255 = vld [vmem:[%s3253 + $0x4] sm:$0xf]
        %v3256 = vld [vmem:[%s3253 + $0x8] sm:$0xf]
        %v3257 = vld [vmem:[%s3253 + $0xc] sm:$0xf]
        %v3258 = vld [vmem:[%s3253 + $0x10] sm:$0xf]
        %v3259 = vld [vmem:[%s3253 + $0x14] sm:$0xf]
        %v3260 = vld [vmem:[%s3253 + $0x18] sm:$0xf]
        %v3261 = vld [vmem:[%s3253 + $0x1c] sm:$0xf]
        %v3262 = vld [vmem:[%s3253 + $0x20] sm:$0xf]
        %v3263 = vld [vmem:[%s3253 + $0x24] sm:$0xf]
        %v3264 = vld [vmem:[%s3253 + $0x28] sm:$0xf]
        %v3265 = vld [vmem:[%s3253 + $0x2c] sm:$0xf]
        %v3266 = vld [vmem:[%s3253 + $0x30] sm:$0xf]
        %v3267 = vld [vmem:[%s3253 + $0x34] sm:$0xf]
        %v3268 = vld [vmem:[%s3253 + $0x38] sm:$0xf]
        %v3269 = vld [vmem:[%s3253 + $0x3c] sm:$0xf]
        %v3286 = vunpack.c.l.b16 %v3254
        %v3287 = vunpack.c.l.b16 %v3255
        %v3288 = vunpack.c.l.b16 %v3256
        %v3289 = vunpack.c.l.b16 %v3257
        %v3290 = vunpack.c.l.b16 %v3258
        %v3291 = vunpack.c.l.b16 %v3259
        %v3292 = vunpack.c.l.b16 %v3260
        %v3293 = vunpack.c.l.b16 %v3261
        %v3294 = vunpack.c.l.b16 %v3262
        %v3295 = vunpack.c.l.b16 %v3263
        %v3296 = vunpack.c.l.b16 %v3264
        %v3297 = vunpack.c.l.b16 %v3265
        %v3298 = vunpack.c.l.b16 %v3266
        %v3299 = vunpack.c.l.b16 %v3267
        %v3300 = vunpack.c.l.b16 %v3268
        %v3301 = vunpack.c.l.b16 %v3269
        %v3302 = vpack.c.b16 %v3287, %v3286
        %v3303 = vpack.c.b16 %v3289, %v3288
        %v3304 = vpack.c.b16 %v3291, %v3290
        %v3305 = vpack.c.b16 %v3293, %v3292
        %v3306 = vpack.c.b16 %v3295, %v3294
        %v3307 = vpack.c.b16 %v3297, %v3296
        %v3308 = vpack.c.b16 %v3299, %v3298
        %v3309 = vpack.c.b16 %v3301, %v3300
        %3318 = vmatprep.subr.bf16.mxu0 0
        %3319 = vmatpush1.bf16.msra.mxu0 %v3302
        %3320 = vmatprep.subr.bf16.mxu0 0
        %3321 = vmatpush1.bf16.msra.mxu0 %v3303
        %3322 = vmatprep.subr.bf16.mxu0 0
        %3323 = vmatpush1.bf16.msra.mxu0 %v3304
        %3324 = vmatprep.subr.bf16.mxu0 0
        %3325 = vmatpush1.bf16.msra.mxu0 %v3305
        %3326 = vmatprep.subr.bf16.mxu0 0
        %3327 = vmatpush1.bf16.msra.mxu0 %v3306
        %3328 = vmatprep.subr.bf16.mxu0 0
        %3329 = vmatpush1.bf16.msra.mxu0 %v3307
        %3330 = vmatprep.subr.bf16.mxu0 0
        %3331 = vmatpush1.bf16.msra.mxu0 %v3308
        %3332 = vmatprep.subr.bf16.mxu0 0
        %3333 = vmatpush1.bf16.msra.mxu0 %v3309
        %3334 = vmatprep.subr.bf16.mxu0 0
        %3335 = vmatpush1.bf16.msra.mxu0 0
        %3336 = vmatprep.subr.bf16.mxu0 0
        %3337 = vmatpush1.bf16.msra.mxu0 0
        %3338 = vmatprep.subr.bf16.mxu0 0
        %3339 = vmatpush1.bf16.msra.mxu0 0
        %3340 = vmatprep.subr.bf16.mxu0 0
        %3341 = vmatpush1.bf16.msra.mxu0 0
        %3342 = vmatprep.subr.bf16.mxu0 0
        %3343 = vmatpush1.bf16.msra.mxu0 0
        %3344 = vmatprep.subr.bf16.mxu0 0
        %3345 = vmatpush1.bf16.msra.mxu0 0
        %3346 = vmatprep.subr.bf16.mxu0 0
        %3347 = vmatpush1.bf16.msra.mxu0 0
        %3348 = vmatprep.subr.bf16.mxu0 0
        %3349 = vmatpush1.bf16.msra.mxu0 0
        %3350 = vmatprep.mubr.bf16.mxu0 0
        %3351 = vmatmul.mubr.bf16.gmra.mrb[0].mxu0 %v3251
        %v3352 = vpop.f32.mrb[0].mxu0
        %v3353 = vadd.f32 0.0, %v3352
        %v3354 = vpop.f32.mrb[0].mxu0
        %v3355 = vpop.f32.mrb[0].mxu0
        %v3356 = vadd.f32 0.0, %v3355
        %v3357 = vpop.f32.mrb[0].mxu0
        %3358 = vmatprep.mubr.bf16.mxu0 0
        %3359 = vmatmul.mubr.bf16.gmra.mrb[0].mxu0 %v3252
        %v3360 = vpop.f32.mrb[0].mxu0
        %v3361 = vadd.f32 0.0, %v3360
        %v3362 = vpop.f32.mrb[0].mxu0
        %v3363 = vpop.f32.mrb[0].mxu0
        %v3364 = vadd.f32 0.0, %v3363
        %v3365 = vpop.f32.mrb[0].mxu0
        %3366 = vdwg.mxu0
        %v3367 = vadd.f32 %v3243, %v3353
        %v3368 = vadd.f32 %v3244, %v3356
        %v3369 = vadd.f32 %v3245, %v3361
        %v3370 = vadd.f32 %v3246, %v3364
        %v3371 = vld [vmem:[%s952 + $0x1] sm:$0xff]
        %v3372 = vld [vmem:[%s952 + $0x11] sm:$0xff]
        %v3373 = vld [vmem:[%s952 + $0x21] sm:$0xff]
        %v3374 = vld [vmem:[%s952 + $0x31] sm:$0xff]
        %v3375 = vpack.c.bf16 %v3372, %v3371
        %v3376 = vpack.c.bf16 %v3374, %v3373
        %s3377 = scalar_lea.vmem %s3, 256
        %v3378 = vld [vmem:[%s3377] sm:$0xf]
        %v3379 = vld [vmem:[%s3377 + $0x4] sm:$0xf]
        %v3380 = vld [vmem:[%s3377 + $0x8] sm:$0xf]
        %v3381 = vld [vmem:[%s3377 + $0xc] sm:$0xf]
        %v3382 = vld [vmem:[%s3377 + $0x10] sm:$0xf]
        %v3383 = vld [vmem:[%s3377 + $0x14] sm:$0xf]
        %v3384 = vld [vmem:[%s3377 + $0x18] sm:$0xf]
        %v3385 = vld [vmem:[%s3377 + $0x1c] sm:$0xf]
        %v3386 = vld [vmem:[%s3377 + $0x20] sm:$0xf]
        %v3387 = vld [vmem:[%s3377 + $0x24] sm:$0xf]
        %v3388 = vld [vmem:[%s3377 + $0x28] sm:$0xf]
        %v3389 = vld [vmem:[%s3377 + $0x2c] sm:$0xf]
        %v3390 = vld [vmem:[%s3377 + $0x30] sm:$0xf]
        %v3391 = vld [vmem:[%s3377 + $0x34] sm:$0xf]
        %v3392 = vld [vmem:[%s3377 + $0x38] sm:$0xf]
        %v3393 = vld [vmem:[%s3377 + $0x3c] sm:$0xf]
        %v3410 = vunpack.c.l.b16 %v3378
        %v3411 = vunpack.c.l.b16 %v3379
        %v3412 = vunpack.c.l.b16 %v3380
        %v3413 = vunpack.c.l.b16 %v3381
        %v3414 = vunpack.c.l.b16 %v3382
        %v3415 = vunpack.c.l.b16 %v3383
        %v3416 = vunpack.c.l.b16 %v3384
        %v3417 = vunpack.c.l.b16 %v3385
        %v3418 = vunpack.c.l.b16 %v3386
        %v3419 = vunpack.c.l.b16 %v3387
        %v3420 = vunpack.c.l.b16 %v3388
        %v3421 = vunpack.c.l.b16 %v3389
        %v3422 = vunpack.c.l.b16 %v3390
        %v3423 = vunpack.c.l.b16 %v3391
        %v3424 = vunpack.c.l.b16 %v3392
        %v3425 = vunpack.c.l.b16 %v3393
        %v3426 = vpack.c.b16 %v3411, %v3410
        %v3427 = vpack.c.b16 %v3413, %v3412
        %v3428 = vpack.c.b16 %v3415, %v3414
        %v3429 = vpack.c.b16 %v3417, %v3416
        %v3430 = vpack.c.b16 %v3419, %v3418
        %v3431 = vpack.c.b16 %v3421, %v3420
        %v3432 = vpack.c.b16 %v3423, %v3422
        %v3433 = vpack.c.b16 %v3425, %v3424
        %3442 = vmatprep.subr.bf16.mxu0 0
        %3443 = vmatpush1.bf16.msra.mxu0 %v3426
        %3444 = vmatprep.subr.bf16.mxu0 0
        %3445 = vmatpush1.bf16.msra.mxu0 %v3427
        %3446 = vmatprep.subr.bf16.mxu0 0
        %3447 = vmatpush1.bf16.msra.mxu0 %v3428
        %3448 = vmatprep.subr.bf16.mxu0 0
        %3449 = vmatpush1.bf16.msra.mxu0 %v3429
        %3450 = vmatprep.subr.bf16.mxu0 0
        %3451 = vmatpush1.bf16.msra.mxu0 %v3430
        %3452 = vmatprep.subr.bf16.mxu0 0
        %3453 = vmatpush1.bf16.msra.mxu0 %v3431
        %3454 = vmatprep.subr.bf16.mxu0 0
        %3455 = vmatpush1.bf16.msra.mxu0 %v3432
        %3456 = vmatprep.subr.bf16.mxu0 0
        %3457 = vmatpush1.bf16.msra.mxu0 %v3433
        %3458 = vmatprep.subr.bf16.mxu0 0
        %3459 = vmatpush1.bf16.msra.mxu0 0
        %3460 = vmatprep.subr.bf16.mxu0 0
        %3461 = vmatpush1.bf16.msra.mxu0 0
        %3462 = vmatprep.subr.bf16.mxu0 0
        %3463 = vmatpush1.bf16.msra.mxu0 0
        %3464 = vmatprep.subr.bf16.mxu0 0
        %3465 = vmatpush1.bf16.msra.mxu0 0
        %3466 = vmatprep.subr.bf16.mxu0 0
        %3467 = vmatpush1.bf16.msra.mxu0 0
        %3468 = vmatprep.subr.bf16.mxu0 0
        %3469 = vmatpush1.bf16.msra.mxu0 0
        %3470 = vmatprep.subr.bf16.mxu0 0
        %3471 = vmatpush1.bf16.msra.mxu0 0
        %3472 = vmatprep.subr.bf16.mxu0 0
        %3473 = vmatpush1.bf16.msra.mxu0 0
        %3474 = vmatprep.mubr.bf16.mxu0 0
        %3475 = vmatmul.mubr.bf16.gmra.mrb[0].mxu0 %v3375
        %v3476 = vpop.f32.mrb[0].mxu0
        %v3477 = vadd.f32 0.0, %v3476
        %v3478 = vpop.f32.mrb[0].mxu0
        %v3479 = vpop.f32.mrb[0].mxu0
        %v3480 = vadd.f32 0.0, %v3479
        %v3481 = vpop.f32.mrb[0].mxu0
        %3482 = vmatprep.mubr.bf16.mxu0 0
        %3483 = vmatmul.mubr.bf16.gmra.mrb[0].mxu0 %v3376
        %v3484 = vpop.f32.mrb[0].mxu0
        %v3485 = vadd.f32 0.0, %v3484
        %v3486 = vpop.f32.mrb[0].mxu0
        %v3487 = vpop.f32.mrb[0].mxu0
        %v3488 = vadd.f32 0.0, %v3487
        %v3489 = vpop.f32.mrb[0].mxu0
        %3490 = vdwg.mxu0
        %v3491 = vadd.f32 %v3367, %v3477
        %v3492 = vadd.f32 %v3368, %v3480
        %v3493 = vadd.f32 %v3369, %v3485
        %v3494 = vadd.f32 %v3370, %v3488
        %v3495 = vld [vmem:[%s1593 + $0x1] sm:$0xff]
        %v3496 = vld [vmem:[%s1593 + $0x11] sm:$0xff]
        %v3497 = vld [vmem:[%s1593 + $0x21] sm:$0xff]
        %v3498 = vld [vmem:[%s1593 + $0x31] sm:$0xff]
        %v3499 = vpack.c.bf16 %v3496, %v3495
        %v3500 = vpack.c.bf16 %v3498, %v3497
        %s3501 = scalar_lea.vmem %s3, 320
        %v3502 = vld [vmem:[%s3501] sm:$0xf]
        %v3503 = vld [vmem:[%s3501 + $0x4] sm:$0xf]
        %v3504 = vld [vmem:[%s3501 + $0x8] sm:$0xf]
        %v3505 = vld [vmem:[%s3501 + $0xc] sm:$0xf]
        %v3506 = vld [vmem:[%s3501 + $0x10] sm:$0xf]
        %v3507 = vld [vmem:[%s3501 + $0x14] sm:$0xf]
        %v3508 = vld [vmem:[%s3501 + $0x18] sm:$0xf]
        %v3509 = vld [vmem:[%s3501 + $0x1c] sm:$0xf]
        %v3510 = vld [vmem:[%s3501 + $0x20] sm:$0xf]
        %v3511 = vld [vmem:[%s3501 + $0x24] sm:$0xf]
        %v3512 = vld [vmem:[%s3501 + $0x28] sm:$0xf]
        %v3513 = vld [vmem:[%s3501 + $0x2c] sm:$0xf]
        %v3514 = vld [vmem:[%s3501 + $0x30] sm:$0xf]
        %v3515 = vld [vmem:[%s3501 + $0x34] sm:$0xf]
        %v3516 = vld [vmem:[%s3501 + $0x38] sm:$0xf]
        %v3517 = vld [vmem:[%s3501 + $0x3c] sm:$0xf]
        %v3534 = vunpack.c.l.b16 %v3502
        %v3535 = vunpack.c.l.b16 %v3503
        %v3536 = vunpack.c.l.b16 %v3504
        %v3537 = vunpack.c.l.b16 %v3505
        %v3538 = vunpack.c.l.b16 %v3506
        %v3539 = vunpack.c.l.b16 %v3507
        %v3540 = vunpack.c.l.b16 %v3508
        %v3541 = vunpack.c.l.b16 %v3509
        %v3542 = vunpack.c.l.b16 %v3510
        %v3543 = vunpack.c.l.b16 %v3511
        %v3544 = vunpack.c.l.b16 %v3512
        %v3545 = vunpack.c.l.b16 %v3513
        %v3546 = vunpack.c.l.b16 %v3514
        %v3547 = vunpack.c.l.b16 %v3515
        %v3548 = vunpack.c.l.b16 %v3516
        %v3549 = vunpack.c.l.b16 %v3517
        %v3550 = vpack.c.b16 %v3535, %v3534
        %v3551 = vpack.c.b16 %v3537, %v3536
        %v3552 = vpack.c.b16 %v3539, %v3538
        %v3553 = vpack.c.b16 %v3541, %v3540
        %v3554 = vpack.c.b16 %v3543, %v3542
        %v3555 = vpack.c.b16 %v3545, %v3544
        %v3556 = vpack.c.b16 %v3547, %v3546
        %v3557 = vpack.c.b16 %v3549, %v3548
        %3566 = vmatprep.subr.bf16.mxu0 0
        %3567 = vmatpush1.bf16.msra.mxu0 %v3550
        %3568 = vmatprep.subr.bf16.mxu0 0
        %3569 = vmatpush1.bf16.msra.mxu0 %v3551
        %3570 = vmatprep.subr.bf16.mxu0 0
        %3571 = vmatpush1.bf16.msra.mxu0 %v3552
        %3572 = vmatprep.subr.bf16.mxu0 0
        %3573 = vmatpush1.bf16.msra.mxu0 %v3553
        %3574 = vmatprep.subr.bf16.mxu0 0
        %3575 = vmatpush1.bf16.msra.mxu0 %v3554
        %3576 = vmatprep.subr.bf16.mxu0 0
        %3577 = vmatpush1.bf16.msra.mxu0 %v3555
        %3578 = vmatprep.subr.bf16.mxu0 0
        %3579 = vmatpush1.bf16.msra.mxu0 %v3556
        %3580 = vmatprep.subr.bf16.mxu0 0
        %3581 = vmatpush1.bf16.msra.mxu0 %v3557
        %3582 = vmatprep.subr.bf16.mxu0 0
        %3583 = vmatpush1.bf16.msra.mxu0 0
        %3584 = vmatprep.subr.bf16.mxu0 0
        %3585 = vmatpush1.bf16.msra.mxu0 0
        %3586 = vmatprep.subr.bf16.mxu0 0
        %3587 = vmatpush1.bf16.msra.mxu0 0
        %3588 = vmatprep.subr.bf16.mxu0 0
        %3589 = vmatpush1.bf16.msra.mxu0 0
        %3590 = vmatprep.subr.bf16.mxu0 0
        %3591 = vmatpush1.bf16.msra.mxu0 0
        %3592 = vmatprep.subr.bf16.mxu0 0
        %3593 = vmatpush1.bf16.msra.mxu0 0
        %3594 = vmatprep.subr.bf16.mxu0 0
        %3595 = vmatpush1.bf16.msra.mxu0 0
        %3596 = vmatprep.subr.bf16.mxu0 0
        %3597 = vmatpush1.bf16.msra.mxu0 0
        %3598 = vmatprep.mubr.bf16.mxu0 0
        %3599 = vmatmul.mubr.bf16.gmra.mrb[0].mxu0 %v3499
        %v3600 = vpop.f32.mrb[0].mxu0
        %v3601 = vadd.f32 0.0, %v3600
        %v3602 = vpop.f32.mrb[0].mxu0
        %v3603 = vpop.f32.mrb[0].mxu0
        %v3604 = vadd.f32 0.0, %v3603
        %v3605 = vpop.f32.mrb[0].mxu0
        %3606 = vmatprep.mubr.bf16.mxu0 0
        %3607 = vmatmul.mubr.bf16.gmra.mrb[0].mxu0 %v3500
        %v3608 = vpop.f32.mrb[0].mxu0
        %v3609 = vadd.f32 0.0, %v3608
        %v3610 = vpop.f32.mrb[0].mxu0
        %v3611 = vpop.f32.mrb[0].mxu0
        %v3612 = vadd.f32 0.0, %v3611
        %v3613 = vpop.f32.mrb[0].mxu0
        %3614 = vdwg.mxu0
        %v3615 = vadd.f32 %v3491, %v3601
        %v3616 = vadd.f32 %v3492, %v3604
        %v3617 = vadd.f32 %v3493, %v3609
        %v3618 = vadd.f32 %v3494, %v3612
        %v3619 = vld [vmem:[%s2877] sm:$0xff]
        %v3620 = vld [vmem:[%s2877 + $0x10] sm:$0xff]
        %v3621 = vld [vmem:[%s2877 + $0x20] sm:$0xff]
        %v3622 = vld [vmem:[%s2877 + $0x30] sm:$0xff]
        %v3623 = vpack.c.bf16 %v3620, %v3619
        %v3624 = vpack.c.bf16 %v3622, %v3621
        %s3625 = scalar_lea.vmem %s3, 384
        %v3626 = vld [vmem:[%s3625] sm:$0xf]
        %v3627 = vld [vmem:[%s3625 + $0x4] sm:$0xf]
        %v3628 = vld [vmem:[%s3625 + $0x8] sm:$0xf]
        %v3629 = vld [vmem:[%s3625 + $0xc] sm:$0xf]
        %v3630 = vld [vmem:[%s3625 + $0x10] sm:$0xf]
        %v3631 = vld [vmem:[%s3625 + $0x14] sm:$0xf]
        %v3632 = vld [vmem:[%s3625 + $0x18] sm:$0xf]
        %v3633 = vld [vmem:[%s3625 + $0x1c] sm:$0xf]
        %v3634 = vld [vmem:[%s3625 + $0x20] sm:$0xf]
        %v3635 = vld [vmem:[%s3625 + $0x24] sm:$0xf]
        %v3636 = vld [vmem:[%s3625 + $0x28] sm:$0xf]
        %v3637 = vld [vmem:[%s3625 + $0x2c] sm:$0xf]
        %v3638 = vld [vmem:[%s3625 + $0x30] sm:$0xf]
        %v3639 = vld [vmem:[%s3625 + $0x34] sm:$0xf]
        %v3640 = vld [vmem:[%s3625 + $0x38] sm:$0xf]
        %v3641 = vld [vmem:[%s3625 + $0x3c] sm:$0xf]
        %v3658 = vunpack.c.l.b16 %v3626
        %v3659 = vunpack.c.l.b16 %v3627
        %v3660 = vunpack.c.l.b16 %v3628
        %v3661 = vunpack.c.l.b16 %v3629
        %v3662 = vunpack.c.l.b16 %v3630
        %v3663 = vunpack.c.l.b16 %v3631
        %v3664 = vunpack.c.l.b16 %v3632
        %v3665 = vunpack.c.l.b16 %v3633
        %v3666 = vunpack.c.l.b16 %v3634
        %v3667 = vunpack.c.l.b16 %v3635
        %v3668 = vunpack.c.l.b16 %v3636
        %v3669 = vunpack.c.l.b16 %v3637
        %v3670 = vunpack.c.l.b16 %v3638
        %v3671 = vunpack.c.l.b16 %v3639
        %v3672 = vunpack.c.l.b16 %v3640
        %v3673 = vunpack.c.l.b16 %v3641
        %v3674 = vpack.c.b16 %v3659, %v3658
        %v3675 = vpack.c.b16 %v3661, %v3660
        %v3676 = vpack.c.b16 %v3663, %v3662
        %v3677 = vpack.c.b16 %v3665, %v3664
        %v3678 = vpack.c.b16 %v3667, %v3666
        %v3679 = vpack.c.b16 %v3669, %v3668
        %v3680 = vpack.c.b16 %v3671, %v3670
        %v3681 = vpack.c.b16 %v3673, %v3672
        %3690 = vmatprep.subr.bf16.mxu0 0
        %3691 = vmatpush1.bf16.msra.mxu0 %v3674
        %3692 = vmatprep.subr.bf16.mxu0 0
        %3693 = vmatpush1.bf16.msra.mxu0 %v3675
        %3694 = vmatprep.subr.bf16.mxu0 0
        %3695 = vmatpush1.bf16.msra.mxu0 %v3676
        %3696 = vmatprep.subr.bf16.mxu0 0
        %3697 = vmatpush1.bf16.msra.mxu0 %v3677
        %3698 = vmatprep.subr.bf16.mxu0 0
        %3699 = vmatpush1.bf16.msra.mxu0 %v3678
        %3700 = vmatprep.subr.bf16.mxu0 0
        %3701 = vmatpush1.bf16.msra.mxu0 %v3679
        %3702 = vmatprep.subr.bf16.mxu0 0
        %3703 = vmatpush1.bf16.msra.mxu0 %v3680
        %3704 = vmatprep.subr.bf16.mxu0 0
        %3705 = vmatpush1.bf16.msra.mxu0 %v3681
        %3706 = vmatprep.subr.bf16.mxu0 0
        %3707 = vmatpush1.bf16.msra.mxu0 0
        %3708 = vmatprep.subr.bf16.mxu0 0
        %3709 = vmatpush1.bf16.msra.mxu0 0
        %3710 = vmatprep.subr.bf16.mxu0 0
        %3711 = vmatpush1.bf16.msra.mxu0 0
        %3712 = vmatprep.subr.bf16.mxu0 0
        %3713 = vmatpush1.bf16.msra.mxu0 0
        %3714 = vmatprep.subr.bf16.mxu0 0
        %3715 = vmatpush1.bf16.msra.mxu0 0
        %3716 = vmatprep.subr.bf16.mxu0 0
        %3717 = vmatpush1.bf16.msra.mxu0 0
        %3718 = vmatprep.subr.bf16.mxu0 0
        %3719 = vmatpush1.bf16.msra.mxu0 0
        %3720 = vmatprep.subr.bf16.mxu0 0
        %3721 = vmatpush1.bf16.msra.mxu0 0
        %3722 = vmatprep.mubr.bf16.mxu0 0
        %3723 = vmatmul.mubr.bf16.gmra.mrb[0].mxu0 %v3623
        %v3724 = vpop.f32.mrb[0].mxu0
        %v3725 = vadd.f32 0.0, %v3724
        %v3726 = vpop.f32.mrb[0].mxu0
        %v3727 = vpop.f32.mrb[0].mxu0
        %v3728 = vadd.f32 0.0, %v3727
        %v3729 = vpop.f32.mrb[0].mxu0
        %3730 = vmatprep.mubr.bf16.mxu0 0
        %3731 = vmatmul.mubr.bf16.gmra.mrb[0].mxu0 %v3624
        %v3732 = vpop.f32.mrb[0].mxu0
        %v3733 = vadd.f32 0.0, %v3732
        %v3734 = vpop.f32.mrb[0].mxu0
        %v3735 = vpop.f32.mrb[0].mxu0
        %v3736 = vadd.f32 0.0, %v3735
        %v3737 = vpop.f32.mrb[0].mxu0
        %3738 = vdwg.mxu0
        %v3739 = vadd.f32 %v3615, %v3725
        %v3740 = vadd.f32 %v3616, %v3728
        %v3741 = vadd.f32 %v3617, %v3733
        %v3742 = vadd.f32 %v3618, %v3736
        %v3743 = vld [vmem:[%s2237 + $0x1] sm:$0xff]
        %v3744 = vld [vmem:[%s2237 + $0x11] sm:$0xff]
        %v3745 = vld [vmem:[%s2237 + $0x21] sm:$0xff]
        %v3746 = vld [vmem:[%s2237 + $0x31] sm:$0xff]
        %v3747 = vpack.c.bf16 %v3744, %v3743
        %v3748 = vpack.c.bf16 %v3746, %v3745
        %s3749 = scalar_lea.vmem %s3, 448
        %v3750 = vld [vmem:[%s3749] sm:$0xf]
        %v3751 = vld [vmem:[%s3749 + $0x4] sm:$0xf]
        %v3752 = vld [vmem:[%s3749 + $0x8] sm:$0xf]
        %v3753 = vld [vmem:[%s3749 + $0xc] sm:$0xf]
        %v3754 = vld [vmem:[%s3749 + $0x10] sm:$0xf]
        %v3755 = vld [vmem:[%s3749 + $0x14] sm:$0xf]
        %v3756 = vld [vmem:[%s3749 + $0x18] sm:$0xf]
        %v3757 = vld [vmem:[%s3749 + $0x1c] sm:$0xf]
        %v3758 = vld [vmem:[%s3749 + $0x20] sm:$0xf]
        %v3759 = vld [vmem:[%s3749 + $0x24] sm:$0xf]
        %v3760 = vld [vmem:[%s3749 + $0x28] sm:$0xf]
        %v3761 = vld [vmem:[%s3749 + $0x2c] sm:$0xf]
        %v3762 = vld [vmem:[%s3749 + $0x30] sm:$0xf]
        %v3763 = vld [vmem:[%s3749 + $0x34] sm:$0xf]
        %v3764 = vld [vmem:[%s3749 + $0x38] sm:$0xf]
        %v3765 = vld [vmem:[%s3749 + $0x3c] sm:$0xf]
        %v3782 = vunpack.c.l.b16 %v3750
        %v3783 = vunpack.c.l.b16 %v3751
        %v3784 = vunpack.c.l.b16 %v3752
        %v3785 = vunpack.c.l.b16 %v3753
        %v3786 = vunpack.c.l.b16 %v3754
        %v3787 = vunpack.c.l.b16 %v3755
        %v3788 = vunpack.c.l.b16 %v3756
        %v3789 = vunpack.c.l.b16 %v3757
        %v3790 = vunpack.c.l.b16 %v3758
        %v3791 = vunpack.c.l.b16 %v3759
        %v3792 = vunpack.c.l.b16 %v3760
        %v3793 = vunpack.c.l.b16 %v3761
        %v3794 = vunpack.c.l.b16 %v3762
        %v3795 = vunpack.c.l.b16 %v3763
        %v3796 = vunpack.c.l.b16 %v3764
        %v3797 = vunpack.c.l.b16 %v3765
        %v3798 = vpack.c.b16 %v3783, %v3782
        %v3799 = vpack.c.b16 %v3785, %v3784
        %v3800 = vpack.c.b16 %v3787, %v3786
        %v3801 = vpack.c.b16 %v3789, %v3788
        %v3802 = vpack.c.b16 %v3791, %v3790
        %v3803 = vpack.c.b16 %v3793, %v3792
        %v3804 = vpack.c.b16 %v3795, %v3794
        %v3805 = vpack.c.b16 %v3797, %v3796
        %3814 = vmatprep.subr.bf16.mxu0 0
        %3815 = vmatpush1.bf16.msra.mxu0 %v3798
        %3816 = vmatprep.subr.bf16.mxu0 0
        %3817 = vmatpush1.bf16.msra.mxu0 %v3799
        %3818 = vmatprep.subr.bf16.mxu0 0
        %3819 = vmatpush1.bf16.msra.mxu0 %v3800
        %3820 = vmatprep.subr.bf16.mxu0 0
        %3821 = vmatpush1.bf16.msra.mxu0 %v3801
        %3822 = vmatprep.subr.bf16.mxu0 0
        %3823 = vmatpush1.bf16.msra.mxu0 %v3802
        %3824 = vmatprep.subr.bf16.mxu0 0
        %3825 = vmatpush1.bf16.msra.mxu0 %v3803
        %3826 = vmatprep.subr.bf16.mxu0 0
        %3827 = vmatpush1.bf16.msra.mxu0 %v3804
        %3828 = vmatprep.subr.bf16.mxu0 0
        %3829 = vmatpush1.bf16.msra.mxu0 %v3805
        %3830 = vmatprep.subr.bf16.mxu0 0
        %3831 = vmatpush1.bf16.msra.mxu0 0
        %3832 = vmatprep.subr.bf16.mxu0 0
        %3833 = vmatpush1.bf16.msra.mxu0 0
        %3834 = vmatprep.subr.bf16.mxu0 0
        %3835 = vmatpush1.bf16.msra.mxu0 0
        %3836 = vmatprep.subr.bf16.mxu0 0
        %3837 = vmatpush1.bf16.msra.mxu0 0
        %3838 = vmatprep.subr.bf16.mxu0 0
        %3839 = vmatpush1.bf16.msra.mxu0 0
        %3840 = vmatprep.subr.bf16.mxu0 0
        %3841 = vmatpush1.bf16.msra.mxu0 0
        %3842 = vmatprep.subr.bf16.mxu0 0
        %3843 = vmatpush1.bf16.msra.mxu0 0
        %3844 = vmatprep.subr.bf16.mxu0 0
        %3845 = vmatpush1.bf16.msra.mxu0 0
        %3846 = vmatprep.mubr.bf16.mxu0 0
        %3847 = vmatmul.mubr.bf16.gmra.mrb[0].mxu0 %v3747
        %v3848 = vpop.f32.mrb[0].mxu0
        %v3849 = vadd.f32 0.0, %v3848
        %v3850 = vpop.f32.mrb[0].mxu0
        %v3851 = vpop.f32.mrb[0].mxu0
        %v3852 = vadd.f32 0.0, %v3851
        %v3853 = vpop.f32.mrb[0].mxu0
        %3854 = vmatprep.mubr.bf16.mxu0 0
        %3855 = vmatmul.mubr.bf16.gmra.mrb[0].mxu0 %v3748
        %v3856 = vpop.f32.mrb[0].mxu0
        %v3857 = vadd.f32 0.0, %v3856
        %v3858 = vpop.f32.mrb[0].mxu0
        %v3859 = vpop.f32.mrb[0].mxu0
        %v3860 = vadd.f32 0.0, %v3859
        %v3861 = vpop.f32.mrb[0].mxu0
        %3862 = vdwg.mxu0
        %v3863 = vadd.f32 %v3739, %v3849
        %v3864 = vadd.f32 %v3740, %v3852
        %v3865 = vadd.f32 %v3741, %v3857
        %v3866 = vadd.f32 %v3742, %v3860
        %v3867 = vld [vmem:[%s2877 + $0x1] sm:$0xff]
        %v3868 = vld [vmem:[%s2877 + $0x11] sm:$0xff]
        %v3869 = vld [vmem:[%s2877 + $0x21] sm:$0xff]
        %v3870 = vld [vmem:[%s2877 + $0x31] sm:$0xff]
        %v3871 = vpack.c.bf16 %v3868, %v3867
        %v3872 = vpack.c.bf16 %v3870, %v3869
        %s3873 = scalar_lea.vmem %s3, 512
        %v3874 = vld [vmem:[%s3873] sm:$0xf]
        %v3875 = vld [vmem:[%s3873 + $0x4] sm:$0xf]
        %v3876 = vld [vmem:[%s3873 + $0x8] sm:$0xf]
        %v3877 = vld [vmem:[%s3873 + $0xc] sm:$0xf]
        %v3878 = vld [vmem:[%s3873 + $0x10] sm:$0xf]
        %v3879 = vld [vmem:[%s3873 + $0x14] sm:$0xf]
        %v3880 = vld [vmem:[%s3873 + $0x18] sm:$0xf]
        %v3881 = vld [vmem:[%s3873 + $0x1c] sm:$0xf]
        %v3882 = vld [vmem:[%s3873 + $0x20] sm:$0xf]
        %v3883 = vld [vmem:[%s3873 + $0x24] sm:$0xf]
        %v3884 = vld [vmem:[%s3873 + $0x28] sm:$0xf]
        %v3885 = vld [vmem:[%s3873 + $0x2c] sm:$0xf]
        %v3886 = vld [vmem:[%s3873 + $0x30] sm:$0xf]
        %v3887 = vld [vmem:[%s3873 + $0x34] sm:$0xf]
        %v3888 = vld [vmem:[%s3873 + $0x38] sm:$0xf]
        %v3889 = vld [vmem:[%s3873 + $0x3c] sm:$0xf]
        %v3906 = vunpack.c.l.b16 %v3874
        %v3907 = vunpack.c.l.b16 %v3875
        %v3908 = vunpack.c.l.b16 %v3876
        %v3909 = vunpack.c.l.b16 %v3877
        %v3910 = vunpack.c.l.b16 %v3878
        %v3911 = vunpack.c.l.b16 %v3879
        %v3912 = vunpack.c.l.b16 %v3880
        %v3913 = vunpack.c.l.b16 %v3881
        %v3914 = vunpack.c.l.b16 %v3882
        %v3915 = vunpack.c.l.b16 %v3883
        %v3916 = vunpack.c.l.b16 %v3884
        %v3917 = vunpack.c.l.b16 %v3885
        %v3918 = vunpack.c.l.b16 %v3886
        %v3919 = vunpack.c.l.b16 %v3887
        %v3920 = vunpack.c.l.b16 %v3888
        %v3921 = vunpack.c.l.b16 %v3889
        %v3922 = vpack.c.b16 %v3907, %v3906
        %v3923 = vpack.c.b16 %v3909, %v3908
        %v3924 = vpack.c.b16 %v3911, %v3910
        %v3925 = vpack.c.b16 %v3913, %v3912
        %v3926 = vpack.c.b16 %v3915, %v3914
        %v3927 = vpack.c.b16 %v3917, %v3916
        %v3928 = vpack.c.b16 %v3919, %v3918
        %v3929 = vpack.c.b16 %v3921, %v3920
        %3938 = vmatprep.subr.bf16.mxu0 0
        %3939 = vmatpush1.bf16.msra.mxu0 %v3922
        %3940 = vmatprep.subr.bf16.mxu0 0
        %3941 = vmatpush1.bf16.msra.mxu0 %v3923
        %3942 = vmatprep.subr.bf16.mxu0 0
        %3943 = vmatpush1.bf16.msra.mxu0 %v3924
        %3944 = vmatprep.subr.bf16.mxu0 0
        %3945 = vmatpush1.bf16.msra.mxu0 %v3925
        %3946 = vmatprep.subr.bf16.mxu0 0
        %3947 = vmatpush1.bf16.msra.mxu0 %v3926
        %3948 = vmatprep.subr.bf16.mxu0 0
        %3949 = vmatpush1.bf16.msra.mxu0 %v3927
        %3950 = vmatprep.subr.bf16.mxu0 0
        %3951 = vmatpush1.bf16.msra.mxu0 %v3928
        %3952 = vmatprep.subr.bf16.mxu0 0
        %3953 = vmatpush1.bf16.msra.mxu0 %v3929
        %3954 = vmatprep.subr.bf16.mxu0 0
        %3955 = vmatpush1.bf16.msra.mxu0 0
        %3956 = vmatprep.subr.bf16.mxu0 0
        %3957 = vmatpush1.bf16.msra.mxu0 0
        %3958 = vmatprep.subr.bf16.mxu0 0
        %3959 = vmatpush1.bf16.msra.mxu0 0
        %3960 = vmatprep.subr.bf16.mxu0 0
        %3961 = vmatpush1.bf16.msra.mxu0 0
        %3962 = vmatprep.subr.bf16.mxu0 0
        %3963 = vmatpush1.bf16.msra.mxu0 0
        %3964 = vmatprep.subr.bf16.mxu0 0
        %3965 = vmatpush1.bf16.msra.mxu0 0
        %3966 = vmatprep.subr.bf16.mxu0 0
        %3967 = vmatpush1.bf16.msra.mxu0 0
        %3968 = vmatprep.subr.bf16.mxu0 0
        %3969 = vmatpush1.bf16.msra.mxu0 0
        %3970 = vmatprep.mubr.bf16.mxu0 0
        %3971 = vmatmul.mubr.bf16.gmra.mrb[0].mxu0 %v3871
        %v3972 = vpop.f32.mrb[0].mxu0
        %v3973 = vadd.f32 0.0, %v3972
        %v3974 = vpop.f32.mrb[0].mxu0
        %v3975 = vpop.f32.mrb[0].mxu0
        %v3976 = vadd.f32 0.0, %v3975
        %v3977 = vpop.f32.mrb[0].mxu0
        %3978 = vmatprep.mubr.bf16.mxu0 0
        %3979 = vmatmul.mubr.bf16.gmra.mrb[0].mxu0 %v3872
        %v3980 = vpop.f32.mrb[0].mxu0
        %v3981 = vadd.f32 0.0, %v3980
        %v3982 = vpop.f32.mrb[0].mxu0
        %v3983 = vpop.f32.mrb[0].mxu0
        %v3984 = vadd.f32 0.0, %v3983
        %v3985 = vpop.f32.mrb[0].mxu0
        %3986 = vdwg.mxu0
        %v3987 = vadd.f32 %v3863, %v3973
        %v3988 = vadd.f32 %v3864, %v3976
        %v3989 = vadd.f32 %v3865, %v3981
        %v3990 = vadd.f32 %v3866, %v3984
        %v3991 = vld [vmem:[%s4] sm:$0x1]
        %v3993 = vlaneseq
        %v3994 = vshrl.u32 %v3993, 7
        %v3995 = vsub.s32 0, %v3994
        %v3996 = vrot.slane %v3991, %v3995
        %v3998 = vadd.f32 %v3987, %v3996
        %v3999 = vadd.f32 %v3988, %v3996
        %v4000 = vadd.f32 %v3989, %v3996
        %v4001 = vadd.f32 %v3990, %v3996
        %4002 = vst [vmem:[%s255] sm:$0xff] %v3998
        %4003 = vst [vmem:[%s255 + $0x8] sm:$0xff] %v3999
        %4004 = vst [vmem:[%s255 + $0x10] sm:$0xff] %v4000
        %4005 = vst [vmem:[%s255 + $0x18] sm:$0xff] %v4001
        %s4006 = sand.u32 %s142, 1
        %s4007 = scalar_lea.sflag [#allocation4], %s4006
        %s4008 = sand.u32 %s142, 1
        %s4009 = smul.addr %s4008, 128
        %s4010 = scalar_lea.vmem [#allocation3], %s4009
        %s4011 = sand.u32 %s168, 1
        %s4012 = scalar_lea.sflag [#allocation6], %s4011
        %s4013 = sand.u32 %s168, 1
        %s4014 = smul.addr %s4013, 32
        %s4015 = scalar_lea.vmem [#allocation5], %s4014
        // Predicated region
        $region41: #{tpu_custom_call.1} parent=39 // pred_check
          %p4016 = pneg %p152
        $region42: #{tpu_custom_call.1} parent=39 // pred_check_branch
          %4018 = sbr.rel (%p4016) target = $region44
        $region43: #{tpu_custom_call.1} parent=39 // pred_region
          %s4020 = ssub.s32 2048, 2048
          %4021 = vsyncadd %s4007, %s4020
          %s4022 = smul.addr %s24, 16
          %s4023 = smul.addr %s4022, 128
          %s4024 = scalar_lea.hbm %s5, %s4023
          %s4025 = sshll.u32 %s4010, 4
          %s4026 = int_to_ptr.vmem [resolvable:$true] %s4025
          %4031 = dma.vmem_to_hbm [thread:$0]  %s4026, 2048, %s4024, %s4007, 128, 128, 8
        $region44: #{tpu_custom_call.1} parent=39 // pred_fallthru
          _
        // Predicated region
        $region45: #{tpu_custom_call.1} parent=39 // pred_check
          %p4032 = pneg %p178
        $region46: #{tpu_custom_call.1} parent=39 // pred_check_branch
          %4034 = sbr.rel (%p4032) target = $region48
        $region47: #{tpu_custom_call.1} parent=39 // pred_region
          %s4036 = ssub.s32 512, 512
          %4037 = vsyncadd %s4012, %s4036
          %s4038 = smul.addr %s24, 4
          %s4039 = smul.addr %s4038, 128
          %s4040 = scalar_lea.hbm %s6, %s4039
          %s4041 = sshll.u32 %s4015, 4
          %s4042 = int_to_ptr.vmem [resolvable:$true] %s4041
          %4047 = dma.vmem_to_hbm [thread:$0]  %s4042, 512, %s4040, %s4012, 128, 128, 8
        $region48: #{tpu_custom_call.1} parent=39 // pred_fallthru
          _
      $region40: #{tpu_custom_call.1} parent=5 // pred_fallthru
        _
      %p4048 = scmp.le.s32.totalorder 2, %s19
      // Predicated region
      $region49: #{tpu_custom_call.1} parent=5 // pred_check
        %p4049 = pneg %p4048
      $region50: #{tpu_custom_call.1} parent=5 // pred_check_branch
        %4051 = sbr.rel (%p4049) target = $region52
      $region51: #{tpu_custom_call.1} parent=5 // pred_region
        %s4052 = ssub.s32 %s19, 2
        // Predicated region
        $region53: #{tpu_custom_call.1} parent=51 // pred_check
          %p4053 = pneg %p158
        $region54: #{tpu_custom_call.1} parent=51 // pred_check_branch
          %4055 = sbr.rel (%p4053) target = $region56
        $region55: #{tpu_custom_call.1} parent=51 // pred_region
          %s4056 = sand.u32 %s143, 1
          %s4057 = scalar_lea.sflag [#allocation4], %s4056
          %s4058 = sand.u32 %s143, 1
          %s4059 = smul.addr %s4058, 128
          %s4060 = scalar_lea.vmem [#allocation3], %s4059
          %4061 = dma.done %s4057, 2048
        $region56: #{tpu_custom_call.1} parent=51 // pred_fallthru
          _
        // Predicated region
        $region57: #{tpu_custom_call.1} parent=51 // pred_check
          %p4062 = pneg %p184
        $region58: #{tpu_custom_call.1} parent=51 // pred_check_branch
          %4064 = sbr.rel (%p4062) target = $region60
        $region59: #{tpu_custom_call.1} parent=51 // pred_region
          %s4065 = sand.u32 %s169, 1
          %s4066 = scalar_lea.sflag [#allocation6], %s4065
          %s4067 = sand.u32 %s169, 1
          %s4068 = smul.addr %s4067, 32
          %s4069 = scalar_lea.vmem [#allocation5], %s4068
          %4070 = dma.done %s4066, 512
        $region60: #{tpu_custom_call.1} parent=51 // pred_fallthru
          _
      $region52: #{tpu_custom_call.1} parent=5 // pred_fallthru
        _
    $region6: #{tpu_custom_call.1} parent=1 // loop_footer
      %s23 = sadd.s32 1, %s19
    $region7: #{tpu_custom_call.1} parent=1 // loop_footer_branch
      %18 = sbr.rel target = $region3
    $region8: #{tpu_custom_call.1} parent=1 // loop_exit
      _
    %4071 = vsyncpa [#allocation4], 1
    %s4072 = scalar_lea.sflag [#allocation4], 1
    %4073 = vsyncpa %s4072, 1
    %4074 = vsyncpa [#allocation6], 1
    %s4075 = scalar_lea.sflag [#allocation6], 1
    %4076 = vsyncpa %s4075, 1

</llo_original>
